<compile_context>
chip_gen: v5e
topology: v5e:2x2
jax: 0.10.0
libtpu: 0.0.40
codegen_flags: <defaults>
</compile_context>

<pallas_src>
import functools

import jax
import jax.numpy as jnp
from jax import lax
from jax.experimental import pallas as pl
from jax.experimental.pallas import tpu as pltpu


# ------------------------------ fused kernel --------------------------------

def _part_forward_kernel(
    xaug_ref, posf_ref,                       # per-batch inputs
    waug_ref, pb_ref,                         # patch embed (cls row fused)
    ln1g_ref, ln1b_ref, wqkv_ref, bqkv_ref,   # per-block weights, stacked on L
    wproj_ref, bproj_ref, ln2g_ref, ln2b_ref,
    w1_ref, b1_ref, w2_ref, b2_ref,
    ng_ref, nb_ref, dec_ref,                  # final norm + decoder
    z_ref, predT_ref, gtT_ref, loss_ref,      # outputs
    *, depth, num_heads, eps, img_size):
    D = waug_ref.shape[1]
    Dh = D // num_heads
    scale = 1.0 / float(Dh) ** 0.5
    inv_img = 1.0 / float(img_size)

    def layer_norm(x, g, b):
        mu = jnp.mean(x, axis=-1, keepdims=True)
        xc = x - mu
        var = jnp.mean(xc * xc, axis=-1, keepdims=True)
        return xc * lax.rsqrt(var + eps) * g + b

    # Patch embedding. Row 0 of the augmented input is a one-hot selecting the
    # (cls_token - patch_bias) row of w_aug, so z already has cls at row 0.
    z = jnp.dot(xaug_ref[0], waug_ref[...],
                preferred_element_type=jnp.float32) + pb_ref[...]        # (S, D)

    for l in range(depth):                       # static unroll (small depth)
        h = layer_norm(z, ln1g_ref[pl.ds(l, 1), :], ln1b_ref[pl.ds(l, 1), :])
        qkv = jnp.dot(h, wqkv_ref[l], preferred_element_type=jnp.float32) \
            + bqkv_ref[pl.ds(l, 1), :]                                   # (S, 3D)
        heads = []
        for hh in range(num_heads):              # static unroll over heads
            q = qkv[:, hh * Dh:(hh + 1) * Dh]
            k = qkv[:, D + hh * Dh:D + (hh + 1) * Dh]
            v = qkv[:, 2 * D + hh * Dh:2 * D + (hh + 1) * Dh]
            s = lax.dot_general(q, k, (((1,), (1,)), ((), ())),
                                preferred_element_type=jnp.float32) * scale
            s = s - jnp.max(s, axis=-1, keepdims=True)
            p = jnp.exp(s)
            p = p * pl.reciprocal(jnp.sum(p, axis=-1, keepdims=True), approx=True)
            heads.append(jnp.dot(p, v, preferred_element_type=jnp.float32))
        attn = jnp.concatenate(heads, axis=-1)                           # (S, D)
        proj = jnp.dot(attn, wproj_ref[l], preferred_element_type=jnp.float32) \
            + bproj_ref[pl.ds(l, 1), :]
        z = z + proj

        h2 = layer_norm(z, ln2g_ref[pl.ds(l, 1), :], ln2b_ref[pl.ds(l, 1), :])
        m = jnp.dot(h2, w1_ref[l], preferred_element_type=jnp.float32) \
            + b1_ref[pl.ds(l, 1), :]
        # TODO(synk): PyTorch nn.GELU default is the exact erf form; tanh
        # approximation is used here (erf has no Pallas/Mosaic lowering).
        m = jax.nn.gelu(m, approximate=True)
        m = jnp.dot(m, w2_ref[l], preferred_element_type=jnp.float32) \
            + b2_ref[pl.ds(l, 1), :]
        z = z + m

    # Final norm -> encoder output.
    z = layer_norm(z, ng_ref[...], nb_ref[...])
    z_ref[0] = z.astype(z_ref.dtype)

    # Decoder head + pairwise prediction (tanh * img_size), cls row dropped.
    pred = jnp.dot(z, dec_ref[...], preferred_element_type=jnp.float32)  # (S, T)
    p_vis = pred[1:, :]                                                  # (N, T)
    d = p_vis[:, None, :] - p_vis[None, :, :]                            # (N, N, T)
    pred_T = jnp.tanh(d) * float(img_size)
    predT_ref[0] = pred_T.astype(predT_ref.dtype)

    # Ground-truth pairwise differences from the sampled patch positions.
    pos = posf_ref[0]                                                    # (N, 2)
    gt = pos[:, None, :] - pos[None, :, :]
    gtT_ref[0] = gt.astype(gtT_ref.dtype)

    # Per-batch partial sum of the normalized squared error (MSE numerator).
    diff = (pred_T - gt) * inv_img
    sq = diff * diff
    s0 = jnp.sum(sq, axis=-1, keepdims=True)
    s1 = jnp.sum(s0, axis=-2, keepdims=True)
    loss_ref[...] = jnp.sum(s1, axis=0, keepdims=True)


def fused_forward(x_aug, pos_f, params, cfg, img_size):
    """One pallas_call for the whole post-gather forward. grid=(B,)."""
    B, S, Kp1 = x_aug.shape
    Np = pos_f.shape[1]
    D = cfg.embed_dim
    T = cfg.num_targets
    L = cfg.depth
    Hm = params['w1'].shape[2]

    # cls token fused into the patch-embed matmul (extra one-hot column).
    w_aug = jnp.concatenate(
        [params['patch_w'],
         params['cls_token'].reshape(1, D) - params['patch_b'].reshape(1, D)],
        axis=0)                                                   # (Kp1, D)

    c2 = lambda b: (0, 0)
    c3 = lambda b: (0, 0, 0)
    in_specs = [
        pl.BlockSpec((1, S, Kp1), lambda b: (b, 0, 0)),
        pl.BlockSpec((1, Np, 2), lambda b: (b, 0, 0)),
        pl.BlockSpec((Kp1, D), c2),
        pl.BlockSpec((1, D), c2),
        pl.BlockSpec((L, D), c2), pl.BlockSpec((L, D), c2),
        pl.BlockSpec((L, D, 3 * D), c3), pl.BlockSpec((L, 3 * D), c2),
        pl.BlockSpec((L, D, D), c3), pl.BlockSpec((L, D), c2),
        pl.BlockSpec((L, D), c2), pl.BlockSpec((L, D), c2),
        pl.BlockSpec((L, D, Hm), c3), pl.BlockSpec((L, Hm), c2),
        pl.BlockSpec((L, Hm, D), c3), pl.BlockSpec((L, D), c2),
        pl.BlockSpec((1, D), c2), pl.BlockSpec((1, D), c2),
        pl.BlockSpec((D, T), c2),
    ]
    out_shape = (
        jax.ShapeDtypeStruct((B, S, D), jnp.float32),
        jax.ShapeDtypeStruct((B, Np, Np, T), jnp.float32),
        jax.ShapeDtypeStruct((B, Np, Np, T), jnp.float32),
        jax.ShapeDtypeStruct((B, 1, 1), jnp.float32),
    )
    out_specs = (
        pl.BlockSpec((1, S, D), lambda b: (b, 0, 0)),
        pl.BlockSpec((1, Np, Np, T), lambda b: (b, 0, 0, 0)),
        pl.BlockSpec((1, Np, Np, T), lambda b: (b, 0, 0, 0)),
        pl.BlockSpec((1, 1, 1), lambda b: (b, 0, 0)),
    )
    kernel = functools.partial(
        _part_forward_kernel, depth=L, num_heads=cfg.num_heads,
        eps=1e-5, img_size=float(img_size))
    return pl.pallas_call(
        kernel, out_shape=out_shape, grid=(B,),
        in_specs=in_specs, out_specs=out_specs,
        compiler_params=pltpu.CompilerParams(
            dimension_semantics=("parallel",)),   # v7x: 2 TCs split the batch
    )(x_aug, pos_f, w_aug,
      params['patch_b'].reshape(1, D),
      params['ln1_g'], params['ln1_b'],
      params['w_qkv'], params['b_qkv'],
      params['w_proj'], params['b_proj'],
      params['ln2_g'], params['ln2_b'],
      params['w1'], params['b1'], params['w2'], params['b2'],
      params['norm_g'].reshape(1, D), params['norm_b'].reshape(1, D),
      params['dec_w'])


# --------------------------- model (glue + params) --------------------------

class Config:
    img_size = 16
    patch_size = 4
    in_chans = 3
    embed_dim = 32
    depth = 2
    num_heads = 4
    mlp_ratio = 4.0
    num_targets = 2


def init_params(key, cfg):
    D = cfg.embed_dim
    Hm = int(cfg.mlp_ratio * D)
    L = cfg.depth
    Kp = cfg.in_chans * cfg.patch_size ** 2
    k = jax.random.split(key, 6)

    def nrm(kk, shape):
        return 0.02 * jax.random.normal(kk, shape, jnp.float32)

    return {
        'patch_w': nrm(k[0], (Kp, D)),
        'patch_b': jnp.zeros((D,), jnp.float32),
        'cls_token': jnp.zeros((1, 1, D), jnp.float32),          # nn.Parameter(zeros)
        'mask_pos_token': jnp.zeros((1, 1, D), jnp.float32),     # unused in forward
        'norm_g': jnp.ones((D,), jnp.float32),
        'norm_b': jnp.zeros((D,), jnp.float32),
        'dec_w': nrm(k[1], (D, cfg.num_targets)),                # decoder_pred, no bias
        'ln1_g': jnp.ones((L, D), jnp.float32), 'ln1_b': jnp.zeros((L, D), jnp.float32),
        'w_qkv': nrm(k[2], (L, D, 3 * D)), 'b_qkv': jnp.zeros((L, 3 * D), jnp.float32),
        'w_proj': nrm(k[3], (L, D, D)), 'b_proj': jnp.zeros((L, D), jnp.float32),
        'ln2_g': jnp.ones((L, D), jnp.float32), 'ln2_b': jnp.zeros((L, D), jnp.float32),
        'w1': nrm(k[4], (L, D, Hm)), 'b1': jnp.zeros((L, Hm), jnp.float32),
        'w2': nrm(k[5], (L, Hm, D)), 'b2': jnp.zeros((L, D), jnp.float32),
    }


def part_vit_forward(x, params, cfg, sample_key):
    img_size = x.shape[-2]
    assert img_size == x.shape[-1], 'Input image must be square'
    B, C, Himg, Wimg = x.shape
    P = cfg.patch_size
    Np = (cfg.img_size // P) ** 2
    Kp = C * P * P

    # ---- off-grid patch sampling ('random' sampler, mask_ratio=0) ----
    # TODO(synk): OffGridPatchEmbed's positional-embedding / mask_pos_token
    # handling is not reproducible from the given source; only the random
    # patch sampling + patch->token projection is implemented.
    pos = jax.random.randint(sample_key, (B, Np, 2), 0, Himg - P + 1)

    def one_patch(img, yx):
        return lax.dynamic_slice(img, (jnp.int32(0), yx[0], yx[1]), (C, P, P))

    patches = jax.vmap(lambda img, pb: jax.vmap(lambda yx: one_patch(img, yx))(pb))(x, pos)
    patches = patches.reshape(B, Np, Kp).astype(jnp.float32)

    # Augment so the fused kernel produces the cls row from the same matmul:
    # row 0 is a one-hot selecting the (cls - patch_bias) row of w_aug.
    zero_col = jnp.zeros((B, Np, 1), jnp.float32)
    patch_rows = jnp.concatenate([patches, zero_col], axis=-1)        # (B, Np, Kp+1)
    cls_row = jnp.zeros((B, 1, Kp + 1), jnp.float32).at[:, :, Kp].set(1.0)
    x_aug = jnp.concatenate([cls_row, patch_rows], axis=1)            # (B, S, Kp+1)

    z, predT4, gtT4, loss_part = fused_forward(
        x_aug, pos.astype(jnp.float32), params, cfg, img_size)

    T = cfg.num_targets
    pred_T = predT4.reshape(B, Np * Np, T)
    gt_T = gtT4.reshape(B, Np * Np, T)
    # mse((pred/s), (gt/s)) == sum(((pred-gt)/s)^2) / count
    loss = jnp.sum(loss_part) / float(B * Np * Np * T)

    ii, jj = jnp.meshgrid(jnp.arange(Np), jnp.arange(Np), indexing='ij')
    pairs = jnp.stack([ii.reshape(-1), jj.reshape(-1)], axis=-1)
    pairs = jnp.broadcast_to(pairs[None], (B, Np * Np, 2))

    return {'z': z, 'patch_positions_vis': pos, 'pred_T': pred_T,
            'loss': loss, 'patch_pair_indices': pairs, 'gt_T': gt_T}


# --------------------------------- main --------------------------------------

if __name__ == "__main__":
    cfg = Config()
    key = jax.random.PRNGKey(0)
    k_param, k_data, k_sample = jax.random.split(key, 3)

    x = jax.random.normal(k_data, (2, cfg.in_chans, cfg.img_size, cfg.img_size),
                          jnp.float32)
    params = init_params(k_param, cfg)

    out = part_vit_forward(x, params, cfg, k_sample)
    jax.block_until_ready(out['loss'])
    jax.block_until_ready(out['pred_T'])
    jax.block_until_ready(out['z'])
    print("KERNEL_OK")
</pallas_src>

<mosaic_0001>
module attributes {stable_mosaic.version = 11 : i64} {
  func.func @_part_forward_kernel(%arg0: i32, %arg1: memref<1x17x49xf32, #tpu.memory_space<vmem>>, %arg2: memref<1x16x2xf32, #tpu.memory_space<vmem>>, %arg3: memref<49x32xf32, #tpu.memory_space<vmem>>, %arg4: memref<1x32xf32, #tpu.memory_space<vmem>>, %arg5: memref<2x32xf32, #tpu.memory_space<vmem>>, %arg6: memref<2x32xf32, #tpu.memory_space<vmem>>, %arg7: memref<2x32x96xf32, #tpu.memory_space<vmem>>, %arg8: memref<2x96xf32, #tpu.memory_space<vmem>>, %arg9: memref<2x32x32xf32, #tpu.memory_space<vmem>>, %arg10: memref<2x32xf32, #tpu.memory_space<vmem>>, %arg11: memref<2x32xf32, #tpu.memory_space<vmem>>, %arg12: memref<2x32xf32, #tpu.memory_space<vmem>>, %arg13: memref<2x32x128xf32, #tpu.memory_space<vmem>>, %arg14: memref<2x128xf32, #tpu.memory_space<vmem>>, %arg15: memref<2x128x32xf32, #tpu.memory_space<vmem>>, %arg16: memref<2x32xf32, #tpu.memory_space<vmem>>, %arg17: memref<1x32xf32, #tpu.memory_space<vmem>>, %arg18: memref<1x32xf32, #tpu.memory_space<vmem>>, %arg19: memref<32x2xf32, #tpu.memory_space<vmem>>, %arg20: memref<1x17x32xf32, #tpu.memory_space<vmem>>, %arg21: memref<1x16x16x2xf32, #tpu.memory_space<vmem>>, %arg22: memref<1x16x16x2xf32, #tpu.memory_space<vmem>>, %arg23: memref<1x1x1xf32, #tpu.memory_space<vmem>>) attributes {dimension_semantics = [#tpu.dimension_semantics<parallel>], iteration_bounds = array<i64: 2>, scalar_prefetch = 0 : i64, scratch_operands = 0 : i64, tpu.core_type = #tpu.core_type<tc>, window_params = [{transform_indices = @transform_0, window_bounds = array<i64: 1, 17, 49>}, {transform_indices = @transform_1, window_bounds = array<i64: 1, 16, 2>}, {pipeline_mode = #tpu.pipeline_mode<synchronous>, transform_indices = @transform_2, window_bounds = array<i64: 49, 32>}, {pipeline_mode = #tpu.pipeline_mode<synchronous>, transform_indices = @transform_3, window_bounds = array<i64: 1, 32>}, {pipeline_mode = #tpu.pipeline_mode<synchronous>, transform_indices = @transform_4, window_bounds = array<i64: 2, 32>}, {pipeline_mode = #tpu.pipeline_mode<synchronous>, transform_indices = @transform_5, window_bounds = array<i64: 2, 32>}, {pipeline_mode = #tpu.pipeline_mode<synchronous>, transform_indices = @transform_6, window_bounds = array<i64: 2, 32, 96>}, {pipeline_mode = #tpu.pipeline_mode<synchronous>, transform_indices = @transform_7, window_bounds = array<i64: 2, 96>}, {pipeline_mode = #tpu.pipeline_mode<synchronous>, transform_indices = @transform_8, window_bounds = array<i64: 2, 32, 32>}, {pipeline_mode = #tpu.pipeline_mode<synchronous>, transform_indices = @transform_9, window_bounds = array<i64: 2, 32>}, {pipeline_mode = #tpu.pipeline_mode<synchronous>, transform_indices = @transform_10, window_bounds = array<i64: 2, 32>}, {pipeline_mode = #tpu.pipeline_mode<synchronous>, transform_indices = @transform_11, window_bounds = array<i64: 2, 32>}, {pipeline_mode = #tpu.pipeline_mode<synchronous>, transform_indices = @transform_12, window_bounds = array<i64: 2, 32, 128>}, {pipeline_mode = #tpu.pipeline_mode<synchronous>, transform_indices = @transform_13, window_bounds = array<i64: 2, 128>}, {pipeline_mode = #tpu.pipeline_mode<synchronous>, transform_indices = @transform_14, window_bounds = array<i64: 2, 128, 32>}, {pipeline_mode = #tpu.pipeline_mode<synchronous>, transform_indices = @transform_15, window_bounds = array<i64: 2, 32>}, {pipeline_mode = #tpu.pipeline_mode<synchronous>, transform_indices = @transform_16, window_bounds = array<i64: 1, 32>}, {pipeline_mode = #tpu.pipeline_mode<synchronous>, transform_indices = @transform_17, window_bounds = array<i64: 1, 32>}, {pipeline_mode = #tpu.pipeline_mode<synchronous>, transform_indices = @transform_18, window_bounds = array<i64: 32, 2>}, {transform_indices = @transform_19, window_bounds = array<i64: 1, 17, 32>}, {transform_indices = @transform_20, window_bounds = array<i64: 1, 16, 16, 2>}, {transform_indices = @transform_21, window_bounds = array<i64: 1, 16, 16, 2>}, {transform_indices = @transform_22, window_bounds = array<i64: 1, 1, 1>}]} {
    %c0 = arith.constant 0 : index
    %c0_0 = arith.constant 0 : index
    %c0_1 = arith.constant 0 : index
    %0 = vector.load %arg1[%c0, %c0_0, %c0_1] : memref<1x17x49xf32, #tpu.memory_space<vmem>>, vector<1x17x49xf32>
    %1 = vector.shape_cast %0 : vector<1x17x49xf32> to vector<17x49xf32>
    %c0_2 = arith.constant 0 : index
    %c0_3 = arith.constant 0 : index
    %2 = vector.load %arg3[%c0_2, %c0_3] : memref<49x32xf32, #tpu.memory_space<vmem>>, vector<49x32xf32>
    %cst = arith.constant dense<0.000000e+00> : vector<17x32xf32>
    %3 = tpu.matmul %1, %2, %cst {dimension_numbers = #tpu.dot_dimension_numbers<[1], [0], [0], [1], [0, 0, 1, 1], [], []>} : vector<17x49xf32>, vector<49x32xf32>, vector<17x32xf32> -> vector<17x32xf32>
    %c0_4 = arith.constant 0 : index
    %c0_5 = arith.constant 0 : index
    %4 = vector.load %arg4[%c0_4, %c0_5] : memref<1x32xf32, #tpu.memory_space<vmem>>, vector<1x32xf32>
    %5 = vector.broadcast %4 : vector<1x32xf32> to vector<17x32xf32>
    %6 = arith.addf %3, %5 : vector<17x32xf32>
    %c0_6 = arith.constant 0 : index
    %c0_7 = arith.constant 0 : index
    %7 = vector.load %arg5[%c0_6, %c0_7] : memref<2x32xf32, #tpu.memory_space<vmem>>, vector<1x32xf32>
    %c0_8 = arith.constant 0 : index
    %c0_9 = arith.constant 0 : index
    %8 = vector.load %arg6[%c0_8, %c0_9] : memref<2x32xf32, #tpu.memory_space<vmem>>, vector<1x32xf32>
    %cst_10 = arith.constant dense<0.000000e+00> : vector<17xf32>
    %9 = vector.multi_reduction <add>, %6, %cst_10 [1] : vector<17x32xf32> to vector<17xf32>
    %10 = vector.shape_cast %9 : vector<17xf32> to vector<17x1xf32>
    %cst_11 = arith.constant 3.200000e+01 : f32
    %11 = vector.broadcast %cst_11 : f32 to vector<17x1xf32>
    %12 = arith.divf %10, %11 : vector<17x1xf32>
    %13 = vector.broadcast %12 : vector<17x1xf32> to vector<17x32xf32>
    %14 = arith.subf %6, %13 : vector<17x32xf32>
    %15 = arith.mulf %14, %14 : vector<17x32xf32>
    %cst_12 = arith.constant dense<0.000000e+00> : vector<17xf32>
    %16 = vector.multi_reduction <add>, %15, %cst_12 [1] : vector<17x32xf32> to vector<17xf32>
    %17 = vector.shape_cast %16 : vector<17xf32> to vector<17x1xf32>
    %cst_13 = arith.constant 3.200000e+01 : f32
    %18 = vector.broadcast %cst_13 : f32 to vector<17x1xf32>
    %19 = arith.divf %17, %18 : vector<17x1xf32>
    %cst_14 = arith.constant 9.99999974E-6 : f32
    %20 = vector.broadcast %cst_14 : f32 to vector<17x1xf32>
    %21 = arith.addf %19, %20 : vector<17x1xf32>
    %22 = math.rsqrt %21 : vector<17x1xf32>
    %23 = vector.broadcast %22 : vector<17x1xf32> to vector<17x32xf32>
    %24 = arith.mulf %14, %23 : vector<17x32xf32>
    %25 = vector.broadcast %7 : vector<1x32xf32> to vector<17x32xf32>
    %26 = arith.mulf %24, %25 : vector<17x32xf32>
    %27 = vector.broadcast %8 : vector<1x32xf32> to vector<17x32xf32>
    %28 = arith.addf %26, %27 : vector<17x32xf32>
    %c0_15 = arith.constant 0 : index
    %c0_16 = arith.constant 0 : index
    %c0_17 = arith.constant 0 : index
    %29 = vector.load %arg7[%c0_15, %c0_16, %c0_17] : memref<2x32x96xf32, #tpu.memory_space<vmem>>, vector<1x32x96xf32>
    %30 = vector.shape_cast %29 : vector<1x32x96xf32> to vector<32x96xf32>
    %cst_18 = arith.constant dense<0.000000e+00> : vector<17x96xf32>
    %31 = tpu.matmul %28, %30, %cst_18 {dimension_numbers = #tpu.dot_dimension_numbers<[1], [0], [0], [1], [0, 0, 1, 1], [], []>} : vector<17x32xf32>, vector<32x96xf32>, vector<17x96xf32> -> vector<17x96xf32>
    %c0_19 = arith.constant 0 : index
    %c0_20 = arith.constant 0 : index
    %32 = vector.load %arg8[%c0_19, %c0_20] : memref<2x96xf32, #tpu.memory_space<vmem>>, vector<1x96xf32>
    %33 = vector.broadcast %32 : vector<1x96xf32> to vector<17x96xf32>
    %34 = arith.addf %31, %33 : vector<17x96xf32>
    %35 = vector.extract_strided_slice %34 {offsets = [0, 0], sizes = [17, 8], strides = [1, 1]} : vector<17x96xf32> to vector<17x8xf32>
    %36 = vector.extract_strided_slice %34 {offsets = [0, 32], sizes = [17, 8], strides = [1, 1]} : vector<17x96xf32> to vector<17x8xf32>
    %37 = vector.extract_strided_slice %34 {offsets = [0, 64], sizes = [17, 8], strides = [1, 1]} : vector<17x96xf32> to vector<17x8xf32>
    %cst_21 = arith.constant dense<0.000000e+00> : vector<17x17xf32>
    %38 = tpu.matmul %35, %36, %cst_21 {dimension_numbers = #tpu.dot_dimension_numbers<[1], [1], [0], [0], [0, 0, 1, 0], [], []>} : vector<17x8xf32>, vector<17x8xf32>, vector<17x17xf32> -> vector<17x17xf32>
    %cst_22 = arith.constant 0.353553385 : f32
    %39 = vector.broadcast %cst_22 : f32 to vector<17x17xf32>
    %40 = arith.mulf %38, %39 : vector<17x17xf32>
    %cst_23 = arith.constant dense<0xFF800000> : vector<17xf32>
    %41 = vector.multi_reduction <maximumf>, %40, %cst_23 [1] : vector<17x17xf32> to vector<17xf32>
    %42 = vector.shape_cast %41 : vector<17xf32> to vector<17x1xf32>
    %43 = vector.broadcast %42 : vector<17x1xf32> to vector<17x17xf32>
    %44 = arith.subf %40, %43 : vector<17x17xf32>
    %45 = math.exp %44 : vector<17x17xf32>
    %cst_24 = arith.constant dense<0.000000e+00> : vector<17xf32>
    %46 = vector.multi_reduction <add>, %45, %cst_24 [1] : vector<17x17xf32> to vector<17xf32>
    %47 = vector.shape_cast %46 : vector<17xf32> to vector<17x1xf32>
    %48 = tpu.reciprocal %47 {approx = true} : vector<17x1xf32> -> vector<17x1xf32>
    %49 = vector.broadcast %48 : vector<17x1xf32> to vector<17x17xf32>
    %50 = arith.mulf %45, %49 : vector<17x17xf32>
    %cst_25 = arith.constant dense<0.000000e+00> : vector<17x8xf32>
    %51 = tpu.matmul %50, %37, %cst_25 {dimension_numbers = #tpu.dot_dimension_numbers<[1], [0], [0], [1], [0, 0, 1, 1], [], []>} : vector<17x17xf32>, vector<17x8xf32>, vector<17x8xf32> -> vector<17x8xf32>
    %52 = vector.extract_strided_slice %34 {offsets = [0, 8], sizes = [17, 8], strides = [1, 1]} : vector<17x96xf32> to vector<17x8xf32>
    %53 = vector.extract_strided_slice %34 {offsets = [0, 40], sizes = [17, 8], strides = [1, 1]} : vector<17x96xf32> to vector<17x8xf32>
    %54 = vector.extract_strided_slice %34 {offsets = [0, 72], sizes = [17, 8], strides = [1, 1]} : vector<17x96xf32> to vector<17x8xf32>
    %cst_26 = arith.constant dense<0.000000e+00> : vector<17x17xf32>
    %55 = tpu.matmul %52, %53, %cst_26 {dimension_numbers = #tpu.dot_dimension_numbers<[1], [1], [0], [0], [0, 0, 1, 0], [], []>} : vector<17x8xf32>, vector<17x8xf32>, vector<17x17xf32> -> vector<17x17xf32>
    %cst_27 = arith.constant 0.353553385 : f32
    %56 = vector.broadcast %cst_27 : f32 to vector<17x17xf32>
    %57 = arith.mulf %55, %56 : vector<17x17xf32>
    %cst_28 = arith.constant dense<0xFF800000> : vector<17xf32>
    %58 = vector.multi_reduction <maximumf>, %57, %cst_28 [1] : vector<17x17xf32> to vector<17xf32>
    %59 = vector.shape_cast %58 : vector<17xf32> to vector<17x1xf32>
    %60 = vector.broadcast %59 : vector<17x1xf32> to vector<17x17xf32>
    %61 = arith.subf %57, %60 : vector<17x17xf32>
    %62 = math.exp %61 : vector<17x17xf32>
    %cst_29 = arith.constant dense<0.000000e+00> : vector<17xf32>
    %63 = vector.multi_reduction <add>, %62, %cst_29 [1] : vector<17x17xf32> to vector<17xf32>
    %64 = vector.shape_cast %63 : vector<17xf32> to vector<17x1xf32>
    %65 = tpu.reciprocal %64 {approx = true} : vector<17x1xf32> -> vector<17x1xf32>
    %66 = vector.broadcast %65 : vector<17x1xf32> to vector<17x17xf32>
    %67 = arith.mulf %62, %66 : vector<17x17xf32>
    %cst_30 = arith.constant dense<0.000000e+00> : vector<17x8xf32>
    %68 = tpu.matmul %67, %54, %cst_30 {dimension_numbers = #tpu.dot_dimension_numbers<[1], [0], [0], [1], [0, 0, 1, 1], [], []>} : vector<17x17xf32>, vector<17x8xf32>, vector<17x8xf32> -> vector<17x8xf32>
    %69 = vector.extract_strided_slice %34 {offsets = [0, 16], sizes = [17, 8], strides = [1, 1]} : vector<17x96xf32> to vector<17x8xf32>
    %70 = vector.extract_strided_slice %34 {offsets = [0, 48], sizes = [17, 8], strides = [1, 1]} : vector<17x96xf32> to vector<17x8xf32>
    %71 = vector.extract_strided_slice %34 {offsets = [0, 80], sizes = [17, 8], strides = [1, 1]} : vector<17x96xf32> to vector<17x8xf32>
    %cst_31 = arith.constant dense<0.000000e+00> : vector<17x17xf32>
    %72 = tpu.matmul %69, %70, %cst_31 {dimension_numbers = #tpu.dot_dimension_numbers<[1], [1], [0], [0], [0, 0, 1, 0], [], []>} : vector<17x8xf32>, vector<17x8xf32>, vector<17x17xf32> -> vector<17x17xf32>
    %cst_32 = arith.constant 0.353553385 : f32
    %73 = vector.broadcast %cst_32 : f32 to vector<17x17xf32>
    %74 = arith.mulf %72, %73 : vector<17x17xf32>
    %cst_33 = arith.constant dense<0xFF800000> : vector<17xf32>
    %75 = vector.multi_reduction <maximumf>, %74, %cst_33 [1] : vector<17x17xf32> to vector<17xf32>
    %76 = vector.shape_cast %75 : vector<17xf32> to vector<17x1xf32>
    %77 = vector.broadcast %76 : vector<17x1xf32> to vector<17x17xf32>
    %78 = arith.subf %74, %77 : vector<17x17xf32>
    %79 = math.exp %78 : vector<17x17xf32>
    %cst_34 = arith.constant dense<0.000000e+00> : vector<17xf32>
    %80 = vector.multi_reduction <add>, %79, %cst_34 [1] : vector<17x17xf32> to vector<17xf32>
    %81 = vector.shape_cast %80 : vector<17xf32> to vector<17x1xf32>
    %82 = tpu.reciprocal %81 {approx = true} : vector<17x1xf32> -> vector<17x1xf32>
    %83 = vector.broadcast %82 : vector<17x1xf32> to vector<17x17xf32>
    %84 = arith.mulf %79, %83 : vector<17x17xf32>
    %cst_35 = arith.constant dense<0.000000e+00> : vector<17x8xf32>
    %85 = tpu.matmul %84, %71, %cst_35 {dimension_numbers = #tpu.dot_dimension_numbers<[1], [0], [0], [1], [0, 0, 1, 1], [], []>} : vector<17x17xf32>, vector<17x8xf32>, vector<17x8xf32> -> vector<17x8xf32>
    %86 = vector.extract_strided_slice %34 {offsets = [0, 24], sizes = [17, 8], strides = [1, 1]} : vector<17x96xf32> to vector<17x8xf32>
    %87 = vector.extract_strided_slice %34 {offsets = [0, 56], sizes = [17, 8], strides = [1, 1]} : vector<17x96xf32> to vector<17x8xf32>
    %88 = vector.extract_strided_slice %34 {offsets = [0, 88], sizes = [17, 8], strides = [1, 1]} : vector<17x96xf32> to vector<17x8xf32>
    %cst_36 = arith.constant dense<0.000000e+00> : vector<17x17xf32>
    %89 = tpu.matmul %86, %87, %cst_36 {dimension_numbers = #tpu.dot_dimension_numbers<[1], [1], [0], [0], [0, 0, 1, 0], [], []>} : vector<17x8xf32>, vector<17x8xf32>, vector<17x17xf32> -> vector<17x17xf32>
    %cst_37 = arith.constant 0.353553385 : f32
    %90 = vector.broadcast %cst_37 : f32 to vector<17x17xf32>
    %91 = arith.mulf %89, %90 : vector<17x17xf32>
    %cst_38 = arith.constant dense<0xFF800000> : vector<17xf32>
    %92 = vector.multi_reduction <maximumf>, %91, %cst_38 [1] : vector<17x17xf32> to vector<17xf32>
    %93 = vector.shape_cast %92 : vector<17xf32> to vector<17x1xf32>
    %94 = vector.broadcast %93 : vector<17x1xf32> to vector<17x17xf32>
    %95 = arith.subf %91, %94 : vector<17x17xf32>
    %96 = math.exp %95 : vector<17x17xf32>
    %cst_39 = arith.constant dense<0.000000e+00> : vector<17xf32>
    %97 = vector.multi_reduction <add>, %96, %cst_39 [1] : vector<17x17xf32> to vector<17xf32>
    %98 = vector.shape_cast %97 : vector<17xf32> to vector<17x1xf32>
    %99 = tpu.reciprocal %98 {approx = true} : vector<17x1xf32> -> vector<17x1xf32>
    %100 = vector.broadcast %99 : vector<17x1xf32> to vector<17x17xf32>
    %101 = arith.mulf %96, %100 : vector<17x17xf32>
    %cst_40 = arith.constant dense<0.000000e+00> : vector<17x8xf32>
    %102 = tpu.matmul %101, %88, %cst_40 {dimension_numbers = #tpu.dot_dimension_numbers<[1], [0], [0], [1], [0, 0, 1, 1], [], []>} : vector<17x17xf32>, vector<17x8xf32>, vector<17x8xf32> -> vector<17x8xf32>
    %103 = tpu.concatenate %51, %68, %85, %102 in 1 : vector<17x8xf32>, vector<17x8xf32>, vector<17x8xf32>, vector<17x8xf32> -> vector<17x32xf32>
    %c0_41 = arith.constant 0 : index
    %c0_42 = arith.constant 0 : index
    %c0_43 = arith.constant 0 : index
    %104 = vector.load %arg9[%c0_41, %c0_42, %c0_43] : memref<2x32x32xf32, #tpu.memory_space<vmem>>, vector<1x32x32xf32>
    %105 = vector.shape_cast %104 : vector<1x32x32xf32> to vector<32x32xf32>
    %cst_44 = arith.constant dense<0.000000e+00> : vector<17x32xf32>
    %106 = tpu.matmul %103, %105, %cst_44 {dimension_numbers = #tpu.dot_dimension_numbers<[1], [0], [0], [1], [0, 0, 1, 1], [], []>} : vector<17x32xf32>, vector<32x32xf32>, vector<17x32xf32> -> vector<17x32xf32>
    %c0_45 = arith.constant 0 : index
    %c0_46 = arith.constant 0 : index
    %107 = vector.load %arg10[%c0_45, %c0_46] : memref<2x32xf32, #tpu.memory_space<vmem>>, vector<1x32xf32>
    %108 = vector.broadcast %107 : vector<1x32xf32> to vector<17x32xf32>
    %109 = arith.addf %106, %108 : vector<17x32xf32>
    %110 = arith.addf %6, %109 : vector<17x32xf32>
    %c0_47 = arith.constant 0 : index
    %c0_48 = arith.constant 0 : index
    %111 = vector.load %arg11[%c0_47, %c0_48] : memref<2x32xf32, #tpu.memory_space<vmem>>, vector<1x32xf32>
    %c0_49 = arith.constant 0 : index
    %c0_50 = arith.constant 0 : index
    %112 = vector.load %arg12[%c0_49, %c0_50] : memref<2x32xf32, #tpu.memory_space<vmem>>, vector<1x32xf32>
    %cst_51 = arith.constant dense<0.000000e+00> : vector<17xf32>
    %113 = vector.multi_reduction <add>, %110, %cst_51 [1] : vector<17x32xf32> to vector<17xf32>
    %114 = vector.shape_cast %113 : vector<17xf32> to vector<17x1xf32>
    %cst_52 = arith.constant 3.200000e+01 : f32
    %115 = vector.broadcast %cst_52 : f32 to vector<17x1xf32>
    %116 = arith.divf %114, %115 : vector<17x1xf32>
    %117 = vector.broadcast %116 : vector<17x1xf32> to vector<17x32xf32>
    %118 = arith.subf %110, %117 : vector<17x32xf32>
    %119 = arith.mulf %118, %118 : vector<17x32xf32>
    %cst_53 = arith.constant dense<0.000000e+00> : vector<17xf32>
    %120 = vector.multi_reduction <add>, %119, %cst_53 [1] : vector<17x32xf32> to vector<17xf32>
    %121 = vector.shape_cast %120 : vector<17xf32> to vector<17x1xf32>
    %cst_54 = arith.constant 3.200000e+01 : f32
    %122 = vector.broadcast %cst_54 : f32 to vector<17x1xf32>
    %123 = arith.divf %121, %122 : vector<17x1xf32>
    %cst_55 = arith.constant 9.99999974E-6 : f32
    %124 = vector.broadcast %cst_55 : f32 to vector<17x1xf32>
    %125 = arith.addf %123, %124 : vector<17x1xf32>
    %126 = math.rsqrt %125 : vector<17x1xf32>
    %127 = vector.broadcast %126 : vector<17x1xf32> to vector<17x32xf32>
    %128 = arith.mulf %118, %127 : vector<17x32xf32>
    %129 = vector.broadcast %111 : vector<1x32xf32> to vector<17x32xf32>
    %130 = arith.mulf %128, %129 : vector<17x32xf32>
    %131 = vector.broadcast %112 : vector<1x32xf32> to vector<17x32xf32>
    %132 = arith.addf %130, %131 : vector<17x32xf32>
    %c0_56 = arith.constant 0 : index
    %c0_57 = arith.constant 0 : index
    %c0_58 = arith.constant 0 : index
    %133 = vector.load %arg13[%c0_56, %c0_57, %c0_58] : memref<2x32x128xf32, #tpu.memory_space<vmem>>, vector<1x32x128xf32>
    %134 = vector.shape_cast %133 : vector<1x32x128xf32> to vector<32x128xf32>
    %cst_59 = arith.constant dense<0.000000e+00> : vector<17x128xf32>
    %135 = tpu.matmul %132, %134, %cst_59 {dimension_numbers = #tpu.dot_dimension_numbers<[1], [0], [0], [1], [0, 0, 1, 1], [], []>} : vector<17x32xf32>, vector<32x128xf32>, vector<17x128xf32> -> vector<17x128xf32>
    %c0_60 = arith.constant 0 : index
    %c0_61 = arith.constant 0 : index
    %136 = vector.load %arg14[%c0_60, %c0_61] : memref<2x128xf32, #tpu.memory_space<vmem>>, vector<1x128xf32>
    %137 = vector.broadcast %136 : vector<1x128xf32> to vector<17x128xf32>
    %138 = arith.addf %135, %137 : vector<17x128xf32>
    %139 = arith.mulf %138, %138 : vector<17x128xf32>
    %140 = arith.mulf %138, %139 : vector<17x128xf32>
    %cst_62 = arith.constant 4.471500e-02 : f32
    %141 = vector.broadcast %cst_62 : f32 to vector<17x128xf32>
    %142 = arith.mulf %141, %140 : vector<17x128xf32>
    %143 = arith.addf %138, %142 : vector<17x128xf32>
    %cst_63 = arith.constant 0.797884583 : f32
    %144 = vector.broadcast %cst_63 : f32 to vector<17x128xf32>
    %145 = arith.mulf %144, %143 : vector<17x128xf32>
    %146 = math.tanh %145 : vector<17x128xf32>
    %cst_64 = arith.constant 1.000000e+00 : f32
    %147 = vector.broadcast %cst_64 : f32 to vector<17x128xf32>
    %148 = arith.addf %147, %146 : vector<17x128xf32>
    %cst_65 = arith.constant 5.000000e-01 : f32
    %149 = vector.broadcast %cst_65 : f32 to vector<17x128xf32>
    %150 = arith.mulf %149, %148 : vector<17x128xf32>
    %151 = arith.mulf %138, %150 : vector<17x128xf32>
    %c0_66 = arith.constant 0 : index
    %c0_67 = arith.constant 0 : index
    %c0_68 = arith.constant 0 : index
    %152 = vector.load %arg15[%c0_66, %c0_67, %c0_68] : memref<2x128x32xf32, #tpu.memory_space<vmem>>, vector<1x128x32xf32>
    %153 = vector.shape_cast %152 : vector<1x128x32xf32> to vector<128x32xf32>
    %cst_69 = arith.constant dense<0.000000e+00> : vector<17x32xf32>
    %154 = tpu.matmul %151, %153, %cst_69 {dimension_numbers = #tpu.dot_dimension_numbers<[1], [0], [0], [1], [0, 0, 1, 1], [], []>} : vector<17x128xf32>, vector<128x32xf32>, vector<17x32xf32> -> vector<17x32xf32>
    %c0_70 = arith.constant 0 : index
    %c0_71 = arith.constant 0 : index
    %155 = vector.load %arg16[%c0_70, %c0_71] : memref<2x32xf32, #tpu.memory_space<vmem>>, vector<1x32xf32>
    %156 = vector.broadcast %155 : vector<1x32xf32> to vector<17x32xf32>
    %157 = arith.addf %154, %156 : vector<17x32xf32>
    %158 = arith.addf %110, %157 : vector<17x32xf32>
    %c1 = arith.constant 1 : index
    %c0_72 = arith.constant 0 : index
    %159 = vector.load %arg5[%c1, %c0_72] : memref<2x32xf32, #tpu.memory_space<vmem>>, vector<1x32xf32>
    %c1_73 = arith.constant 1 : index
    %c0_74 = arith.constant 0 : index
    %160 = vector.load %arg6[%c1_73, %c0_74] : memref<2x32xf32, #tpu.memory_space<vmem>>, vector<1x32xf32>
    %cst_75 = arith.constant dense<0.000000e+00> : vector<17xf32>
    %161 = vector.multi_reduction <add>, %158, %cst_75 [1] : vector<17x32xf32> to vector<17xf32>
    %162 = vector.shape_cast %161 : vector<17xf32> to vector<17x1xf32>
    %cst_76 = arith.constant 3.200000e+01 : f32
    %163 = vector.broadcast %cst_76 : f32 to vector<17x1xf32>
    %164 = arith.divf %162, %163 : vector<17x1xf32>
    %165 = vector.broadcast %164 : vector<17x1xf32> to vector<17x32xf32>
    %166 = arith.subf %158, %165 : vector<17x32xf32>
    %167 = arith.mulf %166, %166 : vector<17x32xf32>
    %cst_77 = arith.constant dense<0.000000e+00> : vector<17xf32>
    %168 = vector.multi_reduction <add>, %167, %cst_77 [1] : vector<17x32xf32> to vector<17xf32>
    %169 = vector.shape_cast %168 : vector<17xf32> to vector<17x1xf32>
    %cst_78 = arith.constant 3.200000e+01 : f32
    %170 = vector.broadcast %cst_78 : f32 to vector<17x1xf32>
    %171 = arith.divf %169, %170 : vector<17x1xf32>
    %cst_79 = arith.constant 9.99999974E-6 : f32
    %172 = vector.broadcast %cst_79 : f32 to vector<17x1xf32>
    %173 = arith.addf %171, %172 : vector<17x1xf32>
    %174 = math.rsqrt %173 : vector<17x1xf32>
    %175 = vector.broadcast %174 : vector<17x1xf32> to vector<17x32xf32>
    %176 = arith.mulf %166, %175 : vector<17x32xf32>
    %177 = vector.broadcast %159 : vector<1x32xf32> to vector<17x32xf32>
    %178 = arith.mulf %176, %177 : vector<17x32xf32>
    %179 = vector.broadcast %160 : vector<1x32xf32> to vector<17x32xf32>
    %180 = arith.addf %178, %179 : vector<17x32xf32>
    %c1_80 = arith.constant 1 : index
    %c0_81 = arith.constant 0 : index
    %c0_82 = arith.constant 0 : index
    %181 = vector.load %arg7[%c1_80, %c0_81, %c0_82] : memref<2x32x96xf32, #tpu.memory_space<vmem>>, vector<1x32x96xf32>
    %182 = vector.shape_cast %181 : vector<1x32x96xf32> to vector<32x96xf32>
    %cst_83 = arith.constant dense<0.000000e+00> : vector<17x96xf32>
    %183 = tpu.matmul %180, %182, %cst_83 {dimension_numbers = #tpu.dot_dimension_numbers<[1], [0], [0], [1], [0, 0, 1, 1], [], []>} : vector<17x32xf32>, vector<32x96xf32>, vector<17x96xf32> -> vector<17x96xf32>
    %c1_84 = arith.constant 1 : index
    %c0_85 = arith.constant 0 : index
    %184 = vector.load %arg8[%c1_84, %c0_85] : memref<2x96xf32, #tpu.memory_space<vmem>>, vector<1x96xf32>
    %185 = vector.broadcast %184 : vector<1x96xf32> to vector<17x96xf32>
    %186 = arith.addf %183, %185 : vector<17x96xf32>
    %187 = vector.extract_strided_slice %186 {offsets = [0, 0], sizes = [17, 8], strides = [1, 1]} : vector<17x96xf32> to vector<17x8xf32>
    %188 = vector.extract_strided_slice %186 {offsets = [0, 32], sizes = [17, 8], strides = [1, 1]} : vector<17x96xf32> to vector<17x8xf32>
    %189 = vector.extract_strided_slice %186 {offsets = [0, 64], sizes = [17, 8], strides = [1, 1]} : vector<17x96xf32> to vector<17x8xf32>
    %cst_86 = arith.constant dense<0.000000e+00> : vector<17x17xf32>
    %190 = tpu.matmul %187, %188, %cst_86 {dimension_numbers = #tpu.dot_dimension_numbers<[1], [1], [0], [0], [0, 0, 1, 0], [], []>} : vector<17x8xf32>, vector<17x8xf32>, vector<17x17xf32> -> vector<17x17xf32>
    %cst_87 = arith.constant 0.353553385 : f32
    %191 = vector.broadcast %cst_87 : f32 to vector<17x17xf32>
    %192 = arith.mulf %190, %191 : vector<17x17xf32>
    %cst_88 = arith.constant dense<0xFF800000> : vector<17xf32>
    %193 = vector.multi_reduction <maximumf>, %192, %cst_88 [1] : vector<17x17xf32> to vector<17xf32>
    %194 = vector.shape_cast %193 : vector<17xf32> to vector<17x1xf32>
    %195 = vector.broadcast %194 : vector<17x1xf32> to vector<17x17xf32>
    %196 = arith.subf %192, %195 : vector<17x17xf32>
    %197 = math.exp %196 : vector<17x17xf32>
    %cst_89 = arith.constant dense<0.000000e+00> : vector<17xf32>
    %198 = vector.multi_reduction <add>, %197, %cst_89 [1] : vector<17x17xf32> to vector<17xf32>
    %199 = vector.shape_cast %198 : vector<17xf32> to vector<17x1xf32>
    %200 = tpu.reciprocal %199 {approx = true} : vector<17x1xf32> -> vector<17x1xf32>
    %201 = vector.broadcast %200 : vector<17x1xf32> to vector<17x17xf32>
    %202 = arith.mulf %197, %201 : vector<17x17xf32>
    %cst_90 = arith.constant dense<0.000000e+00> : vector<17x8xf32>
    %203 = tpu.matmul %202, %189, %cst_90 {dimension_numbers = #tpu.dot_dimension_numbers<[1], [0], [0], [1], [0, 0, 1, 1], [], []>} : vector<17x17xf32>, vector<17x8xf32>, vector<17x8xf32> -> vector<17x8xf32>
    %204 = vector.extract_strided_slice %186 {offsets = [0, 8], sizes = [17, 8], strides = [1, 1]} : vector<17x96xf32> to vector<17x8xf32>
    %205 = vector.extract_strided_slice %186 {offsets = [0, 40], sizes = [17, 8], strides = [1, 1]} : vector<17x96xf32> to vector<17x8xf32>
    %206 = vector.extract_strided_slice %186 {offsets = [0, 72], sizes = [17, 8], strides = [1, 1]} : vector<17x96xf32> to vector<17x8xf32>
    %cst_91 = arith.constant dense<0.000000e+00> : vector<17x17xf32>
    %207 = tpu.matmul %204, %205, %cst_91 {dimension_numbers = #tpu.dot_dimension_numbers<[1], [1], [0], [0], [0, 0, 1, 0], [], []>} : vector<17x8xf32>, vector<17x8xf32>, vector<17x17xf32> -> vector<17x17xf32>
    %cst_92 = arith.constant 0.353553385 : f32
    %208 = vector.broadcast %cst_92 : f32 to vector<17x17xf32>
    %209 = arith.mulf %207, %208 : vector<17x17xf32>
    %cst_93 = arith.constant dense<0xFF800000> : vector<17xf32>
    %210 = vector.multi_reduction <maximumf>, %209, %cst_93 [1] : vector<17x17xf32> to vector<17xf32>
    %211 = vector.shape_cast %210 : vector<17xf32> to vector<17x1xf32>
    %212 = vector.broadcast %211 : vector<17x1xf32> to vector<17x17xf32>
    %213 = arith.subf %209, %212 : vector<17x17xf32>
    %214 = math.exp %213 : vector<17x17xf32>
    %cst_94 = arith.constant dense<0.000000e+00> : vector<17xf32>
    %215 = vector.multi_reduction <add>, %214, %cst_94 [1] : vector<17x17xf32> to vector<17xf32>
    %216 = vector.shape_cast %215 : vector<17xf32> to vector<17x1xf32>
    %217 = tpu.reciprocal %216 {approx = true} : vector<17x1xf32> -> vector<17x1xf32>
    %218 = vector.broadcast %217 : vector<17x1xf32> to vector<17x17xf32>
    %219 = arith.mulf %214, %218 : vector<17x17xf32>
    %cst_95 = arith.constant dense<0.000000e+00> : vector<17x8xf32>
    %220 = tpu.matmul %219, %206, %cst_95 {dimension_numbers = #tpu.dot_dimension_numbers<[1], [0], [0], [1], [0, 0, 1, 1], [], []>} : vector<17x17xf32>, vector<17x8xf32>, vector<17x8xf32> -> vector<17x8xf32>
    %221 = vector.extract_strided_slice %186 {offsets = [0, 16], sizes = [17, 8], strides = [1, 1]} : vector<17x96xf32> to vector<17x8xf32>
    %222 = vector.extract_strided_slice %186 {offsets = [0, 48], sizes = [17, 8], strides = [1, 1]} : vector<17x96xf32> to vector<17x8xf32>
    %223 = vector.extract_strided_slice %186 {offsets = [0, 80], sizes = [17, 8], strides = [1, 1]} : vector<17x96xf32> to vector<17x8xf32>
    %cst_96 = arith.constant dense<0.000000e+00> : vector<17x17xf32>
    %224 = tpu.matmul %221, %222, %cst_96 {dimension_numbers = #tpu.dot_dimension_numbers<[1], [1], [0], [0], [0, 0, 1, 0], [], []>} : vector<17x8xf32>, vector<17x8xf32>, vector<17x17xf32> -> vector<17x17xf32>
    %cst_97 = arith.constant 0.353553385 : f32
    %225 = vector.broadcast %cst_97 : f32 to vector<17x17xf32>
    %226 = arith.mulf %224, %225 : vector<17x17xf32>
    %cst_98 = arith.constant dense<0xFF800000> : vector<17xf32>
    %227 = vector.multi_reduction <maximumf>, %226, %cst_98 [1] : vector<17x17xf32> to vector<17xf32>
    %228 = vector.shape_cast %227 : vector<17xf32> to vector<17x1xf32>
    %229 = vector.broadcast %228 : vector<17x1xf32> to vector<17x17xf32>
    %230 = arith.subf %226, %229 : vector<17x17xf32>
    %231 = math.exp %230 : vector<17x17xf32>
    %cst_99 = arith.constant dense<0.000000e+00> : vector<17xf32>
    %232 = vector.multi_reduction <add>, %231, %cst_99 [1] : vector<17x17xf32> to vector<17xf32>
    %233 = vector.shape_cast %232 : vector<17xf32> to vector<17x1xf32>
    %234 = tpu.reciprocal %233 {approx = true} : vector<17x1xf32> -> vector<17x1xf32>
    %235 = vector.broadcast %234 : vector<17x1xf32> to vector<17x17xf32>
    %236 = arith.mulf %231, %235 : vector<17x17xf32>
    %cst_100 = arith.constant dense<0.000000e+00> : vector<17x8xf32>
    %237 = tpu.matmul %236, %223, %cst_100 {dimension_numbers = #tpu.dot_dimension_numbers<[1], [0], [0], [1], [0, 0, 1, 1], [], []>} : vector<17x17xf32>, vector<17x8xf32>, vector<17x8xf32> -> vector<17x8xf32>
    %238 = vector.extract_strided_slice %186 {offsets = [0, 24], sizes = [17, 8], strides = [1, 1]} : vector<17x96xf32> to vector<17x8xf32>
    %239 = vector.extract_strided_slice %186 {offsets = [0, 56], sizes = [17, 8], strides = [1, 1]} : vector<17x96xf32> to vector<17x8xf32>
    %240 = vector.extract_strided_slice %186 {offsets = [0, 88], sizes = [17, 8], strides = [1, 1]} : vector<17x96xf32> to vector<17x8xf32>
    %cst_101 = arith.constant dense<0.000000e+00> : vector<17x17xf32>
    %241 = tpu.matmul %238, %239, %cst_101 {dimension_numbers = #tpu.dot_dimension_numbers<[1], [1], [0], [0], [0, 0, 1, 0], [], []>} : vector<17x8xf32>, vector<17x8xf32>, vector<17x17xf32> -> vector<17x17xf32>
    %cst_102 = arith.constant 0.353553385 : f32
    %242 = vector.broadcast %cst_102 : f32 to vector<17x17xf32>
    %243 = arith.mulf %241, %242 : vector<17x17xf32>
    %cst_103 = arith.constant dense<0xFF800000> : vector<17xf32>
    %244 = vector.multi_reduction <maximumf>, %243, %cst_103 [1] : vector<17x17xf32> to vector<17xf32>
    %245 = vector.shape_cast %244 : vector<17xf32> to vector<17x1xf32>
    %246 = vector.broadcast %245 : vector<17x1xf32> to vector<17x17xf32>
    %247 = arith.subf %243, %246 : vector<17x17xf32>
    %248 = math.exp %247 : vector<17x17xf32>
    %cst_104 = arith.constant dense<0.000000e+00> : vector<17xf32>
    %249 = vector.multi_reduction <add>, %248, %cst_104 [1] : vector<17x17xf32> to vector<17xf32>
    %250 = vector.shape_cast %249 : vector<17xf32> to vector<17x1xf32>
    %251 = tpu.reciprocal %250 {approx = true} : vector<17x1xf32> -> vector<17x1xf32>
    %252 = vector.broadcast %251 : vector<17x1xf32> to vector<17x17xf32>
    %253 = arith.mulf %248, %252 : vector<17x17xf32>
    %cst_105 = arith.constant dense<0.000000e+00> : vector<17x8xf32>
    %254 = tpu.matmul %253, %240, %cst_105 {dimension_numbers = #tpu.dot_dimension_numbers<[1], [0], [0], [1], [0, 0, 1, 1], [], []>} : vector<17x17xf32>, vector<17x8xf32>, vector<17x8xf32> -> vector<17x8xf32>
    %255 = tpu.concatenate %203, %220, %237, %254 in 1 : vector<17x8xf32>, vector<17x8xf32>, vector<17x8xf32>, vector<17x8xf32> -> vector<17x32xf32>
    %c1_106 = arith.constant 1 : index
    %c0_107 = arith.constant 0 : index
    %c0_108 = arith.constant 0 : index
    %256 = vector.load %arg9[%c1_106, %c0_107, %c0_108] : memref<2x32x32xf32, #tpu.memory_space<vmem>>, vector<1x32x32xf32>
    %257 = vector.shape_cast %256 : vector<1x32x32xf32> to vector<32x32xf32>
    %cst_109 = arith.constant dense<0.000000e+00> : vector<17x32xf32>
    %258 = tpu.matmul %255, %257, %cst_109 {dimension_numbers = #tpu.dot_dimension_numbers<[1], [0], [0], [1], [0, 0, 1, 1], [], []>} : vector<17x32xf32>, vector<32x32xf32>, vector<17x32xf32> -> vector<17x32xf32>
    %c1_110 = arith.constant 1 : index
    %c0_111 = arith.constant 0 : index
    %259 = vector.load %arg10[%c1_110, %c0_111] : memref<2x32xf32, #tpu.memory_space<vmem>>, vector<1x32xf32>
    %260 = vector.broadcast %259 : vector<1x32xf32> to vector<17x32xf32>
    %261 = arith.addf %258, %260 : vector<17x32xf32>
    %262 = arith.addf %158, %261 : vector<17x32xf32>
    %c1_112 = arith.constant 1 : index
    %c0_113 = arith.constant 0 : index
    %263 = vector.load %arg11[%c1_112, %c0_113] : memref<2x32xf32, #tpu.memory_space<vmem>>, vector<1x32xf32>
    %c1_114 = arith.constant 1 : index
    %c0_115 = arith.constant 0 : index
    %264 = vector.load %arg12[%c1_114, %c0_115] : memref<2x32xf32, #tpu.memory_space<vmem>>, vector<1x32xf32>
    %cst_116 = arith.constant dense<0.000000e+00> : vector<17xf32>
    %265 = vector.multi_reduction <add>, %262, %cst_116 [1] : vector<17x32xf32> to vector<17xf32>
    %266 = vector.shape_cast %265 : vector<17xf32> to vector<17x1xf32>
    %cst_117 = arith.constant 3.200000e+01 : f32
    %267 = vector.broadcast %cst_117 : f32 to vector<17x1xf32>
    %268 = arith.divf %266, %267 : vector<17x1xf32>
    %269 = vector.broadcast %268 : vector<17x1xf32> to vector<17x32xf32>
    %270 = arith.subf %262, %269 : vector<17x32xf32>
    %271 = arith.mulf %270, %270 : vector<17x32xf32>
    %cst_118 = arith.constant dense<0.000000e+00> : vector<17xf32>
    %272 = vector.multi_reduction <add>, %271, %cst_118 [1] : vector<17x32xf32> to vector<17xf32>
    %273 = vector.shape_cast %272 : vector<17xf32> to vector<17x1xf32>
    %cst_119 = arith.constant 3.200000e+01 : f32
    %274 = vector.broadcast %cst_119 : f32 to vector<17x1xf32>
    %275 = arith.divf %273, %274 : vector<17x1xf32>
    %cst_120 = arith.constant 9.99999974E-6 : f32
    %276 = vector.broadcast %cst_120 : f32 to vector<17x1xf32>
    %277 = arith.addf %275, %276 : vector<17x1xf32>
    %278 = math.rsqrt %277 : vector<17x1xf32>
    %279 = vector.broadcast %278 : vector<17x1xf32> to vector<17x32xf32>
    %280 = arith.mulf %270, %279 : vector<17x32xf32>
    %281 = vector.broadcast %263 : vector<1x32xf32> to vector<17x32xf32>
    %282 = arith.mulf %280, %281 : vector<17x32xf32>
    %283 = vector.broadcast %264 : vector<1x32xf32> to vector<17x32xf32>
    %284 = arith.addf %282, %283 : vector<17x32xf32>
    %c1_121 = arith.constant 1 : index
    %c0_122 = arith.constant 0 : index
    %c0_123 = arith.constant 0 : index
    %285 = vector.load %arg13[%c1_121, %c0_122, %c0_123] : memref<2x32x128xf32, #tpu.memory_space<vmem>>, vector<1x32x128xf32>
    %286 = vector.shape_cast %285 : vector<1x32x128xf32> to vector<32x128xf32>
    %cst_124 = arith.constant dense<0.000000e+00> : vector<17x128xf32>
    %287 = tpu.matmul %284, %286, %cst_124 {dimension_numbers = #tpu.dot_dimension_numbers<[1], [0], [0], [1], [0, 0, 1, 1], [], []>} : vector<17x32xf32>, vector<32x128xf32>, vector<17x128xf32> -> vector<17x128xf32>
    %c1_125 = arith.constant 1 : index
    %c0_126 = arith.constant 0 : index
    %288 = vector.load %arg14[%c1_125, %c0_126] : memref<2x128xf32, #tpu.memory_space<vmem>>, vector<1x128xf32>
    %289 = vector.broadcast %288 : vector<1x128xf32> to vector<17x128xf32>
    %290 = arith.addf %287, %289 : vector<17x128xf32>
    %291 = arith.mulf %290, %290 : vector<17x128xf32>
    %292 = arith.mulf %290, %291 : vector<17x128xf32>
    %cst_127 = arith.constant 4.471500e-02 : f32
    %293 = vector.broadcast %cst_127 : f32 to vector<17x128xf32>
    %294 = arith.mulf %293, %292 : vector<17x128xf32>
    %295 = arith.addf %290, %294 : vector<17x128xf32>
    %cst_128 = arith.constant 0.797884583 : f32
    %296 = vector.broadcast %cst_128 : f32 to vector<17x128xf32>
    %297 = arith.mulf %296, %295 : vector<17x128xf32>
    %298 = math.tanh %297 : vector<17x128xf32>
    %cst_129 = arith.constant 1.000000e+00 : f32
    %299 = vector.broadcast %cst_129 : f32 to vector<17x128xf32>
    %300 = arith.addf %299, %298 : vector<17x128xf32>
    %cst_130 = arith.constant 5.000000e-01 : f32
    %301 = vector.broadcast %cst_130 : f32 to vector<17x128xf32>
    %302 = arith.mulf %301, %300 : vector<17x128xf32>
    %303 = arith.mulf %290, %302 : vector<17x128xf32>
    %c1_131 = arith.constant 1 : index
    %c0_132 = arith.constant 0 : index
    %c0_133 = arith.constant 0 : index
    %304 = vector.load %arg15[%c1_131, %c0_132, %c0_133] : memref<2x128x32xf32, #tpu.memory_space<vmem>>, vector<1x128x32xf32>
    %305 = vector.shape_cast %304 : vector<1x128x32xf32> to vector<128x32xf32>
    %cst_134 = arith.constant dense<0.000000e+00> : vector<17x32xf32>
    %306 = tpu.matmul %303, %305, %cst_134 {dimension_numbers = #tpu.dot_dimension_numbers<[1], [0], [0], [1], [0, 0, 1, 1], [], []>} : vector<17x128xf32>, vector<128x32xf32>, vector<17x32xf32> -> vector<17x32xf32>
    %c1_135 = arith.constant 1 : index
    %c0_136 = arith.constant 0 : index
    %307 = vector.load %arg16[%c1_135, %c0_136] : memref<2x32xf32, #tpu.memory_space<vmem>>, vector<1x32xf32>
    %308 = vector.broadcast %307 : vector<1x32xf32> to vector<17x32xf32>
    %309 = arith.addf %306, %308 : vector<17x32xf32>
    %310 = arith.addf %262, %309 : vector<17x32xf32>
    %c0_137 = arith.constant 0 : index
    %c0_138 = arith.constant 0 : index
    %311 = vector.load %arg17[%c0_137, %c0_138] : memref<1x32xf32, #tpu.memory_space<vmem>>, vector<1x32xf32>
    %c0_139 = arith.constant 0 : index
    %c0_140 = arith.constant 0 : index
    %312 = vector.load %arg18[%c0_139, %c0_140] : memref<1x32xf32, #tpu.memory_space<vmem>>, vector<1x32xf32>
    %cst_141 = arith.constant dense<0.000000e+00> : vector<17xf32>
    %313 = vector.multi_reduction <add>, %310, %cst_141 [1] : vector<17x32xf32> to vector<17xf32>
    %314 = vector.shape_cast %313 : vector<17xf32> to vector<17x1xf32>
    %cst_142 = arith.constant 3.200000e+01 : f32
    %315 = vector.broadcast %cst_142 : f32 to vector<17x1xf32>
    %316 = arith.divf %314, %315 : vector<17x1xf32>
    %317 = vector.broadcast %316 : vector<17x1xf32> to vector<17x32xf32>
    %318 = arith.subf %310, %317 : vector<17x32xf32>
    %319 = arith.mulf %318, %318 : vector<17x32xf32>
    %cst_143 = arith.constant dense<0.000000e+00> : vector<17xf32>
    %320 = vector.multi_reduction <add>, %319, %cst_143 [1] : vector<17x32xf32> to vector<17xf32>
    %321 = vector.shape_cast %320 : vector<17xf32> to vector<17x1xf32>
    %cst_144 = arith.constant 3.200000e+01 : f32
    %322 = vector.broadcast %cst_144 : f32 to vector<17x1xf32>
    %323 = arith.divf %321, %322 : vector<17x1xf32>
    %cst_145 = arith.constant 9.99999974E-6 : f32
    %324 = vector.broadcast %cst_145 : f32 to vector<17x1xf32>
    %325 = arith.addf %323, %324 : vector<17x1xf32>
    %326 = math.rsqrt %325 : vector<17x1xf32>
    %327 = vector.broadcast %326 : vector<17x1xf32> to vector<17x32xf32>
    %328 = arith.mulf %318, %327 : vector<17x32xf32>
    %329 = vector.broadcast %311 : vector<1x32xf32> to vector<17x32xf32>
    %330 = arith.mulf %328, %329 : vector<17x32xf32>
    %331 = vector.broadcast %312 : vector<1x32xf32> to vector<17x32xf32>
    %332 = arith.addf %330, %331 : vector<17x32xf32>
    %c0_146 = arith.constant 0 : index
    %c0_147 = arith.constant 0 : index
    %c0_148 = arith.constant 0 : index
    %333 = vector.load %arg20[%c0_146, %c0_147, %c0_148] : memref<1x17x32xf32, #tpu.memory_space<vmem>>, vector<1x17x32xf32>
    %334 = vector.shape_cast %333 : vector<1x17x32xf32> to vector<17x32xf32>
    %335 = vector.shape_cast %332 : vector<17x32xf32> to vector<1x17x32xf32>
    tpu.vector_store %arg20[%c0_146, %c0_147, %c0_148], %335 {strides = array<i32>} : memref<1x17x32xf32, #tpu.memory_space<vmem>>, vector<1x17x32xf32>,
    %c0_149 = arith.constant 0 : index
    %c0_150 = arith.constant 0 : index
    %336 = vector.load %arg19[%c0_149, %c0_150] : memref<32x2xf32, #tpu.memory_space<vmem>>, vector<32x2xf32>
    %cst_151 = arith.constant dense<0.000000e+00> : vector<17x2xf32>
    %337 = tpu.matmul %332, %336, %cst_151 {dimension_numbers = #tpu.dot_dimension_numbers<[1], [0], [0], [1], [0, 0, 1, 1], [], []>} : vector<17x32xf32>, vector<32x2xf32>, vector<17x2xf32> -> vector<17x2xf32>
    %338 = vector.extract_strided_slice %337 {offsets = [1, 0], sizes = [16, 2], strides = [1, 1]} : vector<17x2xf32> to vector<16x2xf32>
    %339 = vector.shape_cast %338 : vector<16x2xf32> to vector<16x1x2xf32>
    %340 = vector.shape_cast %338 : vector<16x2xf32> to vector<1x16x2xf32>
    %341 = vector.broadcast %339 : vector<16x1x2xf32> to vector<16x16x2xf32>
    %342 = vector.broadcast %340 : vector<1x16x2xf32> to vector<16x16x2xf32>
    %343 = arith.subf %341, %342 : vector<16x16x2xf32>
    %344 = math.tanh %343 : vector<16x16x2xf32>
    %cst_152 = arith.constant 1.600000e+01 : f32
    %345 = vector.broadcast %cst_152 : f32 to vector<16x16x2xf32>
    %346 = arith.mulf %344, %345 : vector<16x16x2xf32>
    %c0_153 = arith.constant 0 : index
    %c0_154 = arith.constant 0 : index
    %c0_155 = arith.constant 0 : index
    %c0_156 = arith.constant 0 : index
    %347 = vector.load %arg21[%c0_153, %c0_154, %c0_155, %c0_156] : memref<1x16x16x2xf32, #tpu.memory_space<vmem>>, vector<1x16x16x2xf32>
    %348 = vector.shape_cast %347 : vector<1x16x16x2xf32> to vector<16x16x2xf32>
    %349 = vector.shape_cast %346 : vector<16x16x2xf32> to vector<1x16x16x2xf32>
    tpu.vector_store %arg21[%c0_153, %c0_154, %c0_155, %c0_156], %349 {strides = array<i32>} : memref<1x16x16x2xf32, #tpu.memory_space<vmem>>, vector<1x16x16x2xf32>,
    %c0_157 = arith.constant 0 : index
    %c0_158 = arith.constant 0 : index
    %c0_159 = arith.constant 0 : index
    %350 = vector.load %arg2[%c0_157, %c0_158, %c0_159] : memref<1x16x2xf32, #tpu.memory_space<vmem>>, vector<1x16x2xf32>
    %351 = vector.shape_cast %350 : vector<1x16x2xf32> to vector<16x2xf32>
    %352 = vector.shape_cast %351 : vector<16x2xf32> to vector<16x1x2xf32>
    %353 = vector.shape_cast %351 : vector<16x2xf32> to vector<1x16x2xf32>
    %354 = vector.broadcast %352 : vector<16x1x2xf32> to vector<16x16x2xf32>
    %355 = vector.broadcast %353 : vector<1x16x2xf32> to vector<16x16x2xf32>
    %356 = arith.subf %354, %355 : vector<16x16x2xf32>
    %c0_160 = arith.constant 0 : index
    %c0_161 = arith.constant 0 : index
    %c0_162 = arith.constant 0 : index
    %c0_163 = arith.constant 0 : index
    %357 = vector.load %arg22[%c0_160, %c0_161, %c0_162, %c0_163] : memref<1x16x16x2xf32, #tpu.memory_space<vmem>>, vector<1x16x16x2xf32>
    %358 = vector.shape_cast %357 : vector<1x16x16x2xf32> to vector<16x16x2xf32>
    %359 = vector.shape_cast %356 : vector<16x16x2xf32> to vector<1x16x16x2xf32>
    tpu.vector_store %arg22[%c0_160, %c0_161, %c0_162, %c0_163], %359 {strides = array<i32>} : memref<1x16x16x2xf32, #tpu.memory_space<vmem>>, vector<1x16x16x2xf32>,
    %360 = arith.subf %346, %356 : vector<16x16x2xf32>
    %cst_164 = arith.constant 6.250000e-02 : f32
    %361 = vector.broadcast %cst_164 : f32 to vector<16x16x2xf32>
    %362 = arith.mulf %360, %361 : vector<16x16x2xf32>
    %363 = arith.mulf %362, %362 : vector<16x16x2xf32>
    %cst_165 = arith.constant dense<0.000000e+00> : vector<16x16xf32>
    %364 = vector.multi_reduction <add>, %363, %cst_165 [2] : vector<16x16x2xf32> to vector<16x16xf32>
    %365 = vector.shape_cast %364 : vector<16x16xf32> to vector<16x16x1xf32>
    %cst_166 = arith.constant dense<0.000000e+00> : vector<16x1xf32>
    %366 = vector.multi_reduction <add>, %365, %cst_166 [1] : vector<16x16x1xf32> to vector<16x1xf32>
    %367 = vector.shape_cast %366 : vector<16x1xf32> to vector<16x1x1xf32>
    %cst_167 = arith.constant dense<0.000000e+00> : vector<1x1xf32>
    %368 = vector.multi_reduction <add>, %367, %cst_167 [0] : vector<16x1x1xf32> to vector<1x1xf32>
    %369 = vector.shape_cast %368 : vector<1x1xf32> to vector<1x1x1xf32>
    %c0_168 = arith.constant 0 : index
    %c0_169 = arith.constant 0 : index
    %c0_170 = arith.constant 0 : index
    %370 = vector.load %arg23[%c0_168, %c0_169, %c0_170] : memref<1x1x1xf32, #tpu.memory_space<vmem>>, vector<1x1x1xf32>
    tpu.vector_store %arg23[%c0_168, %c0_169, %c0_170], %369 {strides = array<i32>} : memref<1x1x1xf32, #tpu.memory_space<vmem>>, vector<1x1x1xf32>,
    return
  }
  func.func @transform_0(%arg0: i32) -> (i32, i32, i32) {
    %c0_i32 = arith.constant 0 : i32
    %c0_i32_0 = arith.constant 0 : i32
    %c0_i32_1 = arith.constant 0 : i32
    return %arg0, %c0_i32, %c0_i32_0 : i32, i32, i32
  }
  func.func @transform_1(%arg0: i32) -> (i32, i32, i32) {
    %c0_i32 = arith.constant 0 : i32
    %c0_i32_0 = arith.constant 0 : i32
    %c0_i32_1 = arith.constant 0 : i32
    return %arg0, %c0_i32, %c0_i32_0 : i32, i32, i32
  }
  func.func @transform_2(%arg0: i32) -> (i32, i32) {
    %c0_i32 = arith.constant 0 : i32
    %c0_i32_0 = arith.constant 0 : i32
    %c0_i32_1 = arith.constant 0 : i32
    return %c0_i32, %c0_i32_0 : i32, i32
  }
  func.func @transform_3(%arg0: i32) -> (i32, i32) {
    %c0_i32 = arith.constant 0 : i32
    %c0_i32_0 = arith.constant 0 : i32
    %c0_i32_1 = arith.constant 0 : i32
    return %c0_i32, %c0_i32_0 : i32, i32
  }
  func.func @transform_4(%arg0: i32) -> (i32, i32) {
    %c0_i32 = arith.constant 0 : i32
    %c0_i32_0 = arith.constant 0 : i32
    %c0_i32_1 = arith.constant 0 : i32
    return %c0_i32, %c0_i32_0 : i32, i32
  }
  func.func @transform_5(%arg0: i32) -> (i32, i32) {
    %c0_i32 = arith.constant 0 : i32
    %c0_i32_0 = arith.constant 0 : i32
    %c0_i32_1 = arith.constant 0 : i32
    return %c0_i32, %c0_i32_0 : i32, i32
  }
  func.func @transform_6(%arg0: i32) -> (i32, i32, i32) {
    %c0_i32 = arith.constant 0 : i32
    %c0_i32_0 = arith.constant 0 : i32
    %c0_i32_1 = arith.constant 0 : i32
    %c0_i32_2 = arith.constant 0 : i32
    return %c0_i32, %c0_i32_0, %c0_i32_1 : i32, i32, i32
  }
  func.func @transform_7(%arg0: i32) -> (i32, i32) {
    %c0_i32 = arith.constant 0 : i32
    %c0_i32_0 = arith.constant 0 : i32
    %c0_i32_1 = arith.constant 0 : i32
    return %c0_i32, %c0_i32_0 : i32, i32
  }
  func.func @transform_8(%arg0: i32) -> (i32, i32, i32) {
    %c0_i32 = arith.constant 0 : i32
    %c0_i32_0 = arith.constant 0 : i32
    %c0_i32_1 = arith.constant 0 : i32
    %c0_i32_2 = arith.constant 0 : i32
    return %c0_i32, %c0_i32_0, %c0_i32_1 : i32, i32, i32
  }
  func.func @transform_9(%arg0: i32) -> (i32, i32) {
    %c0_i32 = arith.constant 0 : i32
    %c0_i32_0 = arith.constant 0 : i32
    %c0_i32_1 = arith.constant 0 : i32
    return %c0_i32, %c0_i32_0 : i32, i32
  }
  func.func @transform_10(%arg0: i32) -> (i32, i32) {
    %c0_i32 = arith.constant 0 : i32
    %c0_i32_0 = arith.constant 0 : i32
    %c0_i32_1 = arith.constant 0 : i32
    return %c0_i32, %c0_i32_0 : i32, i32
  }
  func.func @transform_11(%arg0: i32) -> (i32, i32) {
    %c0_i32 = arith.constant 0 : i32
    %c0_i32_0 = arith.constant 0 : i32
    %c0_i32_1 = arith.constant 0 : i32
    return %c0_i32, %c0_i32_0 : i32, i32
  }
  func.func @transform_12(%arg0: i32) -> (i32, i32, i32) {
    %c0_i32 = arith.constant 0 : i32
    %c0_i32_0 = arith.constant 0 : i32
    %c0_i32_1 = arith.constant 0 : i32
    %c0_i32_2 = arith.constant 0 : i32
    return %c0_i32, %c0_i32_0, %c0_i32_1 : i32, i32, i32
  }
  func.func @transform_13(%arg0: i32) -> (i32, i32) {
    %c0_i32 = arith.constant 0 : i32
    %c0_i32_0 = arith.constant 0 : i32
    %c0_i32_1 = arith.constant 0 : i32
    return %c0_i32, %c0_i32_0 : i32, i32
  }
  func.func @transform_14(%arg0: i32) -> (i32, i32, i32) {
    %c0_i32 = arith.constant 0 : i32
    %c0_i32_0 = arith.constant 0 : i32
    %c0_i32_1 = arith.constant 0 : i32
    %c0_i32_2 = arith.constant 0 : i32
    return %c0_i32, %c0_i32_0, %c0_i32_1 : i32, i32, i32
  }
  func.func @transform_15(%arg0: i32) -> (i32, i32) {
    %c0_i32 = arith.constant 0 : i32
    %c0_i32_0 = arith.constant 0 : i32
    %c0_i32_1 = arith.constant 0 : i32
    return %c0_i32, %c0_i32_0 : i32, i32
  }
  func.func @transform_16(%arg0: i32) -> (i32, i32) {
    %c0_i32 = arith.constant 0 : i32
    %c0_i32_0 = arith.constant 0 : i32
    %c0_i32_1 = arith.constant 0 : i32
    return %c0_i32, %c0_i32_0 : i32, i32
  }
  func.func @transform_17(%arg0: i32) -> (i32, i32) {
    %c0_i32 = arith.constant 0 : i32
    %c0_i32_0 = arith.constant 0 : i32
    %c0_i32_1 = arith.constant 0 : i32
    return %c0_i32, %c0_i32_0 : i32, i32
  }
  func.func @transform_18(%arg0: i32) -> (i32, i32) {
    %c0_i32 = arith.constant 0 : i32
    %c0_i32_0 = arith.constant 0 : i32
    %c0_i32_1 = arith.constant 0 : i32
    return %c0_i32, %c0_i32_0 : i32, i32
  }
  func.func @transform_19(%arg0: i32) -> (i32, i32, i32) {
    %c0_i32 = arith.constant 0 : i32
    %c0_i32_0 = arith.constant 0 : i32
    %c0_i32_1 = arith.constant 0 : i32
    return %arg0, %c0_i32, %c0_i32_0 : i32, i32, i32
  }
  func.func @transform_20(%arg0: i32) -> (i32, i32, i32, i32) {
    %c0_i32 = arith.constant 0 : i32
    %c0_i32_0 = arith.constant 0 : i32
    %c0_i32_1 = arith.constant 0 : i32
    %c0_i32_2 = arith.constant 0 : i32
    return %arg0, %c0_i32, %c0_i32_0, %c0_i32_1 : i32, i32, i32, i32
  }
  func.func @transform_21(%arg0: i32) -> (i32, i32, i32, i32) {
    %c0_i32 = arith.constant 0 : i32
    %c0_i32_0 = arith.constant 0 : i32
    %c0_i32_1 = arith.constant 0 : i32
    %c0_i32_2 = arith.constant 0 : i32
    return %arg0, %c0_i32, %c0_i32_0, %c0_i32_1 : i32, i32, i32, i32
  }
  func.func @transform_22(%arg0: i32) -> (i32, i32, i32) {
    %c0_i32 = arith.constant 0 : i32
    %c0_i32_0 = arith.constant 0 : i32
    %c0_i32_1 = arith.constant 0 : i32
    return %arg0, %c0_i32, %c0_i32_0 : i32, i32, i32
  }
}

</mosaic_0001>

<llo_original>
// kernel: tpu_custom_call.1
$region0: #{tpu_custom_call.1}
  #allocation0 [shape = 'u32[]', space=smem, size = 0x4, offset = 0x4, fixed_abs, tag = 'smem constant byte address 0x4 - core index']
  #allocation1 [shape = 'u32[72,128]{1,0:T(1,128)}', space=vmem, size = 0x9000, scoped, tag = 'internal scratch']
  %s0 = inlined_call_operand.vmem [shape: f32[2,17,49], index: 0, kind: input, shape index: {}]
  %s1 = inlined_call_operand.vmem [shape: f32[2,16,2], index: 1, kind: input, shape index: {}]
  %s2 = inlined_call_operand.vmem [shape: f32[49,32], index: 2, kind: input, shape index: {}]
  %s3 = inlined_call_operand.vmem [shape: f32[1,32], index: 3, kind: input, shape index: {}]
  %s4 = inlined_call_operand.vmem [shape: f32[2,32], index: 4, kind: input, shape index: {}]
  %s5 = inlined_call_operand.vmem [shape: f32[2,32], index: 5, kind: input, shape index: {}]
  %s6 = inlined_call_operand.vmem [shape: f32[2,32,96], index: 6, kind: input, shape index: {}]
  %s7 = inlined_call_operand.vmem [shape: f32[2,96], index: 7, kind: input, shape index: {}]
  %s8 = inlined_call_operand.vmem [shape: f32[2,32,32], index: 8, kind: input, shape index: {}]
  %s9 = inlined_call_operand.vmem [shape: f32[2,32], index: 9, kind: input, shape index: {}]
  %s10 = inlined_call_operand.vmem [shape: f32[2,32], index: 10, kind: input, shape index: {}]
  %s11 = inlined_call_operand.vmem [shape: f32[2,32], index: 11, kind: input, shape index: {}]
  %s12 = inlined_call_operand.vmem [shape: f32[2,32,128], index: 12, kind: input, shape index: {}]
  %s13 = inlined_call_operand.vmem [shape: f32[2,128], index: 13, kind: input, shape index: {}]
  %s14 = inlined_call_operand.vmem [shape: f32[2,128,32], index: 14, kind: input, shape index: {}]
  %s15 = inlined_call_operand.vmem [shape: f32[2,32], index: 15, kind: input, shape index: {}]
  %s16 = inlined_call_operand.vmem [shape: f32[1,32], index: 16, kind: input, shape index: {}]
  %s17 = inlined_call_operand.vmem [shape: f32[1,32], index: 17, kind: input, shape index: {}]
  %s18 = inlined_call_operand.vmem [shape: f32[32,2], index: 18, kind: input, shape index: {}]
  %s19 = inlined_call_operand.vmem [shape: f32[2,17,32], index: 19, kind: output, shape index: {0}]
  %s20 = inlined_call_operand.vmem [shape: f32[2,16,16,2], index: 20, kind: output, shape index: {1}]
  %s21 = inlined_call_operand.vmem [shape: f32[2,16,16,2], index: 21, kind: output, shape index: {2}]
  %s22 = inlined_call_operand.vmem [shape: f32[2,1,1], index: 22, kind: output, shape index: {3}]
  %23 = xla_tuple %s19, %s20, %s21, %s22
  %s24 = sld [smem:[#allocation0]]
  $region133: #{tpu_custom_call.1} parent=0
    _
  %s26 = ssub.s32 1, %s24
  %s27 = scalar_select 0, %s26, %s24
  loop: start=0, step=1, limit=4
  $region2: #{tpu_custom_call.1} parent=0 // loop_pre_header
    _
  $region3: #{tpu_custom_call.1} parent=0 // loop_header
    %s29 = sphi 0, %s33
    %p30 = scmp.ge.s32.totalorder %s29, 4
    %s39 = sphi 0, %s41
    %s42 = sphi 0, %s39
    %s43 = sphi 0, %s42
    %s59 = sphi 0, %s43
    %s65 = sphi 0, %s67
    %s68 = sphi 0, %s65
    %s69 = sphi 0, %s68
    %s85 = sphi 0, %s69
    %s89 = sphi 0, %s89
    %s91 = sphi 0, %s89
    %s92 = sphi 0, %s91
    %s106 = sphi 0, %s92
    %s110 = sphi 0, %s110
    %s112 = sphi 0, %s110
    %s113 = sphi 0, %s112
    %s127 = sphi 0, %s113
    %s131 = sphi 0, %s131
    %s133 = sphi 0, %s131
    %s134 = sphi 0, %s133
    %s148 = sphi 0, %s134
    %s152 = sphi 0, %s152
    %s154 = sphi 0, %s152
    %s155 = sphi 0, %s154
    %s169 = sphi 0, %s155
    %s173 = sphi 0, %s173
    %s175 = sphi 0, %s173
    %s176 = sphi 0, %s175
    %s190 = sphi 0, %s176
    %s194 = sphi 0, %s194
    %s196 = sphi 0, %s194
    %s197 = sphi 0, %s196
    %s211 = sphi 0, %s197
    %s215 = sphi 0, %s215
    %s217 = sphi 0, %s215
    %s218 = sphi 0, %s217
    %s232 = sphi 0, %s218
    %s236 = sphi 0, %s236
    %s238 = sphi 0, %s236
    %s239 = sphi 0, %s238
    %s253 = sphi 0, %s239
    %s257 = sphi 0, %s257
    %s259 = sphi 0, %s257
    %s260 = sphi 0, %s259
    %s274 = sphi 0, %s260
    %s278 = sphi 0, %s278
    %s280 = sphi 0, %s278
    %s281 = sphi 0, %s280
    %s295 = sphi 0, %s281
    %s299 = sphi 0, %s299
    %s301 = sphi 0, %s299
    %s302 = sphi 0, %s301
    %s316 = sphi 0, %s302
    %s320 = sphi 0, %s320
    %s322 = sphi 0, %s320
    %s323 = sphi 0, %s322
    %s337 = sphi 0, %s323
    %s341 = sphi 0, %s341
    %s343 = sphi 0, %s341
    %s344 = sphi 0, %s343
    %s358 = sphi 0, %s344
    %s362 = sphi 0, %s362
    %s364 = sphi 0, %s362
    %s365 = sphi 0, %s364
    %s379 = sphi 0, %s365
    %s383 = sphi 0, %s383
    %s385 = sphi 0, %s383
    %s386 = sphi 0, %s385
    %s400 = sphi 0, %s386
    %s404 = sphi 0, %s404
    %s406 = sphi 0, %s404
    %s407 = sphi 0, %s406
    %s421 = sphi 0, %s407
    %s425 = sphi 0, %s425
    %s427 = sphi 0, %s425
    %s428 = sphi 0, %s427
    %s442 = sphi 0, %s428
    %s448 = sphi 0, %s450
    %s451 = sphi 0, %s448
    %s452 = sphi 0, %s451
    %s468 = sphi 0, %s452
    %s474 = sphi 0, %s476
    %s477 = sphi 0, %s474
    %s478 = sphi 0, %s477
    %s494 = sphi 0, %s478
    %s500 = sphi 0, %s502
    %s503 = sphi 0, %s500
    %s504 = sphi 0, %s503
    %s520 = sphi 0, %s504
    %s526 = sphi 0, %s528
    %s529 = sphi 0, %s526
    %s530 = sphi 0, %s529
    %s546 = sphi 0, %s530
  $region4: #{tpu_custom_call.1} parent=0 // loop_header_branch
    %32 = sbr.rel (%p30) target = $region8
  $region5: #{tpu_custom_call.1} parent=0 // loop_body
    %s34 = ssub.s32 %s29, 1
    %s35 = ssub.s32 %s29, 2
    %s36 = sadd.s32 %s29, 1
    %s37 = ssub.s32 %s29, %s36
    %p38 = scmp.eq.s32.totalorder %s37, 0
    %s40 = sadd.s32 %s39, 1
    %s41 = scalar_select %p38, %s39, %s40
    %p44 = pneg %p38
    %p45 = scmp.eq.s32.totalorder %s29, 1
    %p46 = por %p44, %p45
    %p47 = scmp.ne.s32.totalorder %s39, %s42
    %p48 = scmp.eq.s32.totalorder %s29, 0
    %p49 = por %p47, %p48
    %p50 = scmp.ne.s32.totalorder %s39, %s42
    %p51 = scmp.eq.s32.totalorder %s34, 1
    %p52 = por %p50, %p51
    %p53 = scmp.ne.s32.totalorder %s42, %s43
    %p54 = scmp.eq.s32.totalorder %s34, 0
    %p55 = por %p53, %p54
    %p56 = scmp.ne.s32.totalorder %s42, %s43
    %p57 = scmp.eq.s32.totalorder %s35, 1
    %p58 = por %p56, %p57
    %p60 = scmp.ne.s32.totalorder %s43, %s59
    %p61 = scmp.eq.s32.totalorder %s35, 0
    %p62 = por %p60, %p61
    %s63 = ssub.s32 %s29, %s36
    %p64 = scmp.eq.s32.totalorder %s63, 0
    %s66 = sadd.s32 %s65, 1
    %s67 = scalar_select %p64, %s65, %s66
    %p70 = pneg %p64
    %p71 = scmp.eq.s32.totalorder %s29, 1
    %p72 = por %p70, %p71
    %p73 = scmp.ne.s32.totalorder %s65, %s68
    %p74 = scmp.eq.s32.totalorder %s29, 0
    %p75 = por %p73, %p74
    %p76 = scmp.ne.s32.totalorder %s65, %s68
    %p77 = scmp.eq.s32.totalorder %s34, 1
    %p78 = por %p76, %p77
    %p79 = scmp.ne.s32.totalorder %s68, %s69
    %p80 = scmp.eq.s32.totalorder %s34, 0
    %p81 = por %p79, %p80
    %p82 = scmp.ne.s32.totalorder %s68, %s69
    %p83 = scmp.eq.s32.totalorder %s35, 1
    %p84 = por %p82, %p83
    %p86 = scmp.ne.s32.totalorder %s69, %s85
    %p87 = scmp.eq.s32.totalorder %s35, 0
    %p88 = por %p86, %p87
    %s90 = sadd.s32 %s89, 1
    %p93 = scmp.eq.s32.totalorder %s29, 1
    %p94 = scmp.ne.s32.totalorder %s89, %s91
    %p95 = scmp.eq.s32.totalorder %s29, 0
    %p96 = por %p94, %p95
    %p97 = scmp.ne.s32.totalorder %s89, %s91
    %p98 = scmp.eq.s32.totalorder %s34, 1
    %p99 = por %p97, %p98
    %p100 = scmp.ne.s32.totalorder %s91, %s92
    %p101 = scmp.eq.s32.totalorder %s34, 0
    %p102 = por %p100, %p101
    %p103 = scmp.ne.s32.totalorder %s91, %s92
    %p104 = scmp.eq.s32.totalorder %s35, 1
    %p105 = por %p103, %p104
    %p107 = scmp.ne.s32.totalorder %s92, %s106
    %p108 = scmp.eq.s32.totalorder %s35, 0
    %p109 = por %p107, %p108
    %s111 = sadd.s32 %s110, 1
    %p114 = scmp.eq.s32.totalorder %s29, 1
    %p115 = scmp.ne.s32.totalorder %s110, %s112
    %p116 = scmp.eq.s32.totalorder %s29, 0
    %p117 = por %p115, %p116
    %p118 = scmp.ne.s32.totalorder %s110, %s112
    %p119 = scmp.eq.s32.totalorder %s34, 1
    %p120 = por %p118, %p119
    %p121 = scmp.ne.s32.totalorder %s112, %s113
    %p122 = scmp.eq.s32.totalorder %s34, 0
    %p123 = por %p121, %p122
    %p124 = scmp.ne.s32.totalorder %s112, %s113
    %p125 = scmp.eq.s32.totalorder %s35, 1
    %p126 = por %p124, %p125
    %p128 = scmp.ne.s32.totalorder %s113, %s127
    %p129 = scmp.eq.s32.totalorder %s35, 0
    %p130 = por %p128, %p129
    %s132 = sadd.s32 %s131, 1
    %p135 = scmp.eq.s32.totalorder %s29, 1
    %p136 = scmp.ne.s32.totalorder %s131, %s133
    %p137 = scmp.eq.s32.totalorder %s29, 0
    %p138 = por %p136, %p137
    %p139 = scmp.ne.s32.totalorder %s131, %s133
    %p140 = scmp.eq.s32.totalorder %s34, 1
    %p141 = por %p139, %p140
    %p142 = scmp.ne.s32.totalorder %s133, %s134
    %p143 = scmp.eq.s32.totalorder %s34, 0
    %p144 = por %p142, %p143
    %p145 = scmp.ne.s32.totalorder %s133, %s134
    %p146 = scmp.eq.s32.totalorder %s35, 1
    %p147 = por %p145, %p146
    %p149 = scmp.ne.s32.totalorder %s134, %s148
    %p150 = scmp.eq.s32.totalorder %s35, 0
    %p151 = por %p149, %p150
    %s153 = sadd.s32 %s152, 1
    %p156 = scmp.eq.s32.totalorder %s29, 1
    %p157 = scmp.ne.s32.totalorder %s152, %s154
    %p158 = scmp.eq.s32.totalorder %s29, 0
    %p159 = por %p157, %p158
    %p160 = scmp.ne.s32.totalorder %s152, %s154
    %p161 = scmp.eq.s32.totalorder %s34, 1
    %p162 = por %p160, %p161
    %p163 = scmp.ne.s32.totalorder %s154, %s155
    %p164 = scmp.eq.s32.totalorder %s34, 0
    %p165 = por %p163, %p164
    %p166 = scmp.ne.s32.totalorder %s154, %s155
    %p167 = scmp.eq.s32.totalorder %s35, 1
    %p168 = por %p166, %p167
    %p170 = scmp.ne.s32.totalorder %s155, %s169
    %p171 = scmp.eq.s32.totalorder %s35, 0
    %p172 = por %p170, %p171
    %s174 = sadd.s32 %s173, 1
    %p177 = scmp.eq.s32.totalorder %s29, 1
    %p178 = scmp.ne.s32.totalorder %s173, %s175
    %p179 = scmp.eq.s32.totalorder %s29, 0
    %p180 = por %p178, %p179
    %p181 = scmp.ne.s32.totalorder %s173, %s175
    %p182 = scmp.eq.s32.totalorder %s34, 1
    %p183 = por %p181, %p182
    %p184 = scmp.ne.s32.totalorder %s175, %s176
    %p185 = scmp.eq.s32.totalorder %s34, 0
    %p186 = por %p184, %p185
    %p187 = scmp.ne.s32.totalorder %s175, %s176
    %p188 = scmp.eq.s32.totalorder %s35, 1
    %p189 = por %p187, %p188
    %p191 = scmp.ne.s32.totalorder %s176, %s190
    %p192 = scmp.eq.s32.totalorder %s35, 0
    %p193 = por %p191, %p192
    %s195 = sadd.s32 %s194, 1
    %p198 = scmp.eq.s32.totalorder %s29, 1
    %p199 = scmp.ne.s32.totalorder %s194, %s196
    %p200 = scmp.eq.s32.totalorder %s29, 0
    %p201 = por %p199, %p200
    %p202 = scmp.ne.s32.totalorder %s194, %s196
    %p203 = scmp.eq.s32.totalorder %s34, 1
    %p204 = por %p202, %p203
    %p205 = scmp.ne.s32.totalorder %s196, %s197
    %p206 = scmp.eq.s32.totalorder %s34, 0
    %p207 = por %p205, %p206
    %p208 = scmp.ne.s32.totalorder %s196, %s197
    %p209 = scmp.eq.s32.totalorder %s35, 1
    %p210 = por %p208, %p209
    %p212 = scmp.ne.s32.totalorder %s197, %s211
    %p213 = scmp.eq.s32.totalorder %s35, 0
    %p214 = por %p212, %p213
    %s216 = sadd.s32 %s215, 1
    %p219 = scmp.eq.s32.totalorder %s29, 1
    %p220 = scmp.ne.s32.totalorder %s215, %s217
    %p221 = scmp.eq.s32.totalorder %s29, 0
    %p222 = por %p220, %p221
    %p223 = scmp.ne.s32.totalorder %s215, %s217
    %p224 = scmp.eq.s32.totalorder %s34, 1
    %p225 = por %p223, %p224
    %p226 = scmp.ne.s32.totalorder %s217, %s218
    %p227 = scmp.eq.s32.totalorder %s34, 0
    %p228 = por %p226, %p227
    %p229 = scmp.ne.s32.totalorder %s217, %s218
    %p230 = scmp.eq.s32.totalorder %s35, 1
    %p231 = por %p229, %p230
    %p233 = scmp.ne.s32.totalorder %s218, %s232
    %p234 = scmp.eq.s32.totalorder %s35, 0
    %p235 = por %p233, %p234
    %s237 = sadd.s32 %s236, 1
    %p240 = scmp.eq.s32.totalorder %s29, 1
    %p241 = scmp.ne.s32.totalorder %s236, %s238
    %p242 = scmp.eq.s32.totalorder %s29, 0
    %p243 = por %p241, %p242
    %p244 = scmp.ne.s32.totalorder %s236, %s238
    %p245 = scmp.eq.s32.totalorder %s34, 1
    %p246 = por %p244, %p245
    %p247 = scmp.ne.s32.totalorder %s238, %s239
    %p248 = scmp.eq.s32.totalorder %s34, 0
    %p249 = por %p247, %p248
    %p250 = scmp.ne.s32.totalorder %s238, %s239
    %p251 = scmp.eq.s32.totalorder %s35, 1
    %p252 = por %p250, %p251
    %p254 = scmp.ne.s32.totalorder %s239, %s253
    %p255 = scmp.eq.s32.totalorder %s35, 0
    %p256 = por %p254, %p255
    %s258 = sadd.s32 %s257, 1
    %p261 = scmp.eq.s32.totalorder %s29, 1
    %p262 = scmp.ne.s32.totalorder %s257, %s259
    %p263 = scmp.eq.s32.totalorder %s29, 0
    %p264 = por %p262, %p263
    %p265 = scmp.ne.s32.totalorder %s257, %s259
    %p266 = scmp.eq.s32.totalorder %s34, 1
    %p267 = por %p265, %p266
    %p268 = scmp.ne.s32.totalorder %s259, %s260
    %p269 = scmp.eq.s32.totalorder %s34, 0
    %p270 = por %p268, %p269
    %p271 = scmp.ne.s32.totalorder %s259, %s260
    %p272 = scmp.eq.s32.totalorder %s35, 1
    %p273 = por %p271, %p272
    %p275 = scmp.ne.s32.totalorder %s260, %s274
    %p276 = scmp.eq.s32.totalorder %s35, 0
    %p277 = por %p275, %p276
    %s279 = sadd.s32 %s278, 1
    %p282 = scmp.eq.s32.totalorder %s29, 1
    %p283 = scmp.ne.s32.totalorder %s278, %s280
    %p284 = scmp.eq.s32.totalorder %s29, 0
    %p285 = por %p283, %p284
    %p286 = scmp.ne.s32.totalorder %s278, %s280
    %p287 = scmp.eq.s32.totalorder %s34, 1
    %p288 = por %p286, %p287
    %p289 = scmp.ne.s32.totalorder %s280, %s281
    %p290 = scmp.eq.s32.totalorder %s34, 0
    %p291 = por %p289, %p290
    %p292 = scmp.ne.s32.totalorder %s280, %s281
    %p293 = scmp.eq.s32.totalorder %s35, 1
    %p294 = por %p292, %p293
    %p296 = scmp.ne.s32.totalorder %s281, %s295
    %p297 = scmp.eq.s32.totalorder %s35, 0
    %p298 = por %p296, %p297
    %s300 = sadd.s32 %s299, 1
    %p303 = scmp.eq.s32.totalorder %s29, 1
    %p304 = scmp.ne.s32.totalorder %s299, %s301
    %p305 = scmp.eq.s32.totalorder %s29, 0
    %p306 = por %p304, %p305
    %p307 = scmp.ne.s32.totalorder %s299, %s301
    %p308 = scmp.eq.s32.totalorder %s34, 1
    %p309 = por %p307, %p308
    %p310 = scmp.ne.s32.totalorder %s301, %s302
    %p311 = scmp.eq.s32.totalorder %s34, 0
    %p312 = por %p310, %p311
    %p313 = scmp.ne.s32.totalorder %s301, %s302
    %p314 = scmp.eq.s32.totalorder %s35, 1
    %p315 = por %p313, %p314
    %p317 = scmp.ne.s32.totalorder %s302, %s316
    %p318 = scmp.eq.s32.totalorder %s35, 0
    %p319 = por %p317, %p318
    %s321 = sadd.s32 %s320, 1
    %p324 = scmp.eq.s32.totalorder %s29, 1
    %p325 = scmp.ne.s32.totalorder %s320, %s322
    %p326 = scmp.eq.s32.totalorder %s29, 0
    %p327 = por %p325, %p326
    %p328 = scmp.ne.s32.totalorder %s320, %s322
    %p329 = scmp.eq.s32.totalorder %s34, 1
    %p330 = por %p328, %p329
    %p331 = scmp.ne.s32.totalorder %s322, %s323
    %p332 = scmp.eq.s32.totalorder %s34, 0
    %p333 = por %p331, %p332
    %p334 = scmp.ne.s32.totalorder %s322, %s323
    %p335 = scmp.eq.s32.totalorder %s35, 1
    %p336 = por %p334, %p335
    %p338 = scmp.ne.s32.totalorder %s323, %s337
    %p339 = scmp.eq.s32.totalorder %s35, 0
    %p340 = por %p338, %p339
    %s342 = sadd.s32 %s341, 1
    %p345 = scmp.eq.s32.totalorder %s29, 1
    %p346 = scmp.ne.s32.totalorder %s341, %s343
    %p347 = scmp.eq.s32.totalorder %s29, 0
    %p348 = por %p346, %p347
    %p349 = scmp.ne.s32.totalorder %s341, %s343
    %p350 = scmp.eq.s32.totalorder %s34, 1
    %p351 = por %p349, %p350
    %p352 = scmp.ne.s32.totalorder %s343, %s344
    %p353 = scmp.eq.s32.totalorder %s34, 0
    %p354 = por %p352, %p353
    %p355 = scmp.ne.s32.totalorder %s343, %s344
    %p356 = scmp.eq.s32.totalorder %s35, 1
    %p357 = por %p355, %p356
    %p359 = scmp.ne.s32.totalorder %s344, %s358
    %p360 = scmp.eq.s32.totalorder %s35, 0
    %p361 = por %p359, %p360
    %s363 = sadd.s32 %s362, 1
    %p366 = scmp.eq.s32.totalorder %s29, 1
    %p367 = scmp.ne.s32.totalorder %s362, %s364
    %p368 = scmp.eq.s32.totalorder %s29, 0
    %p369 = por %p367, %p368
    %p370 = scmp.ne.s32.totalorder %s362, %s364
    %p371 = scmp.eq.s32.totalorder %s34, 1
    %p372 = por %p370, %p371
    %p373 = scmp.ne.s32.totalorder %s364, %s365
    %p374 = scmp.eq.s32.totalorder %s34, 0
    %p375 = por %p373, %p374
    %p376 = scmp.ne.s32.totalorder %s364, %s365
    %p377 = scmp.eq.s32.totalorder %s35, 1
    %p378 = por %p376, %p377
    %p380 = scmp.ne.s32.totalorder %s365, %s379
    %p381 = scmp.eq.s32.totalorder %s35, 0
    %p382 = por %p380, %p381
    %s384 = sadd.s32 %s383, 1
    %p387 = scmp.eq.s32.totalorder %s29, 1
    %p388 = scmp.ne.s32.totalorder %s383, %s385
    %p389 = scmp.eq.s32.totalorder %s29, 0
    %p390 = por %p388, %p389
    %p391 = scmp.ne.s32.totalorder %s383, %s385
    %p392 = scmp.eq.s32.totalorder %s34, 1
    %p393 = por %p391, %p392
    %p394 = scmp.ne.s32.totalorder %s385, %s386
    %p395 = scmp.eq.s32.totalorder %s34, 0
    %p396 = por %p394, %p395
    %p397 = scmp.ne.s32.totalorder %s385, %s386
    %p398 = scmp.eq.s32.totalorder %s35, 1
    %p399 = por %p397, %p398
    %p401 = scmp.ne.s32.totalorder %s386, %s400
    %p402 = scmp.eq.s32.totalorder %s35, 0
    %p403 = por %p401, %p402
    %s405 = sadd.s32 %s404, 1
    %p408 = scmp.eq.s32.totalorder %s29, 1
    %p409 = scmp.ne.s32.totalorder %s404, %s406
    %p410 = scmp.eq.s32.totalorder %s29, 0
    %p411 = por %p409, %p410
    %p412 = scmp.ne.s32.totalorder %s404, %s406
    %p413 = scmp.eq.s32.totalorder %s34, 1
    %p414 = por %p412, %p413
    %p415 = scmp.ne.s32.totalorder %s406, %s407
    %p416 = scmp.eq.s32.totalorder %s34, 0
    %p417 = por %p415, %p416
    %p418 = scmp.ne.s32.totalorder %s406, %s407
    %p419 = scmp.eq.s32.totalorder %s35, 1
    %p420 = por %p418, %p419
    %p422 = scmp.ne.s32.totalorder %s407, %s421
    %p423 = scmp.eq.s32.totalorder %s35, 0
    %p424 = por %p422, %p423
    %s426 = sadd.s32 %s425, 1
    %p429 = scmp.eq.s32.totalorder %s29, 1
    %p430 = scmp.ne.s32.totalorder %s425, %s427
    %p431 = scmp.eq.s32.totalorder %s29, 0
    %p432 = por %p430, %p431
    %p433 = scmp.ne.s32.totalorder %s425, %s427
    %p434 = scmp.eq.s32.totalorder %s34, 1
    %p435 = por %p433, %p434
    %p436 = scmp.ne.s32.totalorder %s427, %s428
    %p437 = scmp.eq.s32.totalorder %s34, 0
    %p438 = por %p436, %p437
    %p439 = scmp.ne.s32.totalorder %s427, %s428
    %p440 = scmp.eq.s32.totalorder %s35, 1
    %p441 = por %p439, %p440
    %p443 = scmp.ne.s32.totalorder %s428, %s442
    %p444 = scmp.eq.s32.totalorder %s35, 0
    %p445 = por %p443, %p444
    %s446 = ssub.s32 %s29, %s36
    %p447 = scmp.eq.s32.totalorder %s446, 0
    %s449 = sadd.s32 %s448, 1
    %s450 = scalar_select %p447, %s448, %s449
    %p453 = pneg %p447
    %p454 = scmp.eq.s32.totalorder %s29, 1
    %p455 = por %p453, %p454
    %p456 = scmp.ne.s32.totalorder %s448, %s451
    %p457 = scmp.eq.s32.totalorder %s29, 0
    %p458 = por %p456, %p457
    %p459 = scmp.ne.s32.totalorder %s448, %s451
    %p460 = scmp.eq.s32.totalorder %s34, 1
    %p461 = por %p459, %p460
    %p462 = scmp.ne.s32.totalorder %s451, %s452
    %p463 = scmp.eq.s32.totalorder %s34, 0
    %p464 = por %p462, %p463
    %p465 = scmp.ne.s32.totalorder %s451, %s452
    %p466 = scmp.eq.s32.totalorder %s35, 1
    %p467 = por %p465, %p466
    %p469 = scmp.ne.s32.totalorder %s452, %s468
    %p470 = scmp.eq.s32.totalorder %s35, 0
    %p471 = por %p469, %p470
    %s472 = ssub.s32 %s29, %s36
    %p473 = scmp.eq.s32.totalorder %s472, 0
    %s475 = sadd.s32 %s474, 1
    %s476 = scalar_select %p473, %s474, %s475
    %p479 = pneg %p473
    %p480 = scmp.eq.s32.totalorder %s29, 1
    %p481 = por %p479, %p480
    %p482 = scmp.ne.s32.totalorder %s474, %s477
    %p483 = scmp.eq.s32.totalorder %s29, 0
    %p484 = por %p482, %p483
    %p485 = scmp.ne.s32.totalorder %s474, %s477
    %p486 = scmp.eq.s32.totalorder %s34, 1
    %p487 = por %p485, %p486
    %p488 = scmp.ne.s32.totalorder %s477, %s478
    %p489 = scmp.eq.s32.totalorder %s34, 0
    %p490 = por %p488, %p489
    %p491 = scmp.ne.s32.totalorder %s477, %s478
    %p492 = scmp.eq.s32.totalorder %s35, 1
    %p493 = por %p491, %p492
    %p495 = scmp.ne.s32.totalorder %s478, %s494
    %p496 = scmp.eq.s32.totalorder %s35, 0
    %p497 = por %p495, %p496
    %s498 = ssub.s32 %s29, %s36
    %p499 = scmp.eq.s32.totalorder %s498, 0
    %s501 = sadd.s32 %s500, 1
    %s502 = scalar_select %p499, %s500, %s501
    %p505 = pneg %p499
    %p506 = scmp.eq.s32.totalorder %s29, 1
    %p507 = por %p505, %p506
    %p508 = scmp.ne.s32.totalorder %s500, %s503
    %p509 = scmp.eq.s32.totalorder %s29, 0
    %p510 = por %p508, %p509
    %p511 = scmp.ne.s32.totalorder %s500, %s503
    %p512 = scmp.eq.s32.totalorder %s34, 1
    %p513 = por %p511, %p512
    %p514 = scmp.ne.s32.totalorder %s503, %s504
    %p515 = scmp.eq.s32.totalorder %s34, 0
    %p516 = por %p514, %p515
    %p517 = scmp.ne.s32.totalorder %s503, %s504
    %p518 = scmp.eq.s32.totalorder %s35, 1
    %p519 = por %p517, %p518
    %p521 = scmp.ne.s32.totalorder %s504, %s520
    %p522 = scmp.eq.s32.totalorder %s35, 0
    %p523 = por %p521, %p522
    %s524 = ssub.s32 %s29, %s36
    %p525 = scmp.eq.s32.totalorder %s524, 0
    %s527 = sadd.s32 %s526, 1
    %s528 = scalar_select %p525, %s526, %s527
    %p531 = pneg %p525
    %p532 = scmp.eq.s32.totalorder %s29, 1
    %p533 = por %p531, %p532
    %p534 = scmp.ne.s32.totalorder %s526, %s529
    %p535 = scmp.eq.s32.totalorder %s29, 0
    %p536 = por %p534, %p535
    %p537 = scmp.ne.s32.totalorder %s526, %s529
    %p538 = scmp.eq.s32.totalorder %s34, 1
    %p539 = por %p537, %p538
    %p540 = scmp.ne.s32.totalorder %s529, %s530
    %p541 = scmp.eq.s32.totalorder %s34, 0
    %p542 = por %p540, %p541
    %p543 = scmp.ne.s32.totalorder %s529, %s530
    %p544 = scmp.eq.s32.totalorder %s35, 1
    %p545 = por %p543, %p544
    %p547 = scmp.ne.s32.totalorder %s530, %s546
    %p548 = scmp.eq.s32.totalorder %s35, 0
    %p549 = por %p547, %p548
    %p550 = scmp.le.s32.totalorder 1, %s29
    %p551 = scmp.lt.s32.totalorder %s29, 3
    %p552 = pnand %p550, %p551
    %p553 = pneg %p552
    // Predicated region
    $region9: #{tpu_custom_call.1} parent=5 // pred_check
      _
    $region10: #{tpu_custom_call.1} parent=5 // pred_check_branch
      %555 = sbr.rel (%p552) target = $region12
    $region11: #{tpu_custom_call.1} parent=5 // pred_region
      %s556 = ssub.s32 %s29, 1
      // Predicated region
      $region13: #{tpu_custom_call.1} parent=11 // pred_check
        %p557 = pneg %p102
      $region14: #{tpu_custom_call.1} parent=11 // pred_check_branch
        %559 = sbr.rel (%p557) target = $region16
      $region15: #{tpu_custom_call.1} parent=11 // pred_region
        _
      $region16: #{tpu_custom_call.1} parent=11 // pred_fallthru
        _
      // Predicated region
      $region17: #{tpu_custom_call.1} parent=11 // pred_check
        %p560 = pneg %p123
      $region18: #{tpu_custom_call.1} parent=11 // pred_check_branch
        %562 = sbr.rel (%p560) target = $region20
      $region19: #{tpu_custom_call.1} parent=11 // pred_region
        _
      $region20: #{tpu_custom_call.1} parent=11 // pred_fallthru
        _
      // Predicated region
      $region21: #{tpu_custom_call.1} parent=11 // pred_check
        %p563 = pneg %p144
      $region22: #{tpu_custom_call.1} parent=11 // pred_check_branch
        %565 = sbr.rel (%p563) target = $region24
      $region23: #{tpu_custom_call.1} parent=11 // pred_region
        _
      $region24: #{tpu_custom_call.1} parent=11 // pred_fallthru
        _
      // Predicated region
      $region25: #{tpu_custom_call.1} parent=11 // pred_check
        %p566 = pneg %p165
      $region26: #{tpu_custom_call.1} parent=11 // pred_check_branch
        %568 = sbr.rel (%p566) target = $region28
      $region27: #{tpu_custom_call.1} parent=11 // pred_region
        _
      $region28: #{tpu_custom_call.1} parent=11 // pred_fallthru
        _
      // Predicated region
      $region29: #{tpu_custom_call.1} parent=11 // pred_check
        %p569 = pneg %p186
      $region30: #{tpu_custom_call.1} parent=11 // pred_check_branch
        %571 = sbr.rel (%p569) target = $region32
      $region31: #{tpu_custom_call.1} parent=11 // pred_region
        _
      $region32: #{tpu_custom_call.1} parent=11 // pred_fallthru
        _
      // Predicated region
      $region33: #{tpu_custom_call.1} parent=11 // pred_check
        %p572 = pneg %p207
      $region34: #{tpu_custom_call.1} parent=11 // pred_check_branch
        %574 = sbr.rel (%p572) target = $region36
      $region35: #{tpu_custom_call.1} parent=11 // pred_region
        _
      $region36: #{tpu_custom_call.1} parent=11 // pred_fallthru
        _
      // Predicated region
      $region37: #{tpu_custom_call.1} parent=11 // pred_check
        %p575 = pneg %p228
      $region38: #{tpu_custom_call.1} parent=11 // pred_check_branch
        %577 = sbr.rel (%p575) target = $region40
      $region39: #{tpu_custom_call.1} parent=11 // pred_region
        _
      $region40: #{tpu_custom_call.1} parent=11 // pred_fallthru
        _
      // Predicated region
      $region41: #{tpu_custom_call.1} parent=11 // pred_check
        %p578 = pneg %p249
      $region42: #{tpu_custom_call.1} parent=11 // pred_check_branch
        %580 = sbr.rel (%p578) target = $region44
      $region43: #{tpu_custom_call.1} parent=11 // pred_region
        _
      $region44: #{tpu_custom_call.1} parent=11 // pred_fallthru
        _
      // Predicated region
      $region45: #{tpu_custom_call.1} parent=11 // pred_check
        %p581 = pneg %p270
      $region46: #{tpu_custom_call.1} parent=11 // pred_check_branch
        %583 = sbr.rel (%p581) target = $region48
      $region47: #{tpu_custom_call.1} parent=11 // pred_region
        _
      $region48: #{tpu_custom_call.1} parent=11 // pred_fallthru
        _
      // Predicated region
      $region49: #{tpu_custom_call.1} parent=11 // pred_check
        %p584 = pneg %p291
      $region50: #{tpu_custom_call.1} parent=11 // pred_check_branch
        %586 = sbr.rel (%p584) target = $region52
      $region51: #{tpu_custom_call.1} parent=11 // pred_region
        _
      $region52: #{tpu_custom_call.1} parent=11 // pred_fallthru
        _
      // Predicated region
      $region53: #{tpu_custom_call.1} parent=11 // pred_check
        %p587 = pneg %p312
      $region54: #{tpu_custom_call.1} parent=11 // pred_check_branch
        %589 = sbr.rel (%p587) target = $region56
      $region55: #{tpu_custom_call.1} parent=11 // pred_region
        _
      $region56: #{tpu_custom_call.1} parent=11 // pred_fallthru
        _
      // Predicated region
      $region57: #{tpu_custom_call.1} parent=11 // pred_check
        %p590 = pneg %p333
      $region58: #{tpu_custom_call.1} parent=11 // pred_check_branch
        %592 = sbr.rel (%p590) target = $region60
      $region59: #{tpu_custom_call.1} parent=11 // pred_region
        _
      $region60: #{tpu_custom_call.1} parent=11 // pred_fallthru
        _
      // Predicated region
      $region61: #{tpu_custom_call.1} parent=11 // pred_check
        %p593 = pneg %p354
      $region62: #{tpu_custom_call.1} parent=11 // pred_check_branch
        %595 = sbr.rel (%p593) target = $region64
      $region63: #{tpu_custom_call.1} parent=11 // pred_region
        _
      $region64: #{tpu_custom_call.1} parent=11 // pred_fallthru
        _
      // Predicated region
      $region65: #{tpu_custom_call.1} parent=11 // pred_check
        %p596 = pneg %p375
      $region66: #{tpu_custom_call.1} parent=11 // pred_check_branch
        %598 = sbr.rel (%p596) target = $region68
      $region67: #{tpu_custom_call.1} parent=11 // pred_region
        _
      $region68: #{tpu_custom_call.1} parent=11 // pred_fallthru
        _
      // Predicated region
      $region69: #{tpu_custom_call.1} parent=11 // pred_check
        %p599 = pneg %p396
      $region70: #{tpu_custom_call.1} parent=11 // pred_check_branch
        %601 = sbr.rel (%p599) target = $region72
      $region71: #{tpu_custom_call.1} parent=11 // pred_region
        _
      $region72: #{tpu_custom_call.1} parent=11 // pred_fallthru
        _
      // Predicated region
      $region73: #{tpu_custom_call.1} parent=11 // pred_check
        %p602 = pneg %p417
      $region74: #{tpu_custom_call.1} parent=11 // pred_check_branch
        %604 = sbr.rel (%p602) target = $region76
      $region75: #{tpu_custom_call.1} parent=11 // pred_region
        _
      $region76: #{tpu_custom_call.1} parent=11 // pred_fallthru
        _
      // Predicated region
      $region77: #{tpu_custom_call.1} parent=11 // pred_check
        %p605 = pneg %p438
      $region78: #{tpu_custom_call.1} parent=11 // pred_check_branch
        %607 = sbr.rel (%p605) target = $region80
      $region79: #{tpu_custom_call.1} parent=11 // pred_region
        _
      $region80: #{tpu_custom_call.1} parent=11 // pred_fallthru
        _
    $region12: #{tpu_custom_call.1} parent=5 // pred_fallthru
      _
    %p608 = scmp.lt.s32.totalorder %s29, 2
    // Predicated region
    $region81: #{tpu_custom_call.1} parent=5 // pred_check
      %p609 = pneg %p608
    $region82: #{tpu_custom_call.1} parent=5 // pred_check_branch
      %611 = sbr.rel (%p609) target = $region84
    $region83: #{tpu_custom_call.1} parent=5 // pred_region
      // Predicated region
      $region85: #{tpu_custom_call.1} parent=83 // pred_check
        %p612 = pneg %p49
      $region86: #{tpu_custom_call.1} parent=83 // pred_check_branch
        %614 = sbr.rel (%p612) target = $region88
      $region87: #{tpu_custom_call.1} parent=83 // pred_region
        %p615 = scmp.lt.s32.totalorder %s29, 1
        %s616 = scalar_select %p615, %s29, 1
        %s617 = smul.addr %s616, 3
        %s618 = smul.addr %s617, 8
        %s619 = scalar_lea.vmem %s0, %s618
      $region88: #{tpu_custom_call.1} parent=83 // pred_fallthru
        _
      // Predicated region
      $region89: #{tpu_custom_call.1} parent=83 // pred_check
        %p620 = pneg %p75
      $region90: #{tpu_custom_call.1} parent=83 // pred_check_branch
        %622 = sbr.rel (%p620) target = $region92
      $region91: #{tpu_custom_call.1} parent=83 // pred_region
        %p623 = scmp.lt.s32.totalorder %s29, 1
        %s624 = scalar_select %p623, %s29, 1
        %s625 = smul.addr %s624, 2
        %s626 = smul.addr %s625, 8
        %s627 = scalar_lea.vmem %s1, %s626
      $region92: #{tpu_custom_call.1} parent=83 // pred_fallthru
        _
    $region84: #{tpu_custom_call.1} parent=5 // pred_fallthru
      _
    %p628 = scmp.le.s32.totalorder 1, %s29
    %p629 = scmp.lt.s32.totalorder %s29, 3
    %p630 = pnand %p628, %p629
    %p631 = pneg %p630
    // Predicated region
    $region93: #{tpu_custom_call.1} parent=5 // pred_check
      _
    $region94: #{tpu_custom_call.1} parent=5 // pred_check_branch
      %633 = sbr.rel (%p630) target = $region96
    $region95: #{tpu_custom_call.1} parent=5 // pred_region
      %s634 = ssub.s32 %s29, 1
      %p635 = scmp.lt.s32.totalorder %s34, 1
      %s636 = scalar_select %p635, %s34, 1
      %s637 = smul.addr %s636, 3
      %s638 = smul.addr %s637, 8
      %s639 = scalar_lea.vmem %s0, %s638
      %p640 = pneg %p55
      %p641 = pneg %p52
      %p642 = scmp.lt.s32.totalorder %s34, 1
      %s643 = scalar_select %p642, %s34, 1
      %s644 = smul.addr %s643, 2
      %s645 = smul.addr %s644, 8
      %s646 = scalar_lea.vmem %s1, %s645
      %p647 = pneg %p81
      %p648 = pneg %p78
      %p649 = pneg %p102
      %p650 = pneg %p99
      %p651 = pneg %p123
      %p652 = pneg %p120
      %p653 = pneg %p144
      %p654 = pneg %p141
      %p655 = pneg %p165
      %p656 = pneg %p162
      %p657 = pneg %p186
      %p658 = pneg %p183
      %p659 = pneg %p207
      %p660 = pneg %p204
      %p661 = pneg %p228
      %p662 = pneg %p225
      %p663 = pneg %p249
      %p664 = pneg %p246
      %p665 = pneg %p270
      %p666 = pneg %p267
      %p667 = pneg %p291
      %p668 = pneg %p288
      %p669 = pneg %p312
      %p670 = pneg %p309
      %p671 = pneg %p333
      %p672 = pneg %p330
      %p673 = pneg %p354
      %p674 = pneg %p351
      %p675 = pneg %p375
      %p676 = pneg %p372
      %p677 = pneg %p396
      %p678 = pneg %p393
      %p679 = pneg %p417
      %p680 = pneg %p414
      %p681 = pneg %p438
      %p682 = pneg %p435
      %p683 = pneg %p464
      %p684 = pneg %p461
      %p685 = scmp.lt.s32.totalorder %s34, 1
      %s686 = scalar_select %p685, %s34, 1
      %s687 = smul.addr %s686, 3
      %s688 = smul.addr %s687, 8
      %s689 = scalar_lea.vmem %s19, %s688
      %p690 = pneg %p490
      %p691 = pneg %p487
      %p692 = scmp.lt.s32.totalorder %s34, 1
      %s693 = scalar_select %p692, %s34, 1
      %s694 = smul.addr %s693, 32
      %s695 = smul.addr %s694, 8
      %s696 = scalar_lea.vmem %s20, %s695
      %p697 = pneg %p516
      %p698 = pneg %p513
      %p699 = scmp.lt.s32.totalorder %s34, 1
      %s700 = scalar_select %p699, %s34, 1
      %s701 = smul.addr %s700, 32
      %s702 = smul.addr %s701, 8
      %s703 = scalar_lea.vmem %s21, %s702
      %p704 = pneg %p542
      %p705 = pneg %p539
      %p706 = scmp.lt.s32.totalorder %s34, 1
      %s707 = scalar_select %p706, %s34, 1
      %s708 = scalar_lea.vmem %s22, %s707
      %p709 = scmp.lt.s32.totalorder %s34, 1
      %s710 = scalar_select %p709, %s34, 1
      %s711 = smul.addr %s710, 3
      %s712 = smul.addr %s711, 8
      %s713 = scalar_lea.vmem %s0, %s712
      %p714 = scmp.lt.s32.totalorder %s34, 1
      %s715 = scalar_select %p714, %s34, 1
      %s716 = smul.addr %s715, 2
      %s717 = smul.addr %s716, 8
      %s718 = scalar_lea.vmem %s1, %s717
      %p719 = scmp.lt.s32.totalorder %s34, 1
      %s720 = scalar_select %p719, %s34, 1
      %s721 = smul.addr %s720, 3
      %s722 = smul.addr %s721, 8
      %s723 = scalar_lea.vmem %s19, %s722
      %p724 = scmp.lt.s32.totalorder %s34, 1
      %s725 = scalar_select %p724, %s34, 1
      %s726 = smul.addr %s725, 32
      %s727 = smul.addr %s726, 8
      %s728 = scalar_lea.vmem %s20, %s727
      %p729 = scmp.lt.s32.totalorder %s34, 1
      %s730 = scalar_select %p729, %s34, 1
      %s731 = smul.addr %s730, 32
      %s732 = smul.addr %s731, 8
      %s733 = scalar_lea.vmem %s21, %s732
      %p734 = scmp.lt.s32.totalorder %s34, 1
      %s735 = scalar_select %p734, %s34, 1
      %s736 = scalar_lea.vmem %s22, %s735
      %v737 = vld [vmem:[%s713] sm:$0xff]
      %v738 = vld [vmem:[%s713 + $0x8] sm:$0xff]
      %v739 = vld [vmem:[%s713 + $0x10] sm:$0x1]
      %v740 = vld [vmem:[%s2] sm:$0xff]
      %v741 = vld [vmem:[%s2 + $0x8] sm:$0xff]
      %v742 = vld [vmem:[%s2 + $0x10] sm:$0xff]
      %v743 = vld [vmem:[%s2 + $0x18] sm:$0xff]
      %v744 = vld [vmem:[%s2 + $0x20] sm:$0xff]
      %v745 = vld [vmem:[%s2 + $0x28] sm:$0xff]
      %v746 = vld [vmem:[%s2 + $0x30] sm:$0x1]
      %v747 = vld [vmem:[%s3] sm:$0x1]
      %v749 = vperm.slane %v747, 0
      %vm751 = vcmask 400384
      %v753 = vsel %vm751, %v737, 0
      %v756 = vsel %vm751, %v738, 0
      %v759 = vsel %vm751, %v739, 0
      %vm761 = vcmask 1040384
      %v763 = vsel %vm761, %v746, 0
      %765 = vmatpush.msra.mxu0 0.0
      %766 = vmatpush.msra.mxu0 0.0
      %767 = vmatpush.msra.mxu0 0.0
      %768 = vmatpush.msra.mxu0 0.0
      %769 = vmatpush.msra.mxu0 0.0
      %770 = vmatpush.msra.mxu0 0.0
      %771 = vmatpush.msra.mxu0 0.0
      %772 = vmatpush.msra.mxu0 0.0
      %773 = vmatpush.msra.mxu0 0.0
      %774 = vmatpush.msra.mxu0 %v763
      %775 = vmatpush.msra.mxu0 %v745
      %776 = vmatpush.msra.mxu0 %v744
      %777 = vmatpush.msra.mxu0 %v743
      %778 = vmatpush.msra.mxu0 %v742
      %779 = vmatpush.msra.mxu0 %v741
      %780 = vmatpush.msra.mxu0 %v740
      %781 = vmatmul.f32.gmra.mxu0 %v753
      %v782 = vpop.f32.mrf.mxu0
      %v783 = vadd.f32 %v749, %v782
      %784 = vmatmul.f32.gmra.mxu0 %v756
      %v785 = vpop.f32.mrf.mxu0
      %v786 = vadd.f32 %v749, %v785
      %787 = vmatmul.f32.gmra.mxu0 %v759
      %v788 = vpop.f32.mrf.mxu0
      %v789 = vadd.f32 %v749, %v788
      %790 = vdwg.mxu0
      %v791 = vld [vmem:[%s4] sm:$0x1]
      %v792 = vld [vmem:[%s5] sm:$0x1]
      %vm793 = vcmask 261120
      %v794 = vsel %vm793, %v783, 0.0
      %795 = vadd.xlane.f32.xlu0 %v794
      %v796 = vpop.xlane.xlu0 %795
      %v797 = vsel %vm793, %v786, 0.0
      %798 = vadd.xlane.f32.xlu0 %v797
      %v799 = vpop.xlane.xlu0 %798
      %vm800 = vcmask 253952
      %v801 = vsel %vm800, %v789, 0.0
      %802 = vadd.xlane.f32.xlu0 %v801
      %v803 = vpop.xlane.xlu0 %802
      %v804 = vrcp.pop 32.0
      %v805 = vmul.f32 32.0, %v804
      %v806 = vsub.f32 1.0, %v805
      %v807 = vmul.f32 %v804, %v806
      %v808 = vadd.f32 %v804, %v807
      %vm809 = vweird.f32 %v804
      %v810 = vsel %vm809, %v804, %v808
      %v811 = vmul.f32 %v796, %v810
      %v812 = vmul.f32 %v799, %v810
      %v813 = vmul.f32 %v803, %v810
      %v814 = vsub.f32 %v783, %v811
      %v815 = vsub.f32 %v786, %v812
      %v816 = vsub.f32 %v789, %v813
      %v817 = vmul.f32 %v814, %v814
      %v818 = vmul.f32 %v815, %v815
      %v819 = vmul.f32 %v816, %v816
      %v820 = vsel %vm793, %v817, 0.0
      %821 = vadd.xlane.f32.xlu0 %v820
      %v822 = vpop.xlane.xlu0 %821
      %v823 = vsel %vm793, %v818, 0.0
      %824 = vadd.xlane.f32.xlu0 %v823
      %v825 = vpop.xlane.xlu0 %824
      %v826 = vsel %vm800, %v819, 0.0
      %827 = vadd.xlane.f32.xlu0 %v826
      %v828 = vpop.xlane.xlu0 %827
      %v829 = vmul.f32 %v822, %v810
      %v830 = vmul.f32 %v825, %v810
      %v831 = vmul.f32 %v828, %v810
      %v832 = vadd.f32 %v829, 1e-05
      %v833 = vadd.f32 %v830, 1e-05
      %v834 = vadd.f32 %v831, 1e-05
      %v835 = vrsqrt.pop %v832
      %v836 = vmul.f32 %v835, %v832
      %v837 = vmul.f32 %v836, %v835
      %v838 = vmul.f32 0.5, %v837
      %v839 = vsub.f32 1.5, %v838
      %v840 = vmul.f32 %v835, %v839
      %vm841 = vweird.f32 %v832
      %vm842 = vweird.f32 %v835
      %vm843 = vmor %vm841, %vm842
      %v844 = vsel %vm843, %v835, %v840
      %v845 = vrsqrt.pop %v833
      %v846 = vmul.f32 %v845, %v833
      %v847 = vmul.f32 %v846, %v845
      %v848 = vmul.f32 0.5, %v847
      %v849 = vsub.f32 1.5, %v848
      %v850 = vmul.f32 %v845, %v849
      %vm851 = vweird.f32 %v833
      %vm852 = vweird.f32 %v845
      %vm853 = vmor %vm851, %vm852
      %v854 = vsel %vm853, %v845, %v850
      %v855 = vrsqrt.pop %v834
      %v856 = vmul.f32 %v855, %v834
      %v857 = vmul.f32 %v856, %v855
      %v858 = vmul.f32 0.5, %v857
      %v859 = vsub.f32 1.5, %v858
      %v860 = vmul.f32 %v855, %v859
      %vm861 = vweird.f32 %v834
      %vm862 = vweird.f32 %v855
      %vm863 = vmor %vm861, %vm862
      %v864 = vsel %vm863, %v855, %v860
      %v865 = vmul.f32 %v814, %v844
      %v866 = vmul.f32 %v815, %v854
      %v867 = vmul.f32 %v816, %v864
      %v868 = vperm.slane %v791, 0
      %v869 = vmul.f32 %v865, %v868
      %v870 = vmul.f32 %v866, %v868
      %v871 = vmul.f32 %v867, %v868
      %v872 = vperm.slane %v792, 0
      %v873 = vadd.f32 %v869, %v872
      %v874 = vadd.f32 %v870, %v872
      %v875 = vadd.f32 %v871, %v872
      %v876 = vld [vmem:[%s6] sm:$0xff]
      %v877 = vld [vmem:[%s6 + $0x8] sm:$0xff]
      %v878 = vld [vmem:[%s6 + $0x10] sm:$0xff]
      %v879 = vld [vmem:[%s6 + $0x18] sm:$0xff]
      %v880 = vld [vmem:[%s7] sm:$0x1]
      %v881 = vperm.slane %v880, 0
      %v883 = vsel %vm793, %v873, 0
      %v886 = vsel %vm793, %v874, 0
      %v889 = vsel %vm793, %v875, 0
      %891 = vmatpush.msra.mxu0 0.0
      %892 = vmatpush.msra.mxu0 0.0
      %893 = vmatpush.msra.mxu0 0.0
      %894 = vmatpush.msra.mxu0 0.0
      %895 = vmatpush.msra.mxu0 0.0
      %896 = vmatpush.msra.mxu0 0.0
      %897 = vmatpush.msra.mxu0 0.0
      %898 = vmatpush.msra.mxu0 0.0
      %899 = vmatpush.msra.mxu0 0.0
      %900 = vmatpush.msra.mxu0 0.0
      %901 = vmatpush.msra.mxu0 0.0
      %902 = vmatpush.msra.mxu0 0.0
      %903 = vmatpush.msra.mxu0 %v879
      %904 = vmatpush.msra.mxu0 %v878
      %905 = vmatpush.msra.mxu0 %v877
      %906 = vmatpush.msra.mxu0 %v876
      %907 = vmatmul.f32.gmra.mxu0 %v883
      %v908 = vpop.f32.mrf.mxu0
      %v909 = vadd.f32 %v881, %v908
      %910 = vmatmul.f32.gmra.mxu0 %v886
      %v911 = vpop.f32.mrf.mxu0
      %v912 = vadd.f32 %v881, %v911
      %913 = vmatmul.f32.gmra.mxu0 %v889
      %v914 = vpop.f32.mrf.mxu0
      %v915 = vadd.f32 %v881, %v914
      %916 = vdwg.mxu0
      %920 = vrot.lane.b32.xlu0 %v909, 96
      %v921 = vpop.permute.xlu0 %920
      %922 = vrot.lane.b32.xlu0 %v912, 96
      %v923 = vpop.permute.xlu0 %922
      %924 = vrot.lane.b32.xlu0 %v915, 96
      %v925 = vpop.permute.xlu0 %924
      %vm926 = vcmask 64512
      %v927 = vsel %vm926, %v909, 0
      %v929 = vsel %vm926, %v912, 0
      %v931 = vsel %vm926, %v915, 0
      %v933 = vsel %vm926, %v921, 0
      %v935 = vsel %vm926, %v923, 0
      %v937 = vsel %vm926, %v925, 0
      %939 = vmatpush.xpose.msra.mxu0 0.0
      %940 = vmatpush.xpose.msra.mxu0 0.0
      %941 = vmatpush.xpose.msra.mxu0 0.0
      %942 = vmatpush.xpose.msra.mxu0 0.0
      %943 = vmatpush.xpose.msra.mxu0 0.0
      %944 = vmatpush.xpose.msra.mxu0 0.0
      %945 = vmatpush.xpose.msra.mxu0 0.0
      %946 = vmatpush.xpose.msra.mxu0 0.0
      %947 = vmatpush.xpose.msra.mxu0 0.0
      %948 = vmatpush.xpose.msra.mxu0 0.0
      %949 = vmatpush.xpose.msra.mxu0 0.0
      %950 = vmatpush.xpose.msra.mxu0 0.0
      %951 = vmatpush.xpose.msra.mxu0 0.0
      %952 = vmatpush.xpose.msra.mxu0 %v937
      %953 = vmatpush.xpose.msra.mxu0 %v935
      %954 = vmatpush.xpose.msra.mxu0 %v933
      %955 = vmatmul.f32.gmra.mxu0 %v927
      %v956 = vpop.f32.mrf.mxu0
      %v957 = vadd.f32 0.0, %v956
      %958 = vmatmul.f32.gmra.mxu0 %v929
      %v959 = vpop.f32.mrf.mxu0
      %v960 = vadd.f32 0.0, %v959
      %961 = vmatmul.f32.gmra.mxu0 %v931
      %v962 = vpop.f32.mrf.mxu0
      %v963 = vadd.f32 0.0, %v962
      %964 = vdwg.mxu0
      %v965 = vmul.f32 %v957, 0.35355338
      %v966 = vmul.f32 %v960, 0.35355338
      %v967 = vmul.f32 %v963, 0.35355338
      %vm968 = vcmask 138240
      %v969 = vsel %vm968, %v965, -inf
      %970 = vmax.xlane.f32.xlu0 %v969
      %v971 = vpop.xlane.xlu0 %970
      %v972 = vsel %vm968, %v966, -inf
      %973 = vmax.xlane.f32.xlu0 %v972
      %v974 = vpop.xlane.xlu0 %973
      %vm975 = vcmask 131072
      %v976 = vsel %vm975, %v967, -inf
      %977 = vmax.xlane.f32.xlu0 %v976
      %v978 = vpop.xlane.xlu0 %977
      %v979 = vsub.f32 %v965, %v971
      %v980 = vsub.f32 %v966, %v974
      %v981 = vsub.f32 %v967, %v978
      %v982 = vmul.f32 %v979, 1.442695
      %v983 = vpow.pop %v982
      %v984 = vmul.f32 %v980, 1.442695
      %v985 = vpow.pop %v984
      %v986 = vmul.f32 %v981, 1.442695
      %v987 = vpow.pop %v986
      %v988 = vsel %vm968, %v983, 0.0
      %989 = vadd.xlane.f32.xlu0 %v988
      %v990 = vpop.xlane.xlu0 %989
      %v991 = vsel %vm968, %v985, 0.0
      %992 = vadd.xlane.f32.xlu0 %v991
      %v993 = vpop.xlane.xlu0 %992
      %v994 = vsel %vm975, %v987, 0.0
      %995 = vadd.xlane.f32.xlu0 %v994
      %v996 = vpop.xlane.xlu0 %995
      %v997 = vrcp.pop %v990
      %v998 = vrcp.pop %v993
      %v999 = vrcp.pop %v996
      %v1000 = vmul.f32 %v983, %v997
      %v1001 = vmul.f32 %v985, %v998
      %v1002 = vmul.f32 %v987, %v999
      %1003 = vrot.lane.b32.xlu0 %v909, 64
      %v1004 = vpop.permute.xlu0 %1003
      %1005 = vrot.lane.b32.xlu0 %v912, 64
      %v1006 = vpop.permute.xlu0 %1005
      %1007 = vrot.lane.b32.xlu0 %v915, 64
      %v1008 = vpop.permute.xlu0 %1007
      %v1012 = vsel %vm968, %v1000, 0
      %v1015 = vsel %vm968, %v1001, 0
      %v1018 = vsel %vm968, %v1002, 0
      %v1020 = vsel %vm761, %v1008, 0
      %1022 = vmatpush.msra.mxu0 0.0
      %1023 = vmatpush.msra.mxu0 0.0
      %1024 = vmatpush.msra.mxu0 0.0
      %1025 = vmatpush.msra.mxu0 0.0
      %1026 = vmatpush.msra.mxu0 0.0
      %1027 = vmatpush.msra.mxu0 0.0
      %1028 = vmatpush.msra.mxu0 0.0
      %1029 = vmatpush.msra.mxu0 0.0
      %1030 = vmatpush.msra.mxu0 0.0
      %1031 = vmatpush.msra.mxu0 0.0
      %1032 = vmatpush.msra.mxu0 0.0
      %1033 = vmatpush.msra.mxu0 0.0
      %1034 = vmatpush.msra.mxu0 0.0
      %1035 = vmatpush.msra.mxu0 %v1020
      %1036 = vmatpush.msra.mxu0 %v1006
      %1037 = vmatpush.msra.mxu0 %v1004
      %1038 = vmatmul.f32.gmra.mxu0 %v1012
      %v1039 = vpop.f32.mrf.mxu0
      %v1040 = vadd.f32 0.0, %v1039
      %1041 = vmatmul.f32.gmra.mxu0 %v1015
      %v1042 = vpop.f32.mrf.mxu0
      %v1043 = vadd.f32 0.0, %v1042
      %1044 = vmatmul.f32.gmra.mxu0 %v1018
      %v1045 = vpop.f32.mrf.mxu0
      %v1046 = vadd.f32 0.0, %v1045
      %1047 = vdwg.mxu0
      %1048 = vrot.lane.b32.xlu0 %v909, 120
      %v1049 = vpop.permute.xlu0 %1048
      %1050 = vrot.lane.b32.xlu0 %v912, 120
      %v1051 = vpop.permute.xlu0 %1050
      %1052 = vrot.lane.b32.xlu0 %v915, 120
      %v1053 = vpop.permute.xlu0 %1052
      %1054 = vrot.lane.b32.xlu0 %v909, 88
      %v1055 = vpop.permute.xlu0 %1054
      %1056 = vrot.lane.b32.xlu0 %v912, 88
      %v1057 = vpop.permute.xlu0 %1056
      %1058 = vrot.lane.b32.xlu0 %v915, 88
      %v1059 = vpop.permute.xlu0 %1058
      %v1060 = vsel %vm926, %v1049, 0
      %v1062 = vsel %vm926, %v1051, 0
      %v1064 = vsel %vm926, %v1053, 0
      %v1066 = vsel %vm926, %v1055, 0
      %v1068 = vsel %vm926, %v1057, 0
      %v1070 = vsel %vm926, %v1059, 0
      %1072 = vmatpush.xpose.msra.mxu0 0.0
      %1073 = vmatpush.xpose.msra.mxu0 0.0
      %1074 = vmatpush.xpose.msra.mxu0 0.0
      %1075 = vmatpush.xpose.msra.mxu0 0.0
      %1076 = vmatpush.xpose.msra.mxu0 0.0
      %1077 = vmatpush.xpose.msra.mxu0 0.0
      %1078 = vmatpush.xpose.msra.mxu0 0.0
      %1079 = vmatpush.xpose.msra.mxu0 0.0
      %1080 = vmatpush.xpose.msra.mxu0 0.0
      %1081 = vmatpush.xpose.msra.mxu0 0.0
      %1082 = vmatpush.xpose.msra.mxu0 0.0
      %1083 = vmatpush.xpose.msra.mxu0 0.0
      %1084 = vmatpush.xpose.msra.mxu0 0.0
      %1085 = vmatpush.xpose.msra.mxu0 %v1070
      %1086 = vmatpush.xpose.msra.mxu0 %v1068
      %1087 = vmatpush.xpose.msra.mxu0 %v1066
      %1088 = vmatmul.f32.gmra.mxu0 %v1060
      %v1089 = vpop.f32.mrf.mxu0
      %v1090 = vadd.f32 0.0, %v1089
      %1091 = vmatmul.f32.gmra.mxu0 %v1062
      %v1092 = vpop.f32.mrf.mxu0
      %v1093 = vadd.f32 0.0, %v1092
      %1094 = vmatmul.f32.gmra.mxu0 %v1064
      %v1095 = vpop.f32.mrf.mxu0
      %v1096 = vadd.f32 0.0, %v1095
      %1097 = vdwg.mxu0
      %v1098 = vmul.f32 %v1090, 0.35355338
      %v1099 = vmul.f32 %v1093, 0.35355338
      %v1100 = vmul.f32 %v1096, 0.35355338
      %v1101 = vsel %vm968, %v1098, -inf
      %1102 = vmax.xlane.f32.xlu0 %v1101
      %v1103 = vpop.xlane.xlu0 %1102
      %v1104 = vsel %vm968, %v1099, -inf
      %1105 = vmax.xlane.f32.xlu0 %v1104
      %v1106 = vpop.xlane.xlu0 %1105
      %v1107 = vsel %vm975, %v1100, -inf
      %1108 = vmax.xlane.f32.xlu0 %v1107
      %v1109 = vpop.xlane.xlu0 %1108
      %v1110 = vsub.f32 %v1098, %v1103
      %v1111 = vsub.f32 %v1099, %v1106
      %v1112 = vsub.f32 %v1100, %v1109
      %v1113 = vmul.f32 %v1110, 1.442695
      %v1114 = vpow.pop %v1113
      %v1115 = vmul.f32 %v1111, 1.442695
      %v1116 = vpow.pop %v1115
      %v1117 = vmul.f32 %v1112, 1.442695
      %v1118 = vpow.pop %v1117
      %v1119 = vsel %vm968, %v1114, 0.0
      %1120 = vadd.xlane.f32.xlu0 %v1119
      %v1121 = vpop.xlane.xlu0 %1120
      %v1122 = vsel %vm968, %v1116, 0.0
      %1123 = vadd.xlane.f32.xlu0 %v1122
      %v1124 = vpop.xlane.xlu0 %1123
      %v1125 = vsel %vm975, %v1118, 0.0
      %1126 = vadd.xlane.f32.xlu0 %v1125
      %v1127 = vpop.xlane.xlu0 %1126
      %v1128 = vrcp.pop %v1121
      %v1129 = vrcp.pop %v1124
      %v1130 = vrcp.pop %v1127
      %v1131 = vmul.f32 %v1114, %v1128
      %v1132 = vmul.f32 %v1116, %v1129
      %v1133 = vmul.f32 %v1118, %v1130
      %1134 = vrot.lane.b32.xlu0 %v909, 56
      %v1135 = vpop.permute.xlu0 %1134
      %1136 = vrot.lane.b32.xlu0 %v912, 56
      %v1137 = vpop.permute.xlu0 %1136
      %1138 = vrot.lane.b32.xlu0 %v915, 56
      %v1139 = vpop.permute.xlu0 %1138
      %v1143 = vsel %vm968, %v1131, 0
      %v1146 = vsel %vm968, %v1132, 0
      %v1149 = vsel %vm968, %v1133, 0
      %v1151 = vsel %vm761, %v1139, 0
      %1153 = vmatpush.msra.mxu0 0.0
      %1154 = vmatpush.msra.mxu0 0.0
      %1155 = vmatpush.msra.mxu0 0.0
      %1156 = vmatpush.msra.mxu0 0.0
      %1157 = vmatpush.msra.mxu0 0.0
      %1158 = vmatpush.msra.mxu0 0.0
      %1159 = vmatpush.msra.mxu0 0.0
      %1160 = vmatpush.msra.mxu0 0.0
      %1161 = vmatpush.msra.mxu0 0.0
      %1162 = vmatpush.msra.mxu0 0.0
      %1163 = vmatpush.msra.mxu0 0.0
      %1164 = vmatpush.msra.mxu0 0.0
      %1165 = vmatpush.msra.mxu0 0.0
      %1166 = vmatpush.msra.mxu0 %v1151
      %1167 = vmatpush.msra.mxu0 %v1137
      %1168 = vmatpush.msra.mxu0 %v1135
      %1169 = vmatmul.f32.gmra.mxu0 %v1143
      %v1170 = vpop.f32.mrf.mxu0
      %v1171 = vadd.f32 0.0, %v1170
      %1172 = vmatmul.f32.gmra.mxu0 %v1146
      %v1173 = vpop.f32.mrf.mxu0
      %v1174 = vadd.f32 0.0, %v1173
      %1175 = vmatmul.f32.gmra.mxu0 %v1149
      %v1176 = vpop.f32.mrf.mxu0
      %v1177 = vadd.f32 0.0, %v1176
      %1178 = vdwg.mxu0
      %1179 = vrot.lane.b32.xlu0 %v909, 112
      %v1180 = vpop.permute.xlu0 %1179
      %1181 = vrot.lane.b32.xlu0 %v912, 112
      %v1182 = vpop.permute.xlu0 %1181
      %1183 = vrot.lane.b32.xlu0 %v915, 112
      %v1184 = vpop.permute.xlu0 %1183
      %1185 = vrot.lane.b32.xlu0 %v909, 80
      %v1186 = vpop.permute.xlu0 %1185
      %1187 = vrot.lane.b32.xlu0 %v912, 80
      %v1188 = vpop.permute.xlu0 %1187
      %1189 = vrot.lane.b32.xlu0 %v915, 80
      %v1190 = vpop.permute.xlu0 %1189
      %v1191 = vsel %vm926, %v1180, 0
      %v1193 = vsel %vm926, %v1182, 0
      %v1195 = vsel %vm926, %v1184, 0
      %v1197 = vsel %vm926, %v1186, 0
      %v1199 = vsel %vm926, %v1188, 0
      %v1201 = vsel %vm926, %v1190, 0
      %1203 = vmatpush.xpose.msra.mxu0 0.0
      %1204 = vmatpush.xpose.msra.mxu0 0.0
      %1205 = vmatpush.xpose.msra.mxu0 0.0
      %1206 = vmatpush.xpose.msra.mxu0 0.0
      %1207 = vmatpush.xpose.msra.mxu0 0.0
      %1208 = vmatpush.xpose.msra.mxu0 0.0
      %1209 = vmatpush.xpose.msra.mxu0 0.0
      %1210 = vmatpush.xpose.msra.mxu0 0.0
      %1211 = vmatpush.xpose.msra.mxu0 0.0
      %1212 = vmatpush.xpose.msra.mxu0 0.0
      %1213 = vmatpush.xpose.msra.mxu0 0.0
      %1214 = vmatpush.xpose.msra.mxu0 0.0
      %1215 = vmatpush.xpose.msra.mxu0 0.0
      %1216 = vmatpush.xpose.msra.mxu0 %v1201
      %1217 = vmatpush.xpose.msra.mxu0 %v1199
      %1218 = vmatpush.xpose.msra.mxu0 %v1197
      %1219 = vmatmul.f32.gmra.mxu0 %v1191
      %v1220 = vpop.f32.mrf.mxu0
      %v1221 = vadd.f32 0.0, %v1220
      %1222 = vmatmul.f32.gmra.mxu0 %v1193
      %v1223 = vpop.f32.mrf.mxu0
      %v1224 = vadd.f32 0.0, %v1223
      %1225 = vmatmul.f32.gmra.mxu0 %v1195
      %v1226 = vpop.f32.mrf.mxu0
      %v1227 = vadd.f32 0.0, %v1226
      %1228 = vdwg.mxu0
      %v1229 = vmul.f32 %v1221, 0.35355338
      %v1230 = vmul.f32 %v1224, 0.35355338
      %v1231 = vmul.f32 %v1227, 0.35355338
      %v1232 = vsel %vm968, %v1229, -inf
      %1233 = vmax.xlane.f32.xlu0 %v1232
      %v1234 = vpop.xlane.xlu0 %1233
      %v1235 = vsel %vm968, %v1230, -inf
      %1236 = vmax.xlane.f32.xlu0 %v1235
      %v1237 = vpop.xlane.xlu0 %1236
      %v1238 = vsel %vm975, %v1231, -inf
      %1239 = vmax.xlane.f32.xlu0 %v1238
      %v1240 = vpop.xlane.xlu0 %1239
      %v1241 = vsub.f32 %v1229, %v1234
      %v1242 = vsub.f32 %v1230, %v1237
      %v1243 = vsub.f32 %v1231, %v1240
      %v1244 = vmul.f32 %v1241, 1.442695
      %v1245 = vpow.pop %v1244
      %v1246 = vmul.f32 %v1242, 1.442695
      %v1247 = vpow.pop %v1246
      %v1248 = vmul.f32 %v1243, 1.442695
      %v1249 = vpow.pop %v1248
      %v1250 = vsel %vm968, %v1245, 0.0
      %1251 = vadd.xlane.f32.xlu0 %v1250
      %v1252 = vpop.xlane.xlu0 %1251
      %v1253 = vsel %vm968, %v1247, 0.0
      %1254 = vadd.xlane.f32.xlu0 %v1253
      %v1255 = vpop.xlane.xlu0 %1254
      %v1256 = vsel %vm975, %v1249, 0.0
      %1257 = vadd.xlane.f32.xlu0 %v1256
      %v1258 = vpop.xlane.xlu0 %1257
      %v1259 = vrcp.pop %v1252
      %v1260 = vrcp.pop %v1255
      %v1261 = vrcp.pop %v1258
      %v1262 = vmul.f32 %v1245, %v1259
      %v1263 = vmul.f32 %v1247, %v1260
      %v1264 = vmul.f32 %v1249, %v1261
      %1265 = vrot.lane.b32.xlu0 %v909, 48
      %v1266 = vpop.permute.xlu0 %1265
      %1267 = vrot.lane.b32.xlu0 %v912, 48
      %v1268 = vpop.permute.xlu0 %1267
      %1269 = vrot.lane.b32.xlu0 %v915, 48
      %v1270 = vpop.permute.xlu0 %1269
      %v1274 = vsel %vm968, %v1262, 0
      %v1277 = vsel %vm968, %v1263, 0
      %v1280 = vsel %vm968, %v1264, 0
      %v1282 = vsel %vm761, %v1270, 0
      %1284 = vmatpush.msra.mxu0 0.0
      %1285 = vmatpush.msra.mxu0 0.0
      %1286 = vmatpush.msra.mxu0 0.0
      %1287 = vmatpush.msra.mxu0 0.0
      %1288 = vmatpush.msra.mxu0 0.0
      %1289 = vmatpush.msra.mxu0 0.0
      %1290 = vmatpush.msra.mxu0 0.0
      %1291 = vmatpush.msra.mxu0 0.0
      %1292 = vmatpush.msra.mxu0 0.0
      %1293 = vmatpush.msra.mxu0 0.0
      %1294 = vmatpush.msra.mxu0 0.0
      %1295 = vmatpush.msra.mxu0 0.0
      %1296 = vmatpush.msra.mxu0 0.0
      %1297 = vmatpush.msra.mxu0 %v1282
      %1298 = vmatpush.msra.mxu0 %v1268
      %1299 = vmatpush.msra.mxu0 %v1266
      %1300 = vmatmul.f32.gmra.mxu0 %v1274
      %v1301 = vpop.f32.mrf.mxu0
      %v1302 = vadd.f32 0.0, %v1301
      %1303 = vmatmul.f32.gmra.mxu0 %v1277
      %v1304 = vpop.f32.mrf.mxu0
      %v1305 = vadd.f32 0.0, %v1304
      %1306 = vmatmul.f32.gmra.mxu0 %v1280
      %v1307 = vpop.f32.mrf.mxu0
      %v1308 = vadd.f32 0.0, %v1307
      %1309 = vdwg.mxu0
      %1310 = vrot.lane.b32.xlu0 %v909, 104
      %v1311 = vpop.permute.xlu0 %1310
      %1312 = vrot.lane.b32.xlu0 %v912, 104
      %v1313 = vpop.permute.xlu0 %1312
      %1314 = vrot.lane.b32.xlu0 %v915, 104
      %v1315 = vpop.permute.xlu0 %1314
      %1316 = vrot.lane.b32.xlu0 %v909, 72
      %v1317 = vpop.permute.xlu0 %1316
      %1318 = vrot.lane.b32.xlu0 %v912, 72
      %v1319 = vpop.permute.xlu0 %1318
      %1320 = vrot.lane.b32.xlu0 %v915, 72
      %v1321 = vpop.permute.xlu0 %1320
      %v1322 = vsel %vm926, %v1311, 0
      %v1324 = vsel %vm926, %v1313, 0
      %v1326 = vsel %vm926, %v1315, 0
      %v1328 = vsel %vm926, %v1317, 0
      %v1330 = vsel %vm926, %v1319, 0
      %v1332 = vsel %vm926, %v1321, 0
      %1334 = vmatpush.xpose.msra.mxu0 0.0
      %1335 = vmatpush.xpose.msra.mxu0 0.0
      %1336 = vmatpush.xpose.msra.mxu0 0.0
      %1337 = vmatpush.xpose.msra.mxu0 0.0
      %1338 = vmatpush.xpose.msra.mxu0 0.0
      %1339 = vmatpush.xpose.msra.mxu0 0.0
      %1340 = vmatpush.xpose.msra.mxu0 0.0
      %1341 = vmatpush.xpose.msra.mxu0 0.0
      %1342 = vmatpush.xpose.msra.mxu0 0.0
      %1343 = vmatpush.xpose.msra.mxu0 0.0
      %1344 = vmatpush.xpose.msra.mxu0 0.0
      %1345 = vmatpush.xpose.msra.mxu0 0.0
      %1346 = vmatpush.xpose.msra.mxu0 0.0
      %1347 = vmatpush.xpose.msra.mxu0 %v1332
      %1348 = vmatpush.xpose.msra.mxu0 %v1330
      %1349 = vmatpush.xpose.msra.mxu0 %v1328
      %1350 = vmatmul.f32.gmra.mxu0 %v1322
      %v1351 = vpop.f32.mrf.mxu0
      %v1352 = vadd.f32 0.0, %v1351
      %1353 = vmatmul.f32.gmra.mxu0 %v1324
      %v1354 = vpop.f32.mrf.mxu0
      %v1355 = vadd.f32 0.0, %v1354
      %1356 = vmatmul.f32.gmra.mxu0 %v1326
      %v1357 = vpop.f32.mrf.mxu0
      %v1358 = vadd.f32 0.0, %v1357
      %1359 = vdwg.mxu0
      %v1360 = vmul.f32 %v1352, 0.35355338
      %v1361 = vmul.f32 %v1355, 0.35355338
      %v1362 = vmul.f32 %v1358, 0.35355338
      %v1363 = vsel %vm968, %v1360, -inf
      %1364 = vmax.xlane.f32.xlu0 %v1363
      %v1365 = vpop.xlane.xlu0 %1364
      %v1366 = vsel %vm968, %v1361, -inf
      %1367 = vmax.xlane.f32.xlu0 %v1366
      %v1368 = vpop.xlane.xlu0 %1367
      %v1369 = vsel %vm975, %v1362, -inf
      %1370 = vmax.xlane.f32.xlu0 %v1369
      %v1371 = vpop.xlane.xlu0 %1370
      %v1372 = vsub.f32 %v1360, %v1365
      %v1373 = vsub.f32 %v1361, %v1368
      %v1374 = vsub.f32 %v1362, %v1371
      %v1375 = vmul.f32 %v1372, 1.442695
      %v1376 = vpow.pop %v1375
      %v1377 = vmul.f32 %v1373, 1.442695
      %v1378 = vpow.pop %v1377
      %v1379 = vmul.f32 %v1374, 1.442695
      %v1380 = vpow.pop %v1379
      %v1381 = vsel %vm968, %v1376, 0.0
      %1382 = vadd.xlane.f32.xlu0 %v1381
      %v1383 = vpop.xlane.xlu0 %1382
      %v1384 = vsel %vm968, %v1378, 0.0
      %1385 = vadd.xlane.f32.xlu0 %v1384
      %v1386 = vpop.xlane.xlu0 %1385
      %v1387 = vsel %vm975, %v1380, 0.0
      %1388 = vadd.xlane.f32.xlu0 %v1387
      %v1389 = vpop.xlane.xlu0 %1388
      %v1390 = vrcp.pop %v1383
      %v1391 = vrcp.pop %v1386
      %v1392 = vrcp.pop %v1389
      %v1393 = vmul.f32 %v1376, %v1390
      %v1394 = vmul.f32 %v1378, %v1391
      %v1395 = vmul.f32 %v1380, %v1392
      %1396 = vrot.lane.b32.xlu0 %v909, 40
      %v1397 = vpop.permute.xlu0 %1396
      %1398 = vrot.lane.b32.xlu0 %v912, 40
      %v1399 = vpop.permute.xlu0 %1398
      %1400 = vrot.lane.b32.xlu0 %v915, 40
      %v1401 = vpop.permute.xlu0 %1400
      %v1405 = vsel %vm968, %v1393, 0
      %v1408 = vsel %vm968, %v1394, 0
      %v1411 = vsel %vm968, %v1395, 0
      %v1413 = vsel %vm761, %v1401, 0
      %1415 = vmatpush.msra.mxu0 0.0
      %1416 = vmatpush.msra.mxu0 0.0
      %1417 = vmatpush.msra.mxu0 0.0
      %1418 = vmatpush.msra.mxu0 0.0
      %1419 = vmatpush.msra.mxu0 0.0
      %1420 = vmatpush.msra.mxu0 0.0
      %1421 = vmatpush.msra.mxu0 0.0
      %1422 = vmatpush.msra.mxu0 0.0
      %1423 = vmatpush.msra.mxu0 0.0
      %1424 = vmatpush.msra.mxu0 0.0
      %1425 = vmatpush.msra.mxu0 0.0
      %1426 = vmatpush.msra.mxu0 0.0
      %1427 = vmatpush.msra.mxu0 0.0
      %1428 = vmatpush.msra.mxu0 %v1413
      %1429 = vmatpush.msra.mxu0 %v1399
      %1430 = vmatpush.msra.mxu0 %v1397
      %1431 = vmatmul.f32.gmra.mxu0 %v1405
      %v1432 = vpop.f32.mrf.mxu0
      %v1433 = vadd.f32 0.0, %v1432
      %1434 = vmatmul.f32.gmra.mxu0 %v1408
      %v1435 = vpop.f32.mrf.mxu0
      %v1436 = vadd.f32 0.0, %v1435
      %1437 = vmatmul.f32.gmra.mxu0 %v1411
      %v1438 = vpop.f32.mrf.mxu0
      %v1439 = vadd.f32 0.0, %v1438
      %1440 = vdwg.mxu0
      %1444 = vrot.lane.b32.xlu0 %v1171, 8
      %v1445 = vpop.permute.xlu0 %1444
      %1446 = vrot.lane.b32.xlu0 %v1174, 8
      %v1447 = vpop.permute.xlu0 %1446
      %1448 = vrot.lane.b32.xlu0 %v1177, 8
      %v1449 = vpop.permute.xlu0 %1448
      %1456 = vrot.lane.b32.xlu0 %v1302, 16
      %v1457 = vpop.permute.xlu0 %1456
      %1458 = vrot.lane.b32.xlu0 %v1305, 16
      %v1459 = vpop.permute.xlu0 %1458
      %1460 = vrot.lane.b32.xlu0 %v1308, 16
      %v1461 = vpop.permute.xlu0 %1460
      %1468 = vrot.lane.b32.xlu0 %v1433, 24
      %v1469 = vpop.permute.xlu0 %1468
      %1470 = vrot.lane.b32.xlu0 %v1436, 24
      %v1471 = vpop.permute.xlu0 %1470
      %1472 = vrot.lane.b32.xlu0 %v1439, 24
      %v1473 = vpop.permute.xlu0 %1472
      %v1477 = vsel %vm926, %v1040, %v1445
      %v1478 = vsel %vm926, %v1043, %v1447
      %v1479 = vsel %vm926, %v1046, %v1449
      %vm1480 = vcmask 130048
      %v1481 = vsel %vm1480, %v1477, %v1457
      %v1482 = vsel %vm1480, %v1478, %v1459
      %v1483 = vsel %vm1480, %v1479, %v1461
      %vm1484 = vcmask 195584
      %v1485 = vsel %vm1484, %v1481, %v1469
      %v1486 = vsel %vm1484, %v1482, %v1471
      %v1487 = vsel %vm1484, %v1483, %v1473
      %v1488 = vld [vmem:[%s8] sm:$0xff]
      %v1489 = vld [vmem:[%s8 + $0x8] sm:$0xff]
      %v1490 = vld [vmem:[%s8 + $0x10] sm:$0xff]
      %v1491 = vld [vmem:[%s8 + $0x18] sm:$0xff]
      %v1492 = vld [vmem:[%s9] sm:$0x1]
      %v1493 = vperm.slane %v1492, 0
      %v1495 = vsel %vm793, %v1485, 0
      %v1498 = vsel %vm793, %v1486, 0
      %v1501 = vsel %vm793, %v1487, 0
      %1503 = vmatpush.msra.mxu0 0.0
      %1504 = vmatpush.msra.mxu0 0.0
      %1505 = vmatpush.msra.mxu0 0.0
      %1506 = vmatpush.msra.mxu0 0.0
      %1507 = vmatpush.msra.mxu0 0.0
      %1508 = vmatpush.msra.mxu0 0.0
      %1509 = vmatpush.msra.mxu0 0.0
      %1510 = vmatpush.msra.mxu0 0.0
      %1511 = vmatpush.msra.mxu0 0.0
      %1512 = vmatpush.msra.mxu0 0.0
      %1513 = vmatpush.msra.mxu0 0.0
      %1514 = vmatpush.msra.mxu0 0.0
      %1515 = vmatpush.msra.mxu0 %v1491
      %1516 = vmatpush.msra.mxu0 %v1490
      %1517 = vmatpush.msra.mxu0 %v1489
      %1518 = vmatpush.msra.mxu0 %v1488
      %1519 = vmatmul.f32.gmra.mxu0 %v1495
      %v1520 = vpop.f32.mrf.mxu0
      %v1521 = vadd.f32 %v1493, %v1520
      %1522 = vmatmul.f32.gmra.mxu0 %v1498
      %v1523 = vpop.f32.mrf.mxu0
      %v1524 = vadd.f32 %v1493, %v1523
      %1525 = vmatmul.f32.gmra.mxu0 %v1501
      %v1526 = vpop.f32.mrf.mxu0
      %v1527 = vadd.f32 %v1493, %v1526
      %1528 = vdwg.mxu0
      %v1529 = vadd.f32 %v783, %v1521
      %v1530 = vadd.f32 %v786, %v1524
      %v1531 = vadd.f32 %v789, %v1527
      %v1532 = vld [vmem:[%s10] sm:$0x1]
      %v1533 = vld [vmem:[%s11] sm:$0x1]
      %v1534 = vsel %vm793, %v1529, 0.0
      %1535 = vadd.xlane.f32.xlu0 %v1534
      %v1536 = vpop.xlane.xlu0 %1535
      %v1537 = vsel %vm793, %v1530, 0.0
      %1538 = vadd.xlane.f32.xlu0 %v1537
      %v1539 = vpop.xlane.xlu0 %1538
      %v1540 = vsel %vm800, %v1531, 0.0
      %1541 = vadd.xlane.f32.xlu0 %v1540
      %v1542 = vpop.xlane.xlu0 %1541
      %v1543 = vmul.f32 %v1536, %v810
      %v1544 = vmul.f32 %v1539, %v810
      %v1545 = vmul.f32 %v1542, %v810
      %v1546 = vsub.f32 %v1529, %v1543
      %v1547 = vsub.f32 %v1530, %v1544
      %v1548 = vsub.f32 %v1531, %v1545
      %v1549 = vmul.f32 %v1546, %v1546
      %v1550 = vmul.f32 %v1547, %v1547
      %v1551 = vmul.f32 %v1548, %v1548
      %v1552 = vsel %vm793, %v1549, 0.0
      %1553 = vadd.xlane.f32.xlu0 %v1552
      %v1554 = vpop.xlane.xlu0 %1553
      %v1555 = vsel %vm793, %v1550, 0.0
      %1556 = vadd.xlane.f32.xlu0 %v1555
      %v1557 = vpop.xlane.xlu0 %1556
      %v1558 = vsel %vm800, %v1551, 0.0
      %1559 = vadd.xlane.f32.xlu0 %v1558
      %v1560 = vpop.xlane.xlu0 %1559
      %v1561 = vmul.f32 %v1554, %v810
      %v1562 = vmul.f32 %v1557, %v810
      %v1563 = vmul.f32 %v1560, %v810
      %v1564 = vadd.f32 %v1561, 1e-05
      %v1565 = vadd.f32 %v1562, 1e-05
      %v1566 = vadd.f32 %v1563, 1e-05
      %v1567 = vrsqrt.pop %v1564
      %v1568 = vmul.f32 %v1567, %v1564
      %v1569 = vmul.f32 %v1568, %v1567
      %v1570 = vmul.f32 0.5, %v1569
      %v1571 = vsub.f32 1.5, %v1570
      %v1572 = vmul.f32 %v1567, %v1571
      %vm1573 = vweird.f32 %v1564
      %vm1574 = vweird.f32 %v1567
      %vm1575 = vmor %vm1573, %vm1574
      %v1576 = vsel %vm1575, %v1567, %v1572
      %v1577 = vrsqrt.pop %v1565
      %v1578 = vmul.f32 %v1577, %v1565
      %v1579 = vmul.f32 %v1578, %v1577
      %v1580 = vmul.f32 0.5, %v1579
      %v1581 = vsub.f32 1.5, %v1580
      %v1582 = vmul.f32 %v1577, %v1581
      %vm1583 = vweird.f32 %v1565
      %vm1584 = vweird.f32 %v1577
      %vm1585 = vmor %vm1583, %vm1584
      %v1586 = vsel %vm1585, %v1577, %v1582
      %v1587 = vrsqrt.pop %v1566
      %v1588 = vmul.f32 %v1587, %v1566
      %v1589 = vmul.f32 %v1588, %v1587
      %v1590 = vmul.f32 0.5, %v1589
      %v1591 = vsub.f32 1.5, %v1590
      %v1592 = vmul.f32 %v1587, %v1591
      %vm1593 = vweird.f32 %v1566
      %vm1594 = vweird.f32 %v1587
      %vm1595 = vmor %vm1593, %vm1594
      %v1596 = vsel %vm1595, %v1587, %v1592
      %v1597 = vmul.f32 %v1546, %v1576
      %v1598 = vmul.f32 %v1547, %v1586
      %v1599 = vmul.f32 %v1548, %v1596
      %v1600 = vperm.slane %v1532, 0
      %v1601 = vmul.f32 %v1597, %v1600
      %v1602 = vmul.f32 %v1598, %v1600
      %v1603 = vmul.f32 %v1599, %v1600
      %v1604 = vperm.slane %v1533, 0
      %v1605 = vadd.f32 %v1601, %v1604
      %v1606 = vadd.f32 %v1602, %v1604
      %v1607 = vadd.f32 %v1603, %v1604
      %v1608 = vld [vmem:[%s12] sm:$0xff]
      %v1609 = vld [vmem:[%s12 + $0x8] sm:$0xff]
      %v1610 = vld [vmem:[%s12 + $0x10] sm:$0xff]
      %v1611 = vld [vmem:[%s12 + $0x18] sm:$0xff]
      %v1612 = vld [vmem:[%s13] sm:$0x1]
      %v1613 = vperm.slane %v1612, 0
      %v1615 = vsel %vm793, %v1605, 0
      %v1618 = vsel %vm793, %v1606, 0
      %v1621 = vsel %vm793, %v1607, 0
      %1623 = vmatpush.msra.mxu0 0.0
      %1624 = vmatpush.msra.mxu0 0.0
      %1625 = vmatpush.msra.mxu0 0.0
      %1626 = vmatpush.msra.mxu0 0.0
      %1627 = vmatpush.msra.mxu0 0.0
      %1628 = vmatpush.msra.mxu0 0.0
      %1629 = vmatpush.msra.mxu0 0.0
      %1630 = vmatpush.msra.mxu0 0.0
      %1631 = vmatpush.msra.mxu0 0.0
      %1632 = vmatpush.msra.mxu0 0.0
      %1633 = vmatpush.msra.mxu0 0.0
      %1634 = vmatpush.msra.mxu0 0.0
      %1635 = vmatpush.msra.mxu0 %v1611
      %1636 = vmatpush.msra.mxu0 %v1610
      %1637 = vmatpush.msra.mxu0 %v1609
      %1638 = vmatpush.msra.mxu0 %v1608
      %1639 = vmatmul.f32.gmra.mxu0 %v1615
      %v1640 = vpop.f32.mrf.mxu0
      %v1641 = vadd.f32 %v1613, %v1640
      %1642 = vmatmul.f32.gmra.mxu0 %v1618
      %v1643 = vpop.f32.mrf.mxu0
      %v1644 = vadd.f32 %v1613, %v1643
      %1645 = vmatmul.f32.gmra.mxu0 %v1621
      %v1646 = vpop.f32.mrf.mxu0
      %v1647 = vadd.f32 %v1613, %v1646
      %1648 = vdwg.mxu0
      %v1649 = vmul.f32 %v1641, %v1641
      %v1650 = vmul.f32 %v1644, %v1644
      %v1651 = vmul.f32 %v1647, %v1647
      %v1652 = vmul.f32 %v1641, %v1649
      %v1653 = vmul.f32 %v1644, %v1650
      %v1654 = vmul.f32 %v1647, %v1651
      %v1655 = vmul.f32 %v1652, 0.044715
      %v1656 = vmul.f32 %v1653, 0.044715
      %v1657 = vmul.f32 %v1654, 0.044715
      %v1658 = vadd.f32 %v1641, %v1655
      %v1659 = vadd.f32 %v1644, %v1656
      %v1660 = vadd.f32 %v1647, %v1657
      %v1661 = vmul.f32 %v1658, 0.7978846
      %v1662 = vmul.f32 %v1659, 0.7978846
      %v1663 = vmul.f32 %v1660, 0.7978846
      %v1664 = vtanh.pop %v1661
      %v1665 = vtanh.pop %v1662
      %v1666 = vtanh.pop %v1663
      %v1667 = vadd.f32 %v1664, 1.0
      %v1668 = vadd.f32 %v1665, 1.0
      %v1669 = vadd.f32 %v1666, 1.0
      %v1670 = vmul.f32 %v1667, 0.5
      %v1671 = vmul.f32 %v1668, 0.5
      %v1672 = vmul.f32 %v1669, 0.5
      %v1673 = vmul.f32 %v1641, %v1670
      %v1674 = vmul.f32 %v1644, %v1671
      %v1675 = vmul.f32 %v1647, %v1672
      %v1676 = vld [vmem:[%s14] sm:$0xff]
      %v1677 = vld [vmem:[%s14 + $0x8] sm:$0xff]
      %v1678 = vld [vmem:[%s14 + $0x10] sm:$0xff]
      %v1679 = vld [vmem:[%s14 + $0x18] sm:$0xff]
      %v1680 = vld [vmem:[%s14 + $0x20] sm:$0xff]
      %v1681 = vld [vmem:[%s14 + $0x28] sm:$0xff]
      %v1682 = vld [vmem:[%s14 + $0x30] sm:$0xff]
      %v1683 = vld [vmem:[%s14 + $0x38] sm:$0xff]
      %v1684 = vld [vmem:[%s14 + $0x40] sm:$0xff]
      %v1685 = vld [vmem:[%s14 + $0x48] sm:$0xff]
      %v1686 = vld [vmem:[%s14 + $0x50] sm:$0xff]
      %v1687 = vld [vmem:[%s14 + $0x58] sm:$0xff]
      %v1688 = vld [vmem:[%s14 + $0x60] sm:$0xff]
      %v1689 = vld [vmem:[%s14 + $0x68] sm:$0xff]
      %v1690 = vld [vmem:[%s14 + $0x70] sm:$0xff]
      %v1691 = vld [vmem:[%s14 + $0x78] sm:$0xff]
      %v1692 = vld [vmem:[%s15] sm:$0x1]
      %v1693 = vperm.slane %v1692, 0
      %1694 = vmatpush.msra.mxu0 %v1691
      %1695 = vmatpush.msra.mxu0 %v1690
      %1696 = vmatpush.msra.mxu0 %v1689
      %1697 = vmatpush.msra.mxu0 %v1688
      %1698 = vmatpush.msra.mxu0 %v1687
      %1699 = vmatpush.msra.mxu0 %v1686
      %1700 = vmatpush.msra.mxu0 %v1685
      %1701 = vmatpush.msra.mxu0 %v1684
      %1702 = vmatpush.msra.mxu0 %v1683
      %1703 = vmatpush.msra.mxu0 %v1682
      %1704 = vmatpush.msra.mxu0 %v1681
      %1705 = vmatpush.msra.mxu0 %v1680
      %1706 = vmatpush.msra.mxu0 %v1679
      %1707 = vmatpush.msra.mxu0 %v1678
      %1708 = vmatpush.msra.mxu0 %v1677
      %1709 = vmatpush.msra.mxu0 %v1676
      %1710 = vmatmul.f32.gmra.mxu0 %v1673
      %v1711 = vpop.f32.mrf.mxu0
      %v1712 = vadd.f32 %v1693, %v1711
      %1713 = vmatmul.f32.gmra.mxu0 %v1674
      %v1714 = vpop.f32.mrf.mxu0
      %v1715 = vadd.f32 %v1693, %v1714
      %1716 = vmatmul.f32.gmra.mxu0 %v1675
      %v1717 = vpop.f32.mrf.mxu0
      %v1718 = vadd.f32 %v1693, %v1717
      %1719 = vdwg.mxu0
      %v1720 = vadd.f32 %v1529, %v1712
      %v1721 = vadd.f32 %v1530, %v1715
      %v1722 = vadd.f32 %v1531, %v1718
      %v1723 = vld [vmem:[%s4 + $0x1] sm:$0x1]
      %v1724 = vld [vmem:[%s5 + $0x1] sm:$0x1]
      %v1725 = vsel %vm793, %v1720, 0.0
      %1726 = vadd.xlane.f32.xlu0 %v1725
      %v1727 = vpop.xlane.xlu0 %1726
      %v1728 = vsel %vm793, %v1721, 0.0
      %1729 = vadd.xlane.f32.xlu0 %v1728
      %v1730 = vpop.xlane.xlu0 %1729
      %v1731 = vsel %vm800, %v1722, 0.0
      %1732 = vadd.xlane.f32.xlu0 %v1731
      %v1733 = vpop.xlane.xlu0 %1732
      %v1734 = vmul.f32 %v1727, %v810
      %v1735 = vmul.f32 %v1730, %v810
      %v1736 = vmul.f32 %v1733, %v810
      %v1737 = vsub.f32 %v1720, %v1734
      %v1738 = vsub.f32 %v1721, %v1735
      %v1739 = vsub.f32 %v1722, %v1736
      %v1740 = vmul.f32 %v1737, %v1737
      %v1741 = vmul.f32 %v1738, %v1738
      %v1742 = vmul.f32 %v1739, %v1739
      %v1743 = vsel %vm793, %v1740, 0.0
      %1744 = vadd.xlane.f32.xlu0 %v1743
      %v1745 = vpop.xlane.xlu0 %1744
      %v1746 = vsel %vm793, %v1741, 0.0
      %1747 = vadd.xlane.f32.xlu0 %v1746
      %v1748 = vpop.xlane.xlu0 %1747
      %v1749 = vsel %vm800, %v1742, 0.0
      %1750 = vadd.xlane.f32.xlu0 %v1749
      %v1751 = vpop.xlane.xlu0 %1750
      %v1752 = vmul.f32 %v1745, %v810
      %v1753 = vmul.f32 %v1748, %v810
      %v1754 = vmul.f32 %v1751, %v810
      %v1755 = vadd.f32 %v1752, 1e-05
      %v1756 = vadd.f32 %v1753, 1e-05
      %v1757 = vadd.f32 %v1754, 1e-05
      %v1758 = vrsqrt.pop %v1755
      %v1759 = vmul.f32 %v1758, %v1755
      %v1760 = vmul.f32 %v1759, %v1758
      %v1761 = vmul.f32 0.5, %v1760
      %v1762 = vsub.f32 1.5, %v1761
      %v1763 = vmul.f32 %v1758, %v1762
      %vm1764 = vweird.f32 %v1755
      %vm1765 = vweird.f32 %v1758
      %vm1766 = vmor %vm1764, %vm1765
      %v1767 = vsel %vm1766, %v1758, %v1763
      %v1768 = vrsqrt.pop %v1756
      %v1769 = vmul.f32 %v1768, %v1756
      %v1770 = vmul.f32 %v1769, %v1768
      %v1771 = vmul.f32 0.5, %v1770
      %v1772 = vsub.f32 1.5, %v1771
      %v1773 = vmul.f32 %v1768, %v1772
      %vm1774 = vweird.f32 %v1756
      %vm1775 = vweird.f32 %v1768
      %vm1776 = vmor %vm1774, %vm1775
      %v1777 = vsel %vm1776, %v1768, %v1773
      %v1778 = vrsqrt.pop %v1757
      %v1779 = vmul.f32 %v1778, %v1757
      %v1780 = vmul.f32 %v1779, %v1778
      %v1781 = vmul.f32 0.5, %v1780
      %v1782 = vsub.f32 1.5, %v1781
      %v1783 = vmul.f32 %v1778, %v1782
      %vm1784 = vweird.f32 %v1757
      %vm1785 = vweird.f32 %v1778
      %vm1786 = vmor %vm1784, %vm1785
      %v1787 = vsel %vm1786, %v1778, %v1783
      %v1788 = vmul.f32 %v1737, %v1767
      %v1789 = vmul.f32 %v1738, %v1777
      %v1790 = vmul.f32 %v1739, %v1787
      %v1791 = vperm.slane %v1723, 0
      %v1792 = vmul.f32 %v1788, %v1791
      %v1793 = vmul.f32 %v1789, %v1791
      %v1794 = vmul.f32 %v1790, %v1791
      %v1795 = vperm.slane %v1724, 0
      %v1796 = vadd.f32 %v1792, %v1795
      %v1797 = vadd.f32 %v1793, %v1795
      %v1798 = vadd.f32 %v1794, %v1795
      %s1799 = scalar_lea.vmem %s6, 32
      %v1800 = vld [vmem:[%s1799] sm:$0xff]
      %v1801 = vld [vmem:[%s1799 + $0x8] sm:$0xff]
      %v1802 = vld [vmem:[%s1799 + $0x10] sm:$0xff]
      %v1803 = vld [vmem:[%s1799 + $0x18] sm:$0xff]
      %v1804 = vld [vmem:[%s7 + $0x1] sm:$0x1]
      %v1805 = vperm.slane %v1804, 0
      %v1807 = vsel %vm793, %v1796, 0
      %v1810 = vsel %vm793, %v1797, 0
      %v1813 = vsel %vm793, %v1798, 0
      %1815 = vmatpush.msra.mxu0 0.0
      %1816 = vmatpush.msra.mxu0 0.0
      %1817 = vmatpush.msra.mxu0 0.0
      %1818 = vmatpush.msra.mxu0 0.0
      %1819 = vmatpush.msra.mxu0 0.0
      %1820 = vmatpush.msra.mxu0 0.0
      %1821 = vmatpush.msra.mxu0 0.0
      %1822 = vmatpush.msra.mxu0 0.0
      %1823 = vmatpush.msra.mxu0 0.0
      %1824 = vmatpush.msra.mxu0 0.0
      %1825 = vmatpush.msra.mxu0 0.0
      %1826 = vmatpush.msra.mxu0 0.0
      %1827 = vmatpush.msra.mxu0 %v1803
      %1828 = vmatpush.msra.mxu0 %v1802
      %1829 = vmatpush.msra.mxu0 %v1801
      %1830 = vmatpush.msra.mxu0 %v1800
      %1831 = vmatmul.f32.gmra.mxu0 %v1807
      %v1832 = vpop.f32.mrf.mxu0
      %v1833 = vadd.f32 %v1805, %v1832
      %1834 = vmatmul.f32.gmra.mxu0 %v1810
      %v1835 = vpop.f32.mrf.mxu0
      %v1836 = vadd.f32 %v1805, %v1835
      %1837 = vmatmul.f32.gmra.mxu0 %v1813
      %v1838 = vpop.f32.mrf.mxu0
      %v1839 = vadd.f32 %v1805, %v1838
      %1840 = vdwg.mxu0
      %1844 = vrot.lane.b32.xlu0 %v1833, 96
      %v1845 = vpop.permute.xlu0 %1844
      %1846 = vrot.lane.b32.xlu0 %v1836, 96
      %v1847 = vpop.permute.xlu0 %1846
      %1848 = vrot.lane.b32.xlu0 %v1839, 96
      %v1849 = vpop.permute.xlu0 %1848
      %v1850 = vsel %vm926, %v1833, 0
      %v1852 = vsel %vm926, %v1836, 0
      %v1854 = vsel %vm926, %v1839, 0
      %v1856 = vsel %vm926, %v1845, 0
      %v1858 = vsel %vm926, %v1847, 0
      %v1860 = vsel %vm926, %v1849, 0
      %1862 = vmatpush.xpose.msra.mxu0 0.0
      %1863 = vmatpush.xpose.msra.mxu0 0.0
      %1864 = vmatpush.xpose.msra.mxu0 0.0
      %1865 = vmatpush.xpose.msra.mxu0 0.0
      %1866 = vmatpush.xpose.msra.mxu0 0.0
      %1867 = vmatpush.xpose.msra.mxu0 0.0
      %1868 = vmatpush.xpose.msra.mxu0 0.0
      %1869 = vmatpush.xpose.msra.mxu0 0.0
      %1870 = vmatpush.xpose.msra.mxu0 0.0
      %1871 = vmatpush.xpose.msra.mxu0 0.0
      %1872 = vmatpush.xpose.msra.mxu0 0.0
      %1873 = vmatpush.xpose.msra.mxu0 0.0
      %1874 = vmatpush.xpose.msra.mxu0 0.0
      %1875 = vmatpush.xpose.msra.mxu0 %v1860
      %1876 = vmatpush.xpose.msra.mxu0 %v1858
      %1877 = vmatpush.xpose.msra.mxu0 %v1856
      %1878 = vmatmul.f32.gmra.mxu0 %v1850
      %v1879 = vpop.f32.mrf.mxu0
      %v1880 = vadd.f32 0.0, %v1879
      %1881 = vmatmul.f32.gmra.mxu0 %v1852
      %v1882 = vpop.f32.mrf.mxu0
      %v1883 = vadd.f32 0.0, %v1882
      %1884 = vmatmul.f32.gmra.mxu0 %v1854
      %v1885 = vpop.f32.mrf.mxu0
      %v1886 = vadd.f32 0.0, %v1885
      %1887 = vdwg.mxu0
      %v1888 = vmul.f32 %v1880, 0.35355338
      %v1889 = vmul.f32 %v1883, 0.35355338
      %v1890 = vmul.f32 %v1886, 0.35355338
      %v1891 = vsel %vm968, %v1888, -inf
      %1892 = vmax.xlane.f32.xlu0 %v1891
      %v1893 = vpop.xlane.xlu0 %1892
      %v1894 = vsel %vm968, %v1889, -inf
      %1895 = vmax.xlane.f32.xlu0 %v1894
      %v1896 = vpop.xlane.xlu0 %1895
      %v1897 = vsel %vm975, %v1890, -inf
      %1898 = vmax.xlane.f32.xlu0 %v1897
      %v1899 = vpop.xlane.xlu0 %1898
      %v1900 = vsub.f32 %v1888, %v1893
      %v1901 = vsub.f32 %v1889, %v1896
      %v1902 = vsub.f32 %v1890, %v1899
      %v1903 = vmul.f32 %v1900, 1.442695
      %v1904 = vpow.pop %v1903
      %v1905 = vmul.f32 %v1901, 1.442695
      %v1906 = vpow.pop %v1905
      %v1907 = vmul.f32 %v1902, 1.442695
      %v1908 = vpow.pop %v1907
      %v1909 = vsel %vm968, %v1904, 0.0
      %1910 = vadd.xlane.f32.xlu0 %v1909
      %v1911 = vpop.xlane.xlu0 %1910
      %v1912 = vsel %vm968, %v1906, 0.0
      %1913 = vadd.xlane.f32.xlu0 %v1912
      %v1914 = vpop.xlane.xlu0 %1913
      %v1915 = vsel %vm975, %v1908, 0.0
      %1916 = vadd.xlane.f32.xlu0 %v1915
      %v1917 = vpop.xlane.xlu0 %1916
      %v1918 = vrcp.pop %v1911
      %v1919 = vrcp.pop %v1914
      %v1920 = vrcp.pop %v1917
      %v1921 = vmul.f32 %v1904, %v1918
      %v1922 = vmul.f32 %v1906, %v1919
      %v1923 = vmul.f32 %v1908, %v1920
      %1924 = vrot.lane.b32.xlu0 %v1833, 64
      %v1925 = vpop.permute.xlu0 %1924
      %1926 = vrot.lane.b32.xlu0 %v1836, 64
      %v1927 = vpop.permute.xlu0 %1926
      %1928 = vrot.lane.b32.xlu0 %v1839, 64
      %v1929 = vpop.permute.xlu0 %1928
      %v1933 = vsel %vm968, %v1921, 0
      %v1936 = vsel %vm968, %v1922, 0
      %v1939 = vsel %vm968, %v1923, 0
      %v1941 = vsel %vm761, %v1929, 0
      %1943 = vmatpush.msra.mxu0 0.0
      %1944 = vmatpush.msra.mxu0 0.0
      %1945 = vmatpush.msra.mxu0 0.0
      %1946 = vmatpush.msra.mxu0 0.0
      %1947 = vmatpush.msra.mxu0 0.0
      %1948 = vmatpush.msra.mxu0 0.0
      %1949 = vmatpush.msra.mxu0 0.0
      %1950 = vmatpush.msra.mxu0 0.0
      %1951 = vmatpush.msra.mxu0 0.0
      %1952 = vmatpush.msra.mxu0 0.0
      %1953 = vmatpush.msra.mxu0 0.0
      %1954 = vmatpush.msra.mxu0 0.0
      %1955 = vmatpush.msra.mxu0 0.0
      %1956 = vmatpush.msra.mxu0 %v1941
      %1957 = vmatpush.msra.mxu0 %v1927
      %1958 = vmatpush.msra.mxu0 %v1925
      %1959 = vmatmul.f32.gmra.mxu0 %v1933
      %v1960 = vpop.f32.mrf.mxu0
      %v1961 = vadd.f32 0.0, %v1960
      %1962 = vmatmul.f32.gmra.mxu0 %v1936
      %v1963 = vpop.f32.mrf.mxu0
      %v1964 = vadd.f32 0.0, %v1963
      %1965 = vmatmul.f32.gmra.mxu0 %v1939
      %v1966 = vpop.f32.mrf.mxu0
      %v1967 = vadd.f32 0.0, %v1966
      %1968 = vdwg.mxu0
      %1969 = vrot.lane.b32.xlu0 %v1833, 120
      %v1970 = vpop.permute.xlu0 %1969
      %1971 = vrot.lane.b32.xlu0 %v1836, 120
      %v1972 = vpop.permute.xlu0 %1971
      %1973 = vrot.lane.b32.xlu0 %v1839, 120
      %v1974 = vpop.permute.xlu0 %1973
      %1975 = vrot.lane.b32.xlu0 %v1833, 88
      %v1976 = vpop.permute.xlu0 %1975
      %1977 = vrot.lane.b32.xlu0 %v1836, 88
      %v1978 = vpop.permute.xlu0 %1977
      %1979 = vrot.lane.b32.xlu0 %v1839, 88
      %v1980 = vpop.permute.xlu0 %1979
      %v1981 = vsel %vm926, %v1970, 0
      %v1983 = vsel %vm926, %v1972, 0
      %v1985 = vsel %vm926, %v1974, 0
      %v1987 = vsel %vm926, %v1976, 0
      %v1989 = vsel %vm926, %v1978, 0
      %v1991 = vsel %vm926, %v1980, 0
      %1993 = vmatpush.xpose.msra.mxu0 0.0
      %1994 = vmatpush.xpose.msra.mxu0 0.0
      %1995 = vmatpush.xpose.msra.mxu0 0.0
      %1996 = vmatpush.xpose.msra.mxu0 0.0
      %1997 = vmatpush.xpose.msra.mxu0 0.0
      %1998 = vmatpush.xpose.msra.mxu0 0.0
      %1999 = vmatpush.xpose.msra.mxu0 0.0
      %2000 = vmatpush.xpose.msra.mxu0 0.0
      %2001 = vmatpush.xpose.msra.mxu0 0.0
      %2002 = vmatpush.xpose.msra.mxu0 0.0
      %2003 = vmatpush.xpose.msra.mxu0 0.0
      %2004 = vmatpush.xpose.msra.mxu0 0.0
      %2005 = vmatpush.xpose.msra.mxu0 0.0
      %2006 = vmatpush.xpose.msra.mxu0 %v1991
      %2007 = vmatpush.xpose.msra.mxu0 %v1989
      %2008 = vmatpush.xpose.msra.mxu0 %v1987
      %2009 = vmatmul.f32.gmra.mxu0 %v1981
      %v2010 = vpop.f32.mrf.mxu0
      %v2011 = vadd.f32 0.0, %v2010
      %2012 = vmatmul.f32.gmra.mxu0 %v1983
      %v2013 = vpop.f32.mrf.mxu0
      %v2014 = vadd.f32 0.0, %v2013
      %2015 = vmatmul.f32.gmra.mxu0 %v1985
      %v2016 = vpop.f32.mrf.mxu0
      %v2017 = vadd.f32 0.0, %v2016
      %2018 = vdwg.mxu0
      %v2019 = vmul.f32 %v2011, 0.35355338
      %v2020 = vmul.f32 %v2014, 0.35355338
      %v2021 = vmul.f32 %v2017, 0.35355338
      %v2022 = vsel %vm968, %v2019, -inf
      %2023 = vmax.xlane.f32.xlu0 %v2022
      %v2024 = vpop.xlane.xlu0 %2023
      %v2025 = vsel %vm968, %v2020, -inf
      %2026 = vmax.xlane.f32.xlu0 %v2025
      %v2027 = vpop.xlane.xlu0 %2026
      %v2028 = vsel %vm975, %v2021, -inf
      %2029 = vmax.xlane.f32.xlu0 %v2028
      %v2030 = vpop.xlane.xlu0 %2029
      %v2031 = vsub.f32 %v2019, %v2024
      %v2032 = vsub.f32 %v2020, %v2027
      %v2033 = vsub.f32 %v2021, %v2030
      %v2034 = vmul.f32 %v2031, 1.442695
      %v2035 = vpow.pop %v2034
      %v2036 = vmul.f32 %v2032, 1.442695
      %v2037 = vpow.pop %v2036
      %v2038 = vmul.f32 %v2033, 1.442695
      %v2039 = vpow.pop %v2038
      %v2040 = vsel %vm968, %v2035, 0.0
      %2041 = vadd.xlane.f32.xlu0 %v2040
      %v2042 = vpop.xlane.xlu0 %2041
      %v2043 = vsel %vm968, %v2037, 0.0
      %2044 = vadd.xlane.f32.xlu0 %v2043
      %v2045 = vpop.xlane.xlu0 %2044
      %v2046 = vsel %vm975, %v2039, 0.0
      %2047 = vadd.xlane.f32.xlu0 %v2046
      %v2048 = vpop.xlane.xlu0 %2047
      %v2049 = vrcp.pop %v2042
      %v2050 = vrcp.pop %v2045
      %v2051 = vrcp.pop %v2048
      %v2052 = vmul.f32 %v2035, %v2049
      %v2053 = vmul.f32 %v2037, %v2050
      %v2054 = vmul.f32 %v2039, %v2051
      %2055 = vrot.lane.b32.xlu0 %v1833, 56
      %v2056 = vpop.permute.xlu0 %2055
      %2057 = vrot.lane.b32.xlu0 %v1836, 56
      %v2058 = vpop.permute.xlu0 %2057
      %2059 = vrot.lane.b32.xlu0 %v1839, 56
      %v2060 = vpop.permute.xlu0 %2059
      %v2064 = vsel %vm968, %v2052, 0
      %v2067 = vsel %vm968, %v2053, 0
      %v2070 = vsel %vm968, %v2054, 0
      %v2072 = vsel %vm761, %v2060, 0
      %2074 = vmatpush.msra.mxu0 0.0
      %2075 = vmatpush.msra.mxu0 0.0
      %2076 = vmatpush.msra.mxu0 0.0
      %2077 = vmatpush.msra.mxu0 0.0
      %2078 = vmatpush.msra.mxu0 0.0
      %2079 = vmatpush.msra.mxu0 0.0
      %2080 = vmatpush.msra.mxu0 0.0
      %2081 = vmatpush.msra.mxu0 0.0
      %2082 = vmatpush.msra.mxu0 0.0
      %2083 = vmatpush.msra.mxu0 0.0
      %2084 = vmatpush.msra.mxu0 0.0
      %2085 = vmatpush.msra.mxu0 0.0
      %2086 = vmatpush.msra.mxu0 0.0
      %2087 = vmatpush.msra.mxu0 %v2072
      %2088 = vmatpush.msra.mxu0 %v2058
      %2089 = vmatpush.msra.mxu0 %v2056
      %2090 = vmatmul.f32.gmra.mxu0 %v2064
      %v2091 = vpop.f32.mrf.mxu0
      %v2092 = vadd.f32 0.0, %v2091
      %2093 = vmatmul.f32.gmra.mxu0 %v2067
      %v2094 = vpop.f32.mrf.mxu0
      %v2095 = vadd.f32 0.0, %v2094
      %2096 = vmatmul.f32.gmra.mxu0 %v2070
      %v2097 = vpop.f32.mrf.mxu0
      %v2098 = vadd.f32 0.0, %v2097
      %2099 = vdwg.mxu0
      %2100 = vrot.lane.b32.xlu0 %v1833, 112
      %v2101 = vpop.permute.xlu0 %2100
      %2102 = vrot.lane.b32.xlu0 %v1836, 112
      %v2103 = vpop.permute.xlu0 %2102
      %2104 = vrot.lane.b32.xlu0 %v1839, 112
      %v2105 = vpop.permute.xlu0 %2104
      %2106 = vrot.lane.b32.xlu0 %v1833, 80
      %v2107 = vpop.permute.xlu0 %2106
      %2108 = vrot.lane.b32.xlu0 %v1836, 80
      %v2109 = vpop.permute.xlu0 %2108
      %2110 = vrot.lane.b32.xlu0 %v1839, 80
      %v2111 = vpop.permute.xlu0 %2110
      %v2112 = vsel %vm926, %v2101, 0
      %v2114 = vsel %vm926, %v2103, 0
      %v2116 = vsel %vm926, %v2105, 0
      %v2118 = vsel %vm926, %v2107, 0
      %v2120 = vsel %vm926, %v2109, 0
      %v2122 = vsel %vm926, %v2111, 0
      %2124 = vmatpush.xpose.msra.mxu0 0.0
      %2125 = vmatpush.xpose.msra.mxu0 0.0
      %2126 = vmatpush.xpose.msra.mxu0 0.0
      %2127 = vmatpush.xpose.msra.mxu0 0.0
      %2128 = vmatpush.xpose.msra.mxu0 0.0
      %2129 = vmatpush.xpose.msra.mxu0 0.0
      %2130 = vmatpush.xpose.msra.mxu0 0.0
      %2131 = vmatpush.xpose.msra.mxu0 0.0
      %2132 = vmatpush.xpose.msra.mxu0 0.0
      %2133 = vmatpush.xpose.msra.mxu0 0.0
      %2134 = vmatpush.xpose.msra.mxu0 0.0
      %2135 = vmatpush.xpose.msra.mxu0 0.0
      %2136 = vmatpush.xpose.msra.mxu0 0.0
      %2137 = vmatpush.xpose.msra.mxu0 %v2122
      %2138 = vmatpush.xpose.msra.mxu0 %v2120
      %2139 = vmatpush.xpose.msra.mxu0 %v2118
      %2140 = vmatmul.f32.gmra.mxu0 %v2112
      %v2141 = vpop.f32.mrf.mxu0
      %v2142 = vadd.f32 0.0, %v2141
      %2143 = vmatmul.f32.gmra.mxu0 %v2114
      %v2144 = vpop.f32.mrf.mxu0
      %v2145 = vadd.f32 0.0, %v2144
      %2146 = vmatmul.f32.gmra.mxu0 %v2116
      %v2147 = vpop.f32.mrf.mxu0
      %v2148 = vadd.f32 0.0, %v2147
      %2149 = vdwg.mxu0
      %v2150 = vmul.f32 %v2142, 0.35355338
      %v2151 = vmul.f32 %v2145, 0.35355338
      %v2152 = vmul.f32 %v2148, 0.35355338
      %v2153 = vsel %vm968, %v2150, -inf
      %2154 = vmax.xlane.f32.xlu0 %v2153
      %v2155 = vpop.xlane.xlu0 %2154
      %v2156 = vsel %vm968, %v2151, -inf
      %2157 = vmax.xlane.f32.xlu0 %v2156
      %v2158 = vpop.xlane.xlu0 %2157
      %v2159 = vsel %vm975, %v2152, -inf
      %2160 = vmax.xlane.f32.xlu0 %v2159
      %v2161 = vpop.xlane.xlu0 %2160
      %v2162 = vsub.f32 %v2150, %v2155
      %v2163 = vsub.f32 %v2151, %v2158
      %v2164 = vsub.f32 %v2152, %v2161
      %v2165 = vmul.f32 %v2162, 1.442695
      %v2166 = vpow.pop %v2165
      %v2167 = vmul.f32 %v2163, 1.442695
      %v2168 = vpow.pop %v2167
      %v2169 = vmul.f32 %v2164, 1.442695
      %v2170 = vpow.pop %v2169
      %v2171 = vsel %vm968, %v2166, 0.0
      %2172 = vadd.xlane.f32.xlu0 %v2171
      %v2173 = vpop.xlane.xlu0 %2172
      %v2174 = vsel %vm968, %v2168, 0.0
      %2175 = vadd.xlane.f32.xlu0 %v2174
      %v2176 = vpop.xlane.xlu0 %2175
      %v2177 = vsel %vm975, %v2170, 0.0
      %2178 = vadd.xlane.f32.xlu0 %v2177
      %v2179 = vpop.xlane.xlu0 %2178
      %v2180 = vrcp.pop %v2173
      %v2181 = vrcp.pop %v2176
      %v2182 = vrcp.pop %v2179
      %v2183 = vmul.f32 %v2166, %v2180
      %v2184 = vmul.f32 %v2168, %v2181
      %v2185 = vmul.f32 %v2170, %v2182
      %2186 = vrot.lane.b32.xlu0 %v1833, 48
      %v2187 = vpop.permute.xlu0 %2186
      %2188 = vrot.lane.b32.xlu0 %v1836, 48
      %v2189 = vpop.permute.xlu0 %2188
      %2190 = vrot.lane.b32.xlu0 %v1839, 48
      %v2191 = vpop.permute.xlu0 %2190
      %v2195 = vsel %vm968, %v2183, 0
      %v2198 = vsel %vm968, %v2184, 0
      %v2201 = vsel %vm968, %v2185, 0
      %v2203 = vsel %vm761, %v2191, 0
      %2205 = vmatpush.msra.mxu0 0.0
      %2206 = vmatpush.msra.mxu0 0.0
      %2207 = vmatpush.msra.mxu0 0.0
      %2208 = vmatpush.msra.mxu0 0.0
      %2209 = vmatpush.msra.mxu0 0.0
      %2210 = vmatpush.msra.mxu0 0.0
      %2211 = vmatpush.msra.mxu0 0.0
      %2212 = vmatpush.msra.mxu0 0.0
      %2213 = vmatpush.msra.mxu0 0.0
      %2214 = vmatpush.msra.mxu0 0.0
      %2215 = vmatpush.msra.mxu0 0.0
      %2216 = vmatpush.msra.mxu0 0.0
      %2217 = vmatpush.msra.mxu0 0.0
      %2218 = vmatpush.msra.mxu0 %v2203
      %2219 = vmatpush.msra.mxu0 %v2189
      %2220 = vmatpush.msra.mxu0 %v2187
      %2221 = vmatmul.f32.gmra.mxu0 %v2195
      %v2222 = vpop.f32.mrf.mxu0
      %v2223 = vadd.f32 0.0, %v2222
      %2224 = vmatmul.f32.gmra.mxu0 %v2198
      %v2225 = vpop.f32.mrf.mxu0
      %v2226 = vadd.f32 0.0, %v2225
      %2227 = vmatmul.f32.gmra.mxu0 %v2201
      %v2228 = vpop.f32.mrf.mxu0
      %v2229 = vadd.f32 0.0, %v2228
      %2230 = vdwg.mxu0
      %2231 = vrot.lane.b32.xlu0 %v1833, 104
      %v2232 = vpop.permute.xlu0 %2231
      %2233 = vrot.lane.b32.xlu0 %v1836, 104
      %v2234 = vpop.permute.xlu0 %2233
      %2235 = vrot.lane.b32.xlu0 %v1839, 104
      %v2236 = vpop.permute.xlu0 %2235
      %2237 = vrot.lane.b32.xlu0 %v1833, 72
      %v2238 = vpop.permute.xlu0 %2237
      %2239 = vrot.lane.b32.xlu0 %v1836, 72
      %v2240 = vpop.permute.xlu0 %2239
      %2241 = vrot.lane.b32.xlu0 %v1839, 72
      %v2242 = vpop.permute.xlu0 %2241
      %v2243 = vsel %vm926, %v2232, 0
      %v2245 = vsel %vm926, %v2234, 0
      %v2247 = vsel %vm926, %v2236, 0
      %v2249 = vsel %vm926, %v2238, 0
      %v2251 = vsel %vm926, %v2240, 0
      %v2253 = vsel %vm926, %v2242, 0
      %2255 = vmatpush.xpose.msra.mxu0 0.0
      %2256 = vmatpush.xpose.msra.mxu0 0.0
      %2257 = vmatpush.xpose.msra.mxu0 0.0
      %2258 = vmatpush.xpose.msra.mxu0 0.0
      %2259 = vmatpush.xpose.msra.mxu0 0.0
      %2260 = vmatpush.xpose.msra.mxu0 0.0
      %2261 = vmatpush.xpose.msra.mxu0 0.0
      %2262 = vmatpush.xpose.msra.mxu0 0.0
      %2263 = vmatpush.xpose.msra.mxu0 0.0
      %2264 = vmatpush.xpose.msra.mxu0 0.0
      %2265 = vmatpush.xpose.msra.mxu0 0.0
      %2266 = vmatpush.xpose.msra.mxu0 0.0
      %2267 = vmatpush.xpose.msra.mxu0 0.0
      %2268 = vmatpush.xpose.msra.mxu0 %v2253
      %2269 = vmatpush.xpose.msra.mxu0 %v2251
      %2270 = vmatpush.xpose.msra.mxu0 %v2249
      %2271 = vmatmul.f32.gmra.mxu0 %v2243
      %v2272 = vpop.f32.mrf.mxu0
      %v2273 = vadd.f32 0.0, %v2272
      %2274 = vmatmul.f32.gmra.mxu0 %v2245
      %v2275 = vpop.f32.mrf.mxu0
      %v2276 = vadd.f32 0.0, %v2275
      %2277 = vmatmul.f32.gmra.mxu0 %v2247
      %v2278 = vpop.f32.mrf.mxu0
      %v2279 = vadd.f32 0.0, %v2278
      %2280 = vdwg.mxu0
      %v2281 = vmul.f32 %v2273, 0.35355338
      %v2282 = vmul.f32 %v2276, 0.35355338
      %v2283 = vmul.f32 %v2279, 0.35355338
      %v2284 = vsel %vm968, %v2281, -inf
      %2285 = vmax.xlane.f32.xlu0 %v2284
      %v2286 = vpop.xlane.xlu0 %2285
      %v2287 = vsel %vm968, %v2282, -inf
      %2288 = vmax.xlane.f32.xlu0 %v2287
      %v2289 = vpop.xlane.xlu0 %2288
      %v2290 = vsel %vm975, %v2283, -inf
      %2291 = vmax.xlane.f32.xlu0 %v2290
      %v2292 = vpop.xlane.xlu0 %2291
      %v2293 = vsub.f32 %v2281, %v2286
      %v2294 = vsub.f32 %v2282, %v2289
      %v2295 = vsub.f32 %v2283, %v2292
      %v2296 = vmul.f32 %v2293, 1.442695
      %v2297 = vpow.pop %v2296
      %v2298 = vmul.f32 %v2294, 1.442695
      %v2299 = vpow.pop %v2298
      %v2300 = vmul.f32 %v2295, 1.442695
      %v2301 = vpow.pop %v2300
      %v2302 = vsel %vm968, %v2297, 0.0
      %2303 = vadd.xlane.f32.xlu0 %v2302
      %v2304 = vpop.xlane.xlu0 %2303
      %v2305 = vsel %vm968, %v2299, 0.0
      %2306 = vadd.xlane.f32.xlu0 %v2305
      %v2307 = vpop.xlane.xlu0 %2306
      %v2308 = vsel %vm975, %v2301, 0.0
      %2309 = vadd.xlane.f32.xlu0 %v2308
      %v2310 = vpop.xlane.xlu0 %2309
      %v2311 = vrcp.pop %v2304
      %v2312 = vrcp.pop %v2307
      %v2313 = vrcp.pop %v2310
      %v2314 = vmul.f32 %v2297, %v2311
      %v2315 = vmul.f32 %v2299, %v2312
      %v2316 = vmul.f32 %v2301, %v2313
      %2317 = vrot.lane.b32.xlu0 %v1833, 40
      %v2318 = vpop.permute.xlu0 %2317
      %2319 = vrot.lane.b32.xlu0 %v1836, 40
      %v2320 = vpop.permute.xlu0 %2319
      %2321 = vrot.lane.b32.xlu0 %v1839, 40
      %v2322 = vpop.permute.xlu0 %2321
      %v2326 = vsel %vm968, %v2314, 0
      %v2329 = vsel %vm968, %v2315, 0
      %v2332 = vsel %vm968, %v2316, 0
      %v2334 = vsel %vm761, %v2322, 0
      %2336 = vmatpush.msra.mxu0 0.0
      %2337 = vmatpush.msra.mxu0 0.0
      %2338 = vmatpush.msra.mxu0 0.0
      %2339 = vmatpush.msra.mxu0 0.0
      %2340 = vmatpush.msra.mxu0 0.0
      %2341 = vmatpush.msra.mxu0 0.0
      %2342 = vmatpush.msra.mxu0 0.0
      %2343 = vmatpush.msra.mxu0 0.0
      %2344 = vmatpush.msra.mxu0 0.0
      %2345 = vmatpush.msra.mxu0 0.0
      %2346 = vmatpush.msra.mxu0 0.0
      %2347 = vmatpush.msra.mxu0 0.0
      %2348 = vmatpush.msra.mxu0 0.0
      %2349 = vmatpush.msra.mxu0 %v2334
      %2350 = vmatpush.msra.mxu0 %v2320
      %2351 = vmatpush.msra.mxu0 %v2318
      %2352 = vmatmul.f32.gmra.mxu0 %v2326
      %v2353 = vpop.f32.mrf.mxu0
      %v2354 = vadd.f32 0.0, %v2353
      %2355 = vmatmul.f32.gmra.mxu0 %v2329
      %v2356 = vpop.f32.mrf.mxu0
      %v2357 = vadd.f32 0.0, %v2356
      %2358 = vmatmul.f32.gmra.mxu0 %v2332
      %v2359 = vpop.f32.mrf.mxu0
      %v2360 = vadd.f32 0.0, %v2359
      %2361 = vdwg.mxu0
      %2365 = vrot.lane.b32.xlu0 %v2092, 8
      %v2366 = vpop.permute.xlu0 %2365
      %2367 = vrot.lane.b32.xlu0 %v2095, 8
      %v2368 = vpop.permute.xlu0 %2367
      %2369 = vrot.lane.b32.xlu0 %v2098, 8
      %v2370 = vpop.permute.xlu0 %2369
      %2377 = vrot.lane.b32.xlu0 %v2223, 16
      %v2378 = vpop.permute.xlu0 %2377
      %2379 = vrot.lane.b32.xlu0 %v2226, 16
      %v2380 = vpop.permute.xlu0 %2379
      %2381 = vrot.lane.b32.xlu0 %v2229, 16
      %v2382 = vpop.permute.xlu0 %2381
      %2389 = vrot.lane.b32.xlu0 %v2354, 24
      %v2390 = vpop.permute.xlu0 %2389
      %2391 = vrot.lane.b32.xlu0 %v2357, 24
      %v2392 = vpop.permute.xlu0 %2391
      %2393 = vrot.lane.b32.xlu0 %v2360, 24
      %v2394 = vpop.permute.xlu0 %2393
      %v2398 = vsel %vm926, %v1961, %v2366
      %v2399 = vsel %vm926, %v1964, %v2368
      %v2400 = vsel %vm926, %v1967, %v2370
      %v2401 = vsel %vm1480, %v2398, %v2378
      %v2402 = vsel %vm1480, %v2399, %v2380
      %v2403 = vsel %vm1480, %v2400, %v2382
      %v2404 = vsel %vm1484, %v2401, %v2390
      %v2405 = vsel %vm1484, %v2402, %v2392
      %v2406 = vsel %vm1484, %v2403, %v2394
      %s2407 = scalar_lea.vmem %s8, 32
      %v2408 = vld [vmem:[%s2407] sm:$0xff]
      %v2409 = vld [vmem:[%s2407 + $0x8] sm:$0xff]
      %v2410 = vld [vmem:[%s2407 + $0x10] sm:$0xff]
      %v2411 = vld [vmem:[%s2407 + $0x18] sm:$0xff]
      %v2412 = vld [vmem:[%s9 + $0x1] sm:$0x1]
      %v2413 = vperm.slane %v2412, 0
      %v2415 = vsel %vm793, %v2404, 0
      %v2418 = vsel %vm793, %v2405, 0
      %v2421 = vsel %vm793, %v2406, 0
      %2423 = vmatpush.msra.mxu0 0.0
      %2424 = vmatpush.msra.mxu0 0.0
      %2425 = vmatpush.msra.mxu0 0.0
      %2426 = vmatpush.msra.mxu0 0.0
      %2427 = vmatpush.msra.mxu0 0.0
      %2428 = vmatpush.msra.mxu0 0.0
      %2429 = vmatpush.msra.mxu0 0.0
      %2430 = vmatpush.msra.mxu0 0.0
      %2431 = vmatpush.msra.mxu0 0.0
      %2432 = vmatpush.msra.mxu0 0.0
      %2433 = vmatpush.msra.mxu0 0.0
      %2434 = vmatpush.msra.mxu0 0.0
      %2435 = vmatpush.msra.mxu0 %v2411
      %2436 = vmatpush.msra.mxu0 %v2410
      %2437 = vmatpush.msra.mxu0 %v2409
      %2438 = vmatpush.msra.mxu0 %v2408
      %2439 = vmatmul.f32.gmra.mxu0 %v2415
      %v2440 = vpop.f32.mrf.mxu0
      %v2441 = vadd.f32 %v2413, %v2440
      %2442 = vmatmul.f32.gmra.mxu0 %v2418
      %v2443 = vpop.f32.mrf.mxu0
      %v2444 = vadd.f32 %v2413, %v2443
      %2445 = vmatmul.f32.gmra.mxu0 %v2421
      %v2446 = vpop.f32.mrf.mxu0
      %v2447 = vadd.f32 %v2413, %v2446
      %2448 = vdwg.mxu0
      %v2449 = vadd.f32 %v1720, %v2441
      %v2450 = vadd.f32 %v1721, %v2444
      %v2451 = vadd.f32 %v1722, %v2447
      %v2452 = vld [vmem:[%s10 + $0x1] sm:$0x1]
      %v2453 = vld [vmem:[%s11 + $0x1] sm:$0x1]
      %v2454 = vsel %vm793, %v2449, 0.0
      %2455 = vadd.xlane.f32.xlu0 %v2454
      %v2456 = vpop.xlane.xlu0 %2455
      %v2457 = vsel %vm793, %v2450, 0.0
      %2458 = vadd.xlane.f32.xlu0 %v2457
      %v2459 = vpop.xlane.xlu0 %2458
      %v2460 = vsel %vm800, %v2451, 0.0
      %2461 = vadd.xlane.f32.xlu0 %v2460
      %v2462 = vpop.xlane.xlu0 %2461
      %v2463 = vmul.f32 %v2456, %v810
      %v2464 = vmul.f32 %v2459, %v810
      %v2465 = vmul.f32 %v2462, %v810
      %v2466 = vsub.f32 %v2449, %v2463
      %v2467 = vsub.f32 %v2450, %v2464
      %v2468 = vsub.f32 %v2451, %v2465
      %v2469 = vmul.f32 %v2466, %v2466
      %v2470 = vmul.f32 %v2467, %v2467
      %v2471 = vmul.f32 %v2468, %v2468
      %v2472 = vsel %vm793, %v2469, 0.0
      %2473 = vadd.xlane.f32.xlu0 %v2472
      %v2474 = vpop.xlane.xlu0 %2473
      %v2475 = vsel %vm793, %v2470, 0.0
      %2476 = vadd.xlane.f32.xlu0 %v2475
      %v2477 = vpop.xlane.xlu0 %2476
      %v2478 = vsel %vm800, %v2471, 0.0
      %2479 = vadd.xlane.f32.xlu0 %v2478
      %v2480 = vpop.xlane.xlu0 %2479
      %v2481 = vmul.f32 %v2474, %v810
      %v2482 = vmul.f32 %v2477, %v810
      %v2483 = vmul.f32 %v2480, %v810
      %v2484 = vadd.f32 %v2481, 1e-05
      %v2485 = vadd.f32 %v2482, 1e-05
      %v2486 = vadd.f32 %v2483, 1e-05
      %v2487 = vrsqrt.pop %v2484
      %v2488 = vmul.f32 %v2487, %v2484
      %v2489 = vmul.f32 %v2488, %v2487
      %v2490 = vmul.f32 0.5, %v2489
      %v2491 = vsub.f32 1.5, %v2490
      %v2492 = vmul.f32 %v2487, %v2491
      %vm2493 = vweird.f32 %v2484
      %vm2494 = vweird.f32 %v2487
      %vm2495 = vmor %vm2493, %vm2494
      %v2496 = vsel %vm2495, %v2487, %v2492
      %v2497 = vrsqrt.pop %v2485
      %v2498 = vmul.f32 %v2497, %v2485
      %v2499 = vmul.f32 %v2498, %v2497
      %v2500 = vmul.f32 0.5, %v2499
      %v2501 = vsub.f32 1.5, %v2500
      %v2502 = vmul.f32 %v2497, %v2501
      %vm2503 = vweird.f32 %v2485
      %vm2504 = vweird.f32 %v2497
      %vm2505 = vmor %vm2503, %vm2504
      %v2506 = vsel %vm2505, %v2497, %v2502
      %v2507 = vrsqrt.pop %v2486
      %v2508 = vmul.f32 %v2507, %v2486
      %v2509 = vmul.f32 %v2508, %v2507
      %v2510 = vmul.f32 0.5, %v2509
      %v2511 = vsub.f32 1.5, %v2510
      %v2512 = vmul.f32 %v2507, %v2511
      %vm2513 = vweird.f32 %v2486
      %vm2514 = vweird.f32 %v2507
      %vm2515 = vmor %vm2513, %vm2514
      %v2516 = vsel %vm2515, %v2507, %v2512
      %v2517 = vmul.f32 %v2466, %v2496
      %v2518 = vmul.f32 %v2467, %v2506
      %v2519 = vmul.f32 %v2468, %v2516
      %v2520 = vperm.slane %v2452, 0
      %v2521 = vmul.f32 %v2517, %v2520
      %v2522 = vmul.f32 %v2518, %v2520
      %v2523 = vmul.f32 %v2519, %v2520
      %v2524 = vperm.slane %v2453, 0
      %v2525 = vadd.f32 %v2521, %v2524
      %v2526 = vadd.f32 %v2522, %v2524
      %v2527 = vadd.f32 %v2523, %v2524
      %s2528 = scalar_lea.vmem %s12, 32
      %v2529 = vld [vmem:[%s2528] sm:$0xff]
      %v2530 = vld [vmem:[%s2528 + $0x8] sm:$0xff]
      %v2531 = vld [vmem:[%s2528 + $0x10] sm:$0xff]
      %v2532 = vld [vmem:[%s2528 + $0x18] sm:$0xff]
      %v2533 = vld [vmem:[%s13 + $0x1] sm:$0x1]
      %v2534 = vperm.slane %v2533, 0
      %v2536 = vsel %vm793, %v2525, 0
      %v2539 = vsel %vm793, %v2526, 0
      %v2542 = vsel %vm793, %v2527, 0
      %2544 = vmatpush.msra.mxu0 0.0
      %2545 = vmatpush.msra.mxu0 0.0
      %2546 = vmatpush.msra.mxu0 0.0
      %2547 = vmatpush.msra.mxu0 0.0
      %2548 = vmatpush.msra.mxu0 0.0
      %2549 = vmatpush.msra.mxu0 0.0
      %2550 = vmatpush.msra.mxu0 0.0
      %2551 = vmatpush.msra.mxu0 0.0
      %2552 = vmatpush.msra.mxu0 0.0
      %2553 = vmatpush.msra.mxu0 0.0
      %2554 = vmatpush.msra.mxu0 0.0
      %2555 = vmatpush.msra.mxu0 0.0
      %2556 = vmatpush.msra.mxu0 %v2532
      %2557 = vmatpush.msra.mxu0 %v2531
      %2558 = vmatpush.msra.mxu0 %v2530
      %2559 = vmatpush.msra.mxu0 %v2529
      %2560 = vmatmul.f32.gmra.mxu0 %v2536
      %v2561 = vpop.f32.mrf.mxu0
      %v2562 = vadd.f32 %v2534, %v2561
      %2563 = vmatmul.f32.gmra.mxu0 %v2539
      %v2564 = vpop.f32.mrf.mxu0
      %v2565 = vadd.f32 %v2534, %v2564
      %2566 = vmatmul.f32.gmra.mxu0 %v2542
      %v2567 = vpop.f32.mrf.mxu0
      %v2568 = vadd.f32 %v2534, %v2567
      %2569 = vdwg.mxu0
      %v2570 = vmul.f32 %v2562, %v2562
      %v2571 = vmul.f32 %v2565, %v2565
      %v2572 = vmul.f32 %v2568, %v2568
      %v2573 = vmul.f32 %v2562, %v2570
      %v2574 = vmul.f32 %v2565, %v2571
      %v2575 = vmul.f32 %v2568, %v2572
      %v2576 = vmul.f32 %v2573, 0.044715
      %v2577 = vmul.f32 %v2574, 0.044715
      %v2578 = vmul.f32 %v2575, 0.044715
      %v2579 = vadd.f32 %v2562, %v2576
      %v2580 = vadd.f32 %v2565, %v2577
      %v2581 = vadd.f32 %v2568, %v2578
      %v2582 = vmul.f32 %v2579, 0.7978846
      %v2583 = vmul.f32 %v2580, 0.7978846
      %v2584 = vmul.f32 %v2581, 0.7978846
      %v2585 = vtanh.pop %v2582
      %v2586 = vtanh.pop %v2583
      %v2587 = vtanh.pop %v2584
      %v2588 = vadd.f32 %v2585, 1.0
      %v2589 = vadd.f32 %v2586, 1.0
      %v2590 = vadd.f32 %v2587, 1.0
      %v2591 = vmul.f32 %v2588, 0.5
      %v2592 = vmul.f32 %v2589, 0.5
      %v2593 = vmul.f32 %v2590, 0.5
      %v2594 = vmul.f32 %v2562, %v2591
      %v2595 = vmul.f32 %v2565, %v2592
      %v2596 = vmul.f32 %v2568, %v2593
      %s2597 = scalar_lea.vmem %s14, 128
      %v2598 = vld [vmem:[%s2597] sm:$0xff]
      %v2599 = vld [vmem:[%s2597 + $0x8] sm:$0xff]
      %v2600 = vld [vmem:[%s2597 + $0x10] sm:$0xff]
      %v2601 = vld [vmem:[%s2597 + $0x18] sm:$0xff]
      %v2602 = vld [vmem:[%s2597 + $0x20] sm:$0xff]
      %v2603 = vld [vmem:[%s2597 + $0x28] sm:$0xff]
      %v2604 = vld [vmem:[%s2597 + $0x30] sm:$0xff]
      %v2605 = vld [vmem:[%s2597 + $0x38] sm:$0xff]
      %v2606 = vld [vmem:[%s2597 + $0x40] sm:$0xff]
      %v2607 = vld [vmem:[%s2597 + $0x48] sm:$0xff]
      %v2608 = vld [vmem:[%s2597 + $0x50] sm:$0xff]
      %v2609 = vld [vmem:[%s2597 + $0x58] sm:$0xff]
      %v2610 = vld [vmem:[%s2597 + $0x60] sm:$0xff]
      %v2611 = vld [vmem:[%s2597 + $0x68] sm:$0xff]
      %v2612 = vld [vmem:[%s2597 + $0x70] sm:$0xff]
      %v2613 = vld [vmem:[%s2597 + $0x78] sm:$0xff]
      %v2614 = vld [vmem:[%s15 + $0x1] sm:$0x1]
      %v2615 = vperm.slane %v2614, 0
      %2616 = vmatpush.msra.mxu0 %v2613
      %2617 = vmatpush.msra.mxu0 %v2612
      %2618 = vmatpush.msra.mxu0 %v2611
      %2619 = vmatpush.msra.mxu0 %v2610
      %2620 = vmatpush.msra.mxu0 %v2609
      %2621 = vmatpush.msra.mxu0 %v2608
      %2622 = vmatpush.msra.mxu0 %v2607
      %2623 = vmatpush.msra.mxu0 %v2606
      %2624 = vmatpush.msra.mxu0 %v2605
      %2625 = vmatpush.msra.mxu0 %v2604
      %2626 = vmatpush.msra.mxu0 %v2603
      %2627 = vmatpush.msra.mxu0 %v2602
      %2628 = vmatpush.msra.mxu0 %v2601
      %2629 = vmatpush.msra.mxu0 %v2600
      %2630 = vmatpush.msra.mxu0 %v2599
      %2631 = vmatpush.msra.mxu0 %v2598
      %2632 = vmatmul.f32.gmra.mxu0 %v2594
      %v2633 = vpop.f32.mrf.mxu0
      %v2634 = vadd.f32 %v2615, %v2633
      %2635 = vmatmul.f32.gmra.mxu0 %v2595
      %v2636 = vpop.f32.mrf.mxu0
      %v2637 = vadd.f32 %v2615, %v2636
      %2638 = vmatmul.f32.gmra.mxu0 %v2596
      %v2639 = vpop.f32.mrf.mxu0
      %v2640 = vadd.f32 %v2615, %v2639
      %2641 = vdwg.mxu0
      %v2642 = vadd.f32 %v2449, %v2634
      %v2643 = vadd.f32 %v2450, %v2637
      %v2644 = vadd.f32 %v2451, %v2640
      %v2645 = vld [vmem:[%s16] sm:$0x1]
      %v2646 = vld [vmem:[%s17] sm:$0x1]
      %v2647 = vsel %vm793, %v2642, 0.0
      %2648 = vadd.xlane.f32.xlu0 %v2647
      %v2649 = vpop.xlane.xlu0 %2648
      %v2650 = vsel %vm793, %v2643, 0.0
      %2651 = vadd.xlane.f32.xlu0 %v2650
      %v2652 = vpop.xlane.xlu0 %2651
      %v2653 = vsel %vm800, %v2644, 0.0
      %2654 = vadd.xlane.f32.xlu0 %v2653
      %v2655 = vpop.xlane.xlu0 %2654
      %v2656 = vmul.f32 %v2649, %v810
      %v2657 = vmul.f32 %v2652, %v810
      %v2658 = vmul.f32 %v2655, %v810
      %v2659 = vsub.f32 %v2642, %v2656
      %v2660 = vsub.f32 %v2643, %v2657
      %v2661 = vsub.f32 %v2644, %v2658
      %v2662 = vmul.f32 %v2659, %v2659
      %v2663 = vmul.f32 %v2660, %v2660
      %v2664 = vmul.f32 %v2661, %v2661
      %v2665 = vsel %vm793, %v2662, 0.0
      %2666 = vadd.xlane.f32.xlu0 %v2665
      %v2667 = vpop.xlane.xlu0 %2666
      %v2668 = vsel %vm793, %v2663, 0.0
      %2669 = vadd.xlane.f32.xlu0 %v2668
      %v2670 = vpop.xlane.xlu0 %2669
      %v2671 = vsel %vm800, %v2664, 0.0
      %2672 = vadd.xlane.f32.xlu0 %v2671
      %v2673 = vpop.xlane.xlu0 %2672
      %v2674 = vmul.f32 %v2667, %v810
      %v2675 = vmul.f32 %v2670, %v810
      %v2676 = vmul.f32 %v2673, %v810
      %v2677 = vadd.f32 %v2674, 1e-05
      %v2678 = vadd.f32 %v2675, 1e-05
      %v2679 = vadd.f32 %v2676, 1e-05
      %v2680 = vrsqrt.pop %v2677
      %v2681 = vmul.f32 %v2680, %v2677
      %v2682 = vmul.f32 %v2681, %v2680
      %v2683 = vmul.f32 0.5, %v2682
      %v2684 = vsub.f32 1.5, %v2683
      %v2685 = vmul.f32 %v2680, %v2684
      %vm2686 = vweird.f32 %v2677
      %vm2687 = vweird.f32 %v2680
      %vm2688 = vmor %vm2686, %vm2687
      %v2689 = vsel %vm2688, %v2680, %v2685
      %v2690 = vrsqrt.pop %v2678
      %v2691 = vmul.f32 %v2690, %v2678
      %v2692 = vmul.f32 %v2691, %v2690
      %v2693 = vmul.f32 0.5, %v2692
      %v2694 = vsub.f32 1.5, %v2693
      %v2695 = vmul.f32 %v2690, %v2694
      %vm2696 = vweird.f32 %v2678
      %vm2697 = vweird.f32 %v2690
      %vm2698 = vmor %vm2696, %vm2697
      %v2699 = vsel %vm2698, %v2690, %v2695
      %v2700 = vrsqrt.pop %v2679
      %v2701 = vmul.f32 %v2700, %v2679
      %v2702 = vmul.f32 %v2701, %v2700
      %v2703 = vmul.f32 0.5, %v2702
      %v2704 = vsub.f32 1.5, %v2703
      %v2705 = vmul.f32 %v2700, %v2704
      %vm2706 = vweird.f32 %v2679
      %vm2707 = vweird.f32 %v2700
      %vm2708 = vmor %vm2706, %vm2707
      %v2709 = vsel %vm2708, %v2700, %v2705
      %v2710 = vmul.f32 %v2659, %v2689
      %v2711 = vmul.f32 %v2660, %v2699
      %v2712 = vmul.f32 %v2661, %v2709
      %v2714 = vperm.slane %v2645, 0
      %v2716 = vmul.f32 %v2710, %v2714
      %v2717 = vmul.f32 %v2711, %v2714
      %v2718 = vmul.f32 %v2712, %v2714
      %v2720 = vperm.slane %v2646, 0
      %v2722 = vadd.f32 %v2716, %v2720
      %v2723 = vadd.f32 %v2717, %v2720
      %v2724 = vadd.f32 %v2718, %v2720
      %2725 = vst.msk [vmem:[%s723] sm:$0xff] %vm793, %v2722
      %2726 = vst.msk [vmem:[%s723 + $0x8] sm:$0xff] %vm793, %v2723
      %2727 = vst.msk [vmem:[%s723 + $0x10] sm:$0x1] %vm800, %v2724
      %v2728 = vld [vmem:[%s18] sm:$0xff]
      %v2729 = vld [vmem:[%s18 + $0x8] sm:$0xff]
      %v2730 = vld [vmem:[%s18 + $0x10] sm:$0xff]
      %v2731 = vld [vmem:[%s18 + $0x18] sm:$0xff]
      %v2733 = vsel %vm793, %v2722, 0
      %v2736 = vsel %vm793, %v2723, 0
      %v2739 = vsel %vm793, %v2724, 0
      %2741 = vmatpush.msra.mxu0 0.0
      %2742 = vmatpush.msra.mxu0 0.0
      %2743 = vmatpush.msra.mxu0 0.0
      %2744 = vmatpush.msra.mxu0 0.0
      %2745 = vmatpush.msra.mxu0 0.0
      %2746 = vmatpush.msra.mxu0 0.0
      %2747 = vmatpush.msra.mxu0 0.0
      %2748 = vmatpush.msra.mxu0 0.0
      %2749 = vmatpush.msra.mxu0 0.0
      %2750 = vmatpush.msra.mxu0 0.0
      %2751 = vmatpush.msra.mxu0 0.0
      %2752 = vmatpush.msra.mxu0 0.0
      %2753 = vmatpush.msra.mxu0 %v2731
      %2754 = vmatpush.msra.mxu0 %v2730
      %2755 = vmatpush.msra.mxu0 %v2729
      %2756 = vmatpush.msra.mxu0 %v2728
      %2757 = vmatmul.f32.gmra.mxu0 %v2733
      %v2758 = vpop.f32.mrf.mxu0
      %v2759 = vadd.f32 0.0, %v2758
      %2760 = vmatmul.f32.gmra.mxu0 %v2736
      %v2761 = vpop.f32.mrf.mxu0
      %v2762 = vadd.f32 0.0, %v2761
      %2763 = vmatmul.f32.gmra.mxu0 %v2739
      %v2764 = vpop.f32.mrf.mxu0
      %v2765 = vadd.f32 0.0, %v2764
      %2766 = vdwg.mxu0
      %2770 = vst [vmem:[#allocation1] sm:$0xff] %v2759
      %s2771 = scalar_lea.vmem [#allocation1], 1
      %v2772 = vld [vmem:[%s2771] ss:$9 sm:$0xff]
      %s2773 = scalar_lea.vmem [#allocation1], 2
      %v2774 = vld [vmem:[%s2773] ss:$9 sm:$0xff]
      %s2775 = scalar_lea.vmem [#allocation1], 3
      %v2776 = vld [vmem:[%s2775] ss:$9 sm:$0xff]
      %s2777 = scalar_lea.vmem [#allocation1], 4
      %v2778 = vld [vmem:[%s2777] ss:$9 sm:$0xff]
      %s2779 = scalar_lea.vmem [#allocation1], 5
      %v2780 = vld [vmem:[%s2779] ss:$9 sm:$0xff]
      %s2781 = scalar_lea.vmem [#allocation1], 6
      %v2782 = vld [vmem:[%s2781] ss:$9 sm:$0xff]
      %s2783 = scalar_lea.vmem [#allocation1], 7
      %v2784 = vld [vmem:[%s2783] ss:$9 sm:$0xff]
      %2785 = vst [vmem:[#allocation1] sm:$0xff] %v2762
      %v2786 = vld [vmem:[#allocation1] ss:$9 sm:$0xff]
      %v2787 = vld [vmem:[%s2771] ss:$9 sm:$0xff]
      %v2788 = vld [vmem:[%s2773] ss:$9 sm:$0xff]
      %v2789 = vld [vmem:[%s2775] ss:$9 sm:$0xff]
      %v2790 = vld [vmem:[%s2777] ss:$9 sm:$0xff]
      %v2791 = vld [vmem:[%s2779] ss:$9 sm:$0xff]
      %v2792 = vld [vmem:[%s2781] ss:$9 sm:$0xff]
      %v2793 = vld [vmem:[%s2783] ss:$9 sm:$0xff]
      %2794 = vst [vmem:[#allocation1] sm:$0xff] %v2765
      %v2795 = vld [vmem:[#allocation1] ss:$9 sm:$0xff]
      %v2796 = vperm.slane %v2772, 0
      %v2797 = vperm.slane %v2774, 0
      %v2798 = vperm.slane %v2776, 0
      %v2799 = vperm.slane %v2778, 0
      %v2800 = vperm.slane %v2780, 0
      %v2801 = vperm.slane %v2782, 0
      %v2802 = vperm.slane %v2784, 0
      %v2803 = vperm.slane %v2786, 0
      %v2804 = vperm.slane %v2787, 0
      %v2805 = vperm.slane %v2788, 0
      %v2806 = vperm.slane %v2789, 0
      %v2807 = vperm.slane %v2790, 0
      %v2808 = vperm.slane %v2791, 0
      %v2809 = vperm.slane %v2792, 0
      %v2810 = vperm.slane %v2793, 0
      %v2811 = vperm.slane %v2795, 0
      %v2828 = vsub.f32 %v2796, %v2759
      %v2829 = vsub.f32 %v2796, %v2762
      %v2830 = vsub.f32 %v2796, %v2765
      %v2831 = vsub.f32 %v2797, %v2759
      %v2832 = vsub.f32 %v2797, %v2762
      %v2833 = vsub.f32 %v2797, %v2765
      %v2834 = vsub.f32 %v2798, %v2759
      %v2835 = vsub.f32 %v2798, %v2762
      %v2836 = vsub.f32 %v2798, %v2765
      %v2837 = vsub.f32 %v2799, %v2759
      %v2838 = vsub.f32 %v2799, %v2762
      %v2839 = vsub.f32 %v2799, %v2765
      %v2840 = vsub.f32 %v2800, %v2759
      %v2841 = vsub.f32 %v2800, %v2762
      %v2842 = vsub.f32 %v2800, %v2765
      %v2843 = vsub.f32 %v2801, %v2759
      %v2844 = vsub.f32 %v2801, %v2762
      %v2845 = vsub.f32 %v2801, %v2765
      %v2846 = vsub.f32 %v2802, %v2759
      %v2847 = vsub.f32 %v2802, %v2762
      %v2848 = vsub.f32 %v2802, %v2765
      %v2849 = vsub.f32 %v2803, %v2759
      %v2850 = vsub.f32 %v2803, %v2762
      %v2851 = vsub.f32 %v2803, %v2765
      %v2852 = vsub.f32 %v2804, %v2759
      %v2853 = vsub.f32 %v2804, %v2762
      %v2854 = vsub.f32 %v2804, %v2765
      %v2855 = vsub.f32 %v2805, %v2759
      %v2856 = vsub.f32 %v2805, %v2762
      %v2857 = vsub.f32 %v2805, %v2765
      %v2858 = vsub.f32 %v2806, %v2759
      %v2859 = vsub.f32 %v2806, %v2762
      %v2860 = vsub.f32 %v2806, %v2765
      %v2861 = vsub.f32 %v2807, %v2759
      %v2862 = vsub.f32 %v2807, %v2762
      %v2863 = vsub.f32 %v2807, %v2765
      %v2864 = vsub.f32 %v2808, %v2759
      %v2865 = vsub.f32 %v2808, %v2762
      %v2866 = vsub.f32 %v2808, %v2765
      %v2867 = vsub.f32 %v2809, %v2759
      %v2868 = vsub.f32 %v2809, %v2762
      %v2869 = vsub.f32 %v2809, %v2765
      %v2870 = vsub.f32 %v2810, %v2759
      %v2871 = vsub.f32 %v2810, %v2762
      %v2872 = vsub.f32 %v2810, %v2765
      %v2873 = vsub.f32 %v2811, %v2759
      %v2874 = vsub.f32 %v2811, %v2762
      %v2875 = vsub.f32 %v2811, %v2765
      %v2876 = vtanh.pop %v2828
      %v2877 = vtanh.pop %v2829
      %v2878 = vtanh.pop %v2830
      %v2879 = vtanh.pop %v2831
      %v2880 = vtanh.pop %v2832
      %v2881 = vtanh.pop %v2833
      %v2882 = vtanh.pop %v2834
      %v2883 = vtanh.pop %v2835
      %v2884 = vtanh.pop %v2836
      %v2885 = vtanh.pop %v2837
      %v2886 = vtanh.pop %v2838
      %v2887 = vtanh.pop %v2839
      %v2888 = vtanh.pop %v2840
      %v2889 = vtanh.pop %v2841
      %v2890 = vtanh.pop %v2842
      %v2891 = vtanh.pop %v2843
      %v2892 = vtanh.pop %v2844
      %v2893 = vtanh.pop %v2845
      %v2894 = vtanh.pop %v2846
      %v2895 = vtanh.pop %v2847
      %v2896 = vtanh.pop %v2848
      %v2897 = vtanh.pop %v2849
      %v2898 = vtanh.pop %v2850
      %v2899 = vtanh.pop %v2851
      %v2900 = vtanh.pop %v2852
      %v2901 = vtanh.pop %v2853
      %v2902 = vtanh.pop %v2854
      %v2903 = vtanh.pop %v2855
      %v2904 = vtanh.pop %v2856
      %v2905 = vtanh.pop %v2857
      %v2906 = vtanh.pop %v2858
      %v2907 = vtanh.pop %v2859
      %v2908 = vtanh.pop %v2860
      %v2909 = vtanh.pop %v2861
      %v2910 = vtanh.pop %v2862
      %v2911 = vtanh.pop %v2863
      %v2912 = vtanh.pop %v2864
      %v2913 = vtanh.pop %v2865
      %v2914 = vtanh.pop %v2866
      %v2915 = vtanh.pop %v2867
      %v2916 = vtanh.pop %v2868
      %v2917 = vtanh.pop %v2869
      %v2918 = vtanh.pop %v2870
      %v2919 = vtanh.pop %v2871
      %v2920 = vtanh.pop %v2872
      %v2921 = vtanh.pop %v2873
      %v2922 = vtanh.pop %v2874
      %v2923 = vtanh.pop %v2875
      %v2924 = vmul.f32 %v2876, 16.0
      %v2925 = vmul.f32 %v2877, 16.0
      %v2926 = vmul.f32 %v2878, 16.0
      %v2927 = vmul.f32 %v2879, 16.0
      %v2928 = vmul.f32 %v2880, 16.0
      %v2929 = vmul.f32 %v2881, 16.0
      %v2930 = vmul.f32 %v2882, 16.0
      %v2931 = vmul.f32 %v2883, 16.0
      %v2932 = vmul.f32 %v2884, 16.0
      %v2933 = vmul.f32 %v2885, 16.0
      %v2934 = vmul.f32 %v2886, 16.0
      %v2935 = vmul.f32 %v2887, 16.0
      %v2936 = vmul.f32 %v2888, 16.0
      %v2937 = vmul.f32 %v2889, 16.0
      %v2938 = vmul.f32 %v2890, 16.0
      %v2939 = vmul.f32 %v2891, 16.0
      %v2940 = vmul.f32 %v2892, 16.0
      %v2941 = vmul.f32 %v2893, 16.0
      %v2942 = vmul.f32 %v2894, 16.0
      %v2943 = vmul.f32 %v2895, 16.0
      %v2944 = vmul.f32 %v2896, 16.0
      %v2945 = vmul.f32 %v2897, 16.0
      %v2946 = vmul.f32 %v2898, 16.0
      %v2947 = vmul.f32 %v2899, 16.0
      %v2948 = vmul.f32 %v2900, 16.0
      %v2949 = vmul.f32 %v2901, 16.0
      %v2950 = vmul.f32 %v2902, 16.0
      %v2951 = vmul.f32 %v2903, 16.0
      %v2952 = vmul.f32 %v2904, 16.0
      %v2953 = vmul.f32 %v2905, 16.0
      %v2954 = vmul.f32 %v2906, 16.0
      %v2955 = vmul.f32 %v2907, 16.0
      %v2956 = vmul.f32 %v2908, 16.0
      %v2957 = vmul.f32 %v2909, 16.0
      %v2958 = vmul.f32 %v2910, 16.0
      %v2959 = vmul.f32 %v2911, 16.0
      %v2960 = vmul.f32 %v2912, 16.0
      %v2961 = vmul.f32 %v2913, 16.0
      %v2962 = vmul.f32 %v2914, 16.0
      %v2963 = vmul.f32 %v2915, 16.0
      %v2964 = vmul.f32 %v2916, 16.0
      %v2965 = vmul.f32 %v2917, 16.0
      %v2966 = vmul.f32 %v2918, 16.0
      %v2967 = vmul.f32 %v2919, 16.0
      %v2968 = vmul.f32 %v2920, 16.0
      %v2969 = vmul.f32 %v2921, 16.0
      %v2970 = vmul.f32 %v2922, 16.0
      %v2971 = vmul.f32 %v2923, 16.0
      %vm2972 = vcmask 15361
      %2973 = vst.msk [vmem:[%s728 - $0x1] sm:$0xfe] %vm2972, %v2924
      %vm2974 = vcmask 15360
      %2975 = vst.msk [vmem:[%s728 + $0x7] sm:$0xff] %vm2974, %v2925
      %vm2976 = vcmask 8192
      %2977 = vst.msk [vmem:[%s728 + $0xf] sm:$0x1] %vm2976, %v2926
      %2978 = vst.msk [vmem:[%s728 + $0xf] sm:$0xfe] %vm2972, %v2927
      %2979 = vst.msk [vmem:[%s728 + $0x17] sm:$0xff] %vm2974, %v2928
      %2980 = vst.msk [vmem:[%s728 + $0x1f] sm:$0x1] %vm2976, %v2929
      %2981 = vst.msk [vmem:[%s728 + $0x1f] sm:$0xfe] %vm2972, %v2930
      %2982 = vst.msk [vmem:[%s728 + $0x27] sm:$0xff] %vm2974, %v2931
      %2983 = vst.msk [vmem:[%s728 + $0x2f] sm:$0x1] %vm2976, %v2932
      %2984 = vst.msk [vmem:[%s728 + $0x2f] sm:$0xfe] %vm2972, %v2933
      %2985 = vst.msk [vmem:[%s728 + $0x37] sm:$0xff] %vm2974, %v2934
      %2986 = vst.msk [vmem:[%s728 + $0x3f] sm:$0x1] %vm2976, %v2935
      %2987 = vst.msk [vmem:[%s728 + $0x3f] sm:$0xfe] %vm2972, %v2936
      %2988 = vst.msk [vmem:[%s728 + $0x47] sm:$0xff] %vm2974, %v2937
      %2989 = vst.msk [vmem:[%s728 + $0x4f] sm:$0x1] %vm2976, %v2938
      %2990 = vst.msk [vmem:[%s728 + $0x4f] sm:$0xfe] %vm2972, %v2939
      %2991 = vst.msk [vmem:[%s728 + $0x57] sm:$0xff] %vm2974, %v2940
      %2992 = vst.msk [vmem:[%s728 + $0x5f] sm:$0x1] %vm2976, %v2941
      %2993 = vst.msk [vmem:[%s728 + $0x5f] sm:$0xfe] %vm2972, %v2942
      %2994 = vst.msk [vmem:[%s728 + $0x67] sm:$0xff] %vm2974, %v2943
      %2995 = vst.msk [vmem:[%s728 + $0x6f] sm:$0x1] %vm2976, %v2944
      %2996 = vst.msk [vmem:[%s728 + $0x6f] sm:$0xfe] %vm2972, %v2945
      %2997 = vst.msk [vmem:[%s728 + $0x77] sm:$0xff] %vm2974, %v2946
      %2998 = vst.msk [vmem:[%s728 + $0x7f] sm:$0x1] %vm2976, %v2947
      %2999 = vst.msk [vmem:[%s728 + $0x7f] sm:$0xfe] %vm2972, %v2948
      %3000 = vst.msk [vmem:[%s728 + $0x87] sm:$0xff] %vm2974, %v2949
      %3001 = vst.msk [vmem:[%s728 + $0x8f] sm:$0x1] %vm2976, %v2950
      %3002 = vst.msk [vmem:[%s728 + $0x8f] sm:$0xfe] %vm2972, %v2951
      %3003 = vst.msk [vmem:[%s728 + $0x97] sm:$0xff] %vm2974, %v2952
      %3004 = vst.msk [vmem:[%s728 + $0x9f] sm:$0x1] %vm2976, %v2953
      %3005 = vst.msk [vmem:[%s728 + $0x9f] sm:$0xfe] %vm2972, %v2954
      %3006 = vst.msk [vmem:[%s728 + $0xa7] sm:$0xff] %vm2974, %v2955
      %3007 = vst.msk [vmem:[%s728 + $0xaf] sm:$0x1] %vm2976, %v2956
      %3008 = vst.msk [vmem:[%s728 + $0xaf] sm:$0xfe] %vm2972, %v2957
      %3009 = vst.msk [vmem:[%s728 + $0xb7] sm:$0xff] %vm2974, %v2958
      %3010 = vst.msk [vmem:[%s728 + $0xbf] sm:$0x1] %vm2976, %v2959
      %3011 = vst.msk [vmem:[%s728 + $0xbf] sm:$0xfe] %vm2972, %v2960
      %3012 = vst.msk [vmem:[%s728 + $0xc7] sm:$0xff] %vm2974, %v2961
      %3013 = vst.msk [vmem:[%s728 + $0xcf] sm:$0x1] %vm2976, %v2962
      %3014 = vst.msk [vmem:[%s728 + $0xcf] sm:$0xfe] %vm2972, %v2963
      %3015 = vst.msk [vmem:[%s728 + $0xd7] sm:$0xff] %vm2974, %v2964
      %3016 = vst.msk [vmem:[%s728 + $0xdf] sm:$0x1] %vm2976, %v2965
      %3017 = vst.msk [vmem:[%s728 + $0xdf] sm:$0xfe] %vm2972, %v2966
      %3018 = vst.msk [vmem:[%s728 + $0xe7] sm:$0xff] %vm2974, %v2967
      %3019 = vst.msk [vmem:[%s728 + $0xef] sm:$0x1] %vm2976, %v2968
      %3020 = vst.msk [vmem:[%s728 + $0xef] sm:$0xfe] %vm2972, %v2969
      %3021 = vst.msk [vmem:[%s728 + $0xf7] sm:$0xff] %vm2974, %v2970
      %3022 = vst.msk [vmem:[%s728 + $0xff] sm:$0x1] %vm2976, %v2971
      %v3023 = vld [vmem:[%s718] sm:$0xff]
      %v3024 = vld [vmem:[%s718 + $0x8] sm:$0xff]
      %v3027 = vrot.slane %v3023, 1
      %v3028 = vrot.slane %v3023, 2
      %v3029 = vrot.slane %v3023, 3
      %v3030 = vrot.slane %v3023, 4
      %v3031 = vrot.slane %v3023, 5
      %v3032 = vrot.slane %v3023, 6
      %v3033 = vrot.slane %v3023, 7
      %v3034 = vrot.slane %v3024, 1
      %v3035 = vrot.slane %v3024, 2
      %v3036 = vrot.slane %v3024, 3
      %v3037 = vrot.slane %v3024, 4
      %v3038 = vrot.slane %v3024, 5
      %v3039 = vrot.slane %v3024, 6
      %v3040 = vrot.slane %v3024, 7
      %v3041 = vperm.slane %v3023, 0
      %v3042 = vperm.slane %v3027, 0
      %v3043 = vperm.slane %v3028, 0
      %v3044 = vperm.slane %v3029, 0
      %v3045 = vperm.slane %v3030, 0
      %v3046 = vperm.slane %v3031, 0
      %v3047 = vperm.slane %v3032, 0
      %v3048 = vperm.slane %v3033, 0
      %v3049 = vperm.slane %v3024, 0
      %v3050 = vperm.slane %v3034, 0
      %v3051 = vperm.slane %v3035, 0
      %v3052 = vperm.slane %v3036, 0
      %v3053 = vperm.slane %v3037, 0
      %v3054 = vperm.slane %v3038, 0
      %v3055 = vperm.slane %v3039, 0
      %v3056 = vperm.slane %v3040, 0
      %v3073 = vsub.f32 %v3041, %v3023
      %v3074 = vsub.f32 %v3041, %v3024
      %v3075 = vsub.f32 %v3042, %v3023
      %v3076 = vsub.f32 %v3042, %v3024
      %v3077 = vsub.f32 %v3043, %v3023
      %v3078 = vsub.f32 %v3043, %v3024
      %v3079 = vsub.f32 %v3044, %v3023
      %v3080 = vsub.f32 %v3044, %v3024
      %v3081 = vsub.f32 %v3045, %v3023
      %v3082 = vsub.f32 %v3045, %v3024
      %v3083 = vsub.f32 %v3046, %v3023
      %v3084 = vsub.f32 %v3046, %v3024
      %v3085 = vsub.f32 %v3047, %v3023
      %v3086 = vsub.f32 %v3047, %v3024
      %v3087 = vsub.f32 %v3048, %v3023
      %v3088 = vsub.f32 %v3048, %v3024
      %v3089 = vsub.f32 %v3049, %v3023
      %v3090 = vsub.f32 %v3049, %v3024
      %v3091 = vsub.f32 %v3050, %v3023
      %v3092 = vsub.f32 %v3050, %v3024
      %v3093 = vsub.f32 %v3051, %v3023
      %v3094 = vsub.f32 %v3051, %v3024
      %v3095 = vsub.f32 %v3052, %v3023
      %v3096 = vsub.f32 %v3052, %v3024
      %v3097 = vsub.f32 %v3053, %v3023
      %v3098 = vsub.f32 %v3053, %v3024
      %v3099 = vsub.f32 %v3054, %v3023
      %v3100 = vsub.f32 %v3054, %v3024
      %v3101 = vsub.f32 %v3055, %v3023
      %v3102 = vsub.f32 %v3055, %v3024
      %v3103 = vsub.f32 %v3056, %v3023
      %v3104 = vsub.f32 %v3056, %v3024
      %3105 = vst.msk [vmem:[%s733] sm:$0xff] %vm2974, %v3073
      %3106 = vst.msk [vmem:[%s733 + $0x8] sm:$0xff] %vm2974, %v3074
      %3107 = vst.msk [vmem:[%s733 + $0x10] sm:$0xff] %vm2974, %v3075
      %3108 = vst.msk [vmem:[%s733 + $0x18] sm:$0xff] %vm2974, %v3076
      %3109 = vst.msk [vmem:[%s733 + $0x20] sm:$0xff] %vm2974, %v3077
      %3110 = vst.msk [vmem:[%s733 + $0x28] sm:$0xff] %vm2974, %v3078
      %3111 = vst.msk [vmem:[%s733 + $0x30] sm:$0xff] %vm2974, %v3079
      %3112 = vst.msk [vmem:[%s733 + $0x38] sm:$0xff] %vm2974, %v3080
      %3113 = vst.msk [vmem:[%s733 + $0x40] sm:$0xff] %vm2974, %v3081
      %3114 = vst.msk [vmem:[%s733 + $0x48] sm:$0xff] %vm2974, %v3082
      %3115 = vst.msk [vmem:[%s733 + $0x50] sm:$0xff] %vm2974, %v3083
      %3116 = vst.msk [vmem:[%s733 + $0x58] sm:$0xff] %vm2974, %v3084
      %3117 = vst.msk [vmem:[%s733 + $0x60] sm:$0xff] %vm2974, %v3085
      %3118 = vst.msk [vmem:[%s733 + $0x68] sm:$0xff] %vm2974, %v3086
      %3119 = vst.msk [vmem:[%s733 + $0x70] sm:$0xff] %vm2974, %v3087
      %3120 = vst.msk [vmem:[%s733 + $0x78] sm:$0xff] %vm2974, %v3088
      %3121 = vst.msk [vmem:[%s733 + $0x80] sm:$0xff] %vm2974, %v3089
      %3122 = vst.msk [vmem:[%s733 + $0x88] sm:$0xff] %vm2974, %v3090
      %3123 = vst.msk [vmem:[%s733 + $0x90] sm:$0xff] %vm2974, %v3091
      %3124 = vst.msk [vmem:[%s733 + $0x98] sm:$0xff] %vm2974, %v3092
      %3125 = vst.msk [vmem:[%s733 + $0xa0] sm:$0xff] %vm2974, %v3093
      %3126 = vst.msk [vmem:[%s733 + $0xa8] sm:$0xff] %vm2974, %v3094
      %3127 = vst.msk [vmem:[%s733 + $0xb0] sm:$0xff] %vm2974, %v3095
      %3128 = vst.msk [vmem:[%s733 + $0xb8] sm:$0xff] %vm2974, %v3096
      %3129 = vst.msk [vmem:[%s733 + $0xc0] sm:$0xff] %vm2974, %v3097
      %3130 = vst.msk [vmem:[%s733 + $0xc8] sm:$0xff] %vm2974, %v3098
      %3131 = vst.msk [vmem:[%s733 + $0xd0] sm:$0xff] %vm2974, %v3099
      %3132 = vst.msk [vmem:[%s733 + $0xd8] sm:$0xff] %vm2974, %v3100
      %3133 = vst.msk [vmem:[%s733 + $0xe0] sm:$0xff] %vm2974, %v3101
      %3134 = vst.msk [vmem:[%s733 + $0xe8] sm:$0xff] %vm2974, %v3102
      %3135 = vst.msk [vmem:[%s733 + $0xf0] sm:$0xff] %vm2974, %v3103
      %3136 = vst.msk [vmem:[%s733 + $0xf8] sm:$0xff] %vm2974, %v3104
      %v3169 = vrot.slane %v3073, 7
      %v3170 = vrot.slane %v3074, 7
      %v3171 = vsel %vm761, %v3169, %v3170
      %v3172 = vrot.slane %v3075, 7
      %v3173 = vrot.slane %v3076, 7
      %v3174 = vsel %vm761, %v3172, %v3173
      %v3175 = vrot.slane %v3077, 7
      %v3176 = vrot.slane %v3078, 7
      %v3177 = vsel %vm761, %v3175, %v3176
      %v3178 = vrot.slane %v3079, 7
      %v3179 = vrot.slane %v3080, 7
      %v3180 = vsel %vm761, %v3178, %v3179
      %v3181 = vrot.slane %v3081, 7
      %v3182 = vrot.slane %v3082, 7
      %v3183 = vsel %vm761, %v3181, %v3182
      %v3184 = vrot.slane %v3083, 7
      %v3185 = vrot.slane %v3084, 7
      %v3186 = vsel %vm761, %v3184, %v3185
      %v3187 = vrot.slane %v3085, 7
      %v3188 = vrot.slane %v3086, 7
      %v3189 = vsel %vm761, %v3187, %v3188
      %v3190 = vrot.slane %v3087, 7
      %v3191 = vrot.slane %v3088, 7
      %v3192 = vsel %vm761, %v3190, %v3191
      %v3193 = vrot.slane %v3089, 7
      %v3194 = vrot.slane %v3090, 7
      %v3195 = vsel %vm761, %v3193, %v3194
      %v3196 = vrot.slane %v3091, 7
      %v3197 = vrot.slane %v3092, 7
      %v3198 = vsel %vm761, %v3196, %v3197
      %v3199 = vrot.slane %v3093, 7
      %v3200 = vrot.slane %v3094, 7
      %v3201 = vsel %vm761, %v3199, %v3200
      %v3202 = vrot.slane %v3095, 7
      %v3203 = vrot.slane %v3096, 7
      %v3204 = vsel %vm761, %v3202, %v3203
      %v3205 = vrot.slane %v3097, 7
      %v3206 = vrot.slane %v3098, 7
      %v3207 = vsel %vm761, %v3205, %v3206
      %v3208 = vrot.slane %v3099, 7
      %v3209 = vrot.slane %v3100, 7
      %v3210 = vsel %vm761, %v3208, %v3209
      %v3211 = vrot.slane %v3101, 7
      %v3212 = vrot.slane %v3102, 7
      %v3213 = vsel %vm761, %v3211, %v3212
      %v3214 = vrot.slane %v3103, 7
      %v3215 = vrot.slane %v3104, 7
      %v3216 = vsel %vm761, %v3214, %v3215
      %v3265 = vsub.f32 %v2924, %v3169
      %v3266 = vsub.f32 %v2925, %v3171
      %v3267 = vsub.f32 %v2926, %v3170
      %v3268 = vsub.f32 %v2927, %v3172
      %v3269 = vsub.f32 %v2928, %v3174
      %v3270 = vsub.f32 %v2929, %v3173
      %v3271 = vsub.f32 %v2930, %v3175
      %v3272 = vsub.f32 %v2931, %v3177
      %v3273 = vsub.f32 %v2932, %v3176
      %v3274 = vsub.f32 %v2933, %v3178
      %v3275 = vsub.f32 %v2934, %v3180
      %v3276 = vsub.f32 %v2935, %v3179
      %v3277 = vsub.f32 %v2936, %v3181
      %v3278 = vsub.f32 %v2937, %v3183
      %v3279 = vsub.f32 %v2938, %v3182
      %v3280 = vsub.f32 %v2939, %v3184
      %v3281 = vsub.f32 %v2940, %v3186
      %v3282 = vsub.f32 %v2941, %v3185
      %v3283 = vsub.f32 %v2942, %v3187
      %v3284 = vsub.f32 %v2943, %v3189
      %v3285 = vsub.f32 %v2944, %v3188
      %v3286 = vsub.f32 %v2945, %v3190
      %v3287 = vsub.f32 %v2946, %v3192
      %v3288 = vsub.f32 %v2947, %v3191
      %v3289 = vsub.f32 %v2948, %v3193
      %v3290 = vsub.f32 %v2949, %v3195
      %v3291 = vsub.f32 %v2950, %v3194
      %v3292 = vsub.f32 %v2951, %v3196
      %v3293 = vsub.f32 %v2952, %v3198
      %v3294 = vsub.f32 %v2953, %v3197
      %v3295 = vsub.f32 %v2954, %v3199
      %v3296 = vsub.f32 %v2955, %v3201
      %v3297 = vsub.f32 %v2956, %v3200
      %v3298 = vsub.f32 %v2957, %v3202
      %v3299 = vsub.f32 %v2958, %v3204
      %v3300 = vsub.f32 %v2959, %v3203
      %v3301 = vsub.f32 %v2960, %v3205
      %v3302 = vsub.f32 %v2961, %v3207
      %v3303 = vsub.f32 %v2962, %v3206
      %v3304 = vsub.f32 %v2963, %v3208
      %v3305 = vsub.f32 %v2964, %v3210
      %v3306 = vsub.f32 %v2965, %v3209
      %v3307 = vsub.f32 %v2966, %v3211
      %v3308 = vsub.f32 %v2967, %v3213
      %v3309 = vsub.f32 %v2968, %v3212
      %v3310 = vsub.f32 %v2969, %v3214
      %v3311 = vsub.f32 %v2970, %v3216
      %v3312 = vsub.f32 %v2971, %v3215
      %v3313 = vmul.f32 %v3265, 0.0625
      %v3314 = vmul.f32 %v3266, 0.0625
      %v3315 = vmul.f32 %v3267, 0.0625
      %v3316 = vmul.f32 %v3268, 0.0625
      %v3317 = vmul.f32 %v3269, 0.0625
      %v3318 = vmul.f32 %v3270, 0.0625
      %v3319 = vmul.f32 %v3271, 0.0625
      %v3320 = vmul.f32 %v3272, 0.0625
      %v3321 = vmul.f32 %v3273, 0.0625
      %v3322 = vmul.f32 %v3274, 0.0625
      %v3323 = vmul.f32 %v3275, 0.0625
      %v3324 = vmul.f32 %v3276, 0.0625
      %v3325 = vmul.f32 %v3277, 0.0625
      %v3326 = vmul.f32 %v3278, 0.0625
      %v3327 = vmul.f32 %v3279, 0.0625
      %v3328 = vmul.f32 %v3280, 0.0625
      %v3329 = vmul.f32 %v3281, 0.0625
      %v3330 = vmul.f32 %v3282, 0.0625
      %v3331 = vmul.f32 %v3283, 0.0625
      %v3332 = vmul.f32 %v3284, 0.0625
      %v3333 = vmul.f32 %v3285, 0.0625
      %v3334 = vmul.f32 %v3286, 0.0625
      %v3335 = vmul.f32 %v3287, 0.0625
      %v3336 = vmul.f32 %v3288, 0.0625
      %v3337 = vmul.f32 %v3289, 0.0625
      %v3338 = vmul.f32 %v3290, 0.0625
      %v3339 = vmul.f32 %v3291, 0.0625
      %v3340 = vmul.f32 %v3292, 0.0625
      %v3341 = vmul.f32 %v3293, 0.0625
      %v3342 = vmul.f32 %v3294, 0.0625
      %v3343 = vmul.f32 %v3295, 0.0625
      %v3344 = vmul.f32 %v3296, 0.0625
      %v3345 = vmul.f32 %v3297, 0.0625
      %v3346 = vmul.f32 %v3298, 0.0625
      %v3347 = vmul.f32 %v3299, 0.0625
      %v3348 = vmul.f32 %v3300, 0.0625
      %v3349 = vmul.f32 %v3301, 0.0625
      %v3350 = vmul.f32 %v3302, 0.0625
      %v3351 = vmul.f32 %v3303, 0.0625
      %v3352 = vmul.f32 %v3304, 0.0625
      %v3353 = vmul.f32 %v3305, 0.0625
      %v3354 = vmul.f32 %v3306, 0.0625
      %v3355 = vmul.f32 %v3307, 0.0625
      %v3356 = vmul.f32 %v3308, 0.0625
      %v3357 = vmul.f32 %v3309, 0.0625
      %v3358 = vmul.f32 %v3310, 0.0625
      %v3359 = vmul.f32 %v3311, 0.0625
      %v3360 = vmul.f32 %v3312, 0.0625
      %v3361 = vmul.f32 %v3313, %v3313
      %v3362 = vmul.f32 %v3314, %v3314
      %v3363 = vmul.f32 %v3315, %v3315
      %v3364 = vmul.f32 %v3316, %v3316
      %v3365 = vmul.f32 %v3317, %v3317
      %v3366 = vmul.f32 %v3318, %v3318
      %v3367 = vmul.f32 %v3319, %v3319
      %v3368 = vmul.f32 %v3320, %v3320
      %v3369 = vmul.f32 %v3321, %v3321
      %v3370 = vmul.f32 %v3322, %v3322
      %v3371 = vmul.f32 %v3323, %v3323
      %v3372 = vmul.f32 %v3324, %v3324
      %v3373 = vmul.f32 %v3325, %v3325
      %v3374 = vmul.f32 %v3326, %v3326
      %v3375 = vmul.f32 %v3327, %v3327
      %v3376 = vmul.f32 %v3328, %v3328
      %v3377 = vmul.f32 %v3329, %v3329
      %v3378 = vmul.f32 %v3330, %v3330
      %v3379 = vmul.f32 %v3331, %v3331
      %v3380 = vmul.f32 %v3332, %v3332
      %v3381 = vmul.f32 %v3333, %v3333
      %v3382 = vmul.f32 %v3334, %v3334
      %v3383 = vmul.f32 %v3335, %v3335
      %v3384 = vmul.f32 %v3336, %v3336
      %v3385 = vmul.f32 %v3337, %v3337
      %v3386 = vmul.f32 %v3338, %v3338
      %v3387 = vmul.f32 %v3339, %v3339
      %v3388 = vmul.f32 %v3340, %v3340
      %v3389 = vmul.f32 %v3341, %v3341
      %v3390 = vmul.f32 %v3342, %v3342
      %v3391 = vmul.f32 %v3343, %v3343
      %v3392 = vmul.f32 %v3344, %v3344
      %v3393 = vmul.f32 %v3345, %v3345
      %v3394 = vmul.f32 %v3346, %v3346
      %v3395 = vmul.f32 %v3347, %v3347
      %v3396 = vmul.f32 %v3348, %v3348
      %v3397 = vmul.f32 %v3349, %v3349
      %v3398 = vmul.f32 %v3350, %v3350
      %v3399 = vmul.f32 %v3351, %v3351
      %v3400 = vmul.f32 %v3352, %v3352
      %v3401 = vmul.f32 %v3353, %v3353
      %v3402 = vmul.f32 %v3354, %v3354
      %v3403 = vmul.f32 %v3355, %v3355
      %v3404 = vmul.f32 %v3356, %v3356
      %v3405 = vmul.f32 %v3357, %v3357
      %v3406 = vmul.f32 %v3358, %v3358
      %v3407 = vmul.f32 %v3359, %v3359
      %v3408 = vmul.f32 %v3360, %v3360
      %v3409 = vsel %vm2972, %v3361, 0.0
      %3410 = vadd.xlane.f32.xlu0 %v3409
      %v3411 = vpop.xlane.xlu0 %3410
      %v3412 = vsel %vm2974, %v3362, 0.0
      %3413 = vadd.xlane.f32.xlu0 %v3412
      %v3414 = vpop.xlane.xlu0 %3413
      %v3415 = vsel %vm2976, %v3363, 0.0
      %3416 = vadd.xlane.f32.xlu0 %v3415
      %v3417 = vpop.xlane.xlu0 %3416
      %v3418 = vsel %vm2972, %v3364, 0.0
      %3419 = vadd.xlane.f32.xlu0 %v3418
      %v3420 = vpop.xlane.xlu0 %3419
      %v3421 = vsel %vm2974, %v3365, 0.0
      %3422 = vadd.xlane.f32.xlu0 %v3421
      %v3423 = vpop.xlane.xlu0 %3422
      %v3424 = vsel %vm2976, %v3366, 0.0
      %3425 = vadd.xlane.f32.xlu0 %v3424
      %v3426 = vpop.xlane.xlu0 %3425
      %v3427 = vsel %vm2972, %v3367, 0.0
      %3428 = vadd.xlane.f32.xlu0 %v3427
      %v3429 = vpop.xlane.xlu0 %3428
      %v3430 = vsel %vm2974, %v3368, 0.0
      %3431 = vadd.xlane.f32.xlu0 %v3430
      %v3432 = vpop.xlane.xlu0 %3431
      %v3433 = vsel %vm2976, %v3369, 0.0
      %3434 = vadd.xlane.f32.xlu0 %v3433
      %v3435 = vpop.xlane.xlu0 %3434
      %v3436 = vsel %vm2972, %v3370, 0.0
      %3437 = vadd.xlane.f32.xlu0 %v3436
      %v3438 = vpop.xlane.xlu0 %3437
      %v3439 = vsel %vm2974, %v3371, 0.0
      %3440 = vadd.xlane.f32.xlu0 %v3439
      %v3441 = vpop.xlane.xlu0 %3440
      %v3442 = vsel %vm2976, %v3372, 0.0
      %3443 = vadd.xlane.f32.xlu0 %v3442
      %v3444 = vpop.xlane.xlu0 %3443
      %v3445 = vsel %vm2972, %v3373, 0.0
      %3446 = vadd.xlane.f32.xlu0 %v3445
      %v3447 = vpop.xlane.xlu0 %3446
      %v3448 = vsel %vm2974, %v3374, 0.0
      %3449 = vadd.xlane.f32.xlu0 %v3448
      %v3450 = vpop.xlane.xlu0 %3449
      %v3451 = vsel %vm2976, %v3375, 0.0
      %3452 = vadd.xlane.f32.xlu0 %v3451
      %v3453 = vpop.xlane.xlu0 %3452
      %v3454 = vsel %vm2972, %v3376, 0.0
      %3455 = vadd.xlane.f32.xlu0 %v3454
      %v3456 = vpop.xlane.xlu0 %3455
      %v3457 = vsel %vm2974, %v3377, 0.0
      %3458 = vadd.xlane.f32.xlu0 %v3457
      %v3459 = vpop.xlane.xlu0 %3458
      %v3460 = vsel %vm2976, %v3378, 0.0
      %3461 = vadd.xlane.f32.xlu0 %v3460
      %v3462 = vpop.xlane.xlu0 %3461
      %v3463 = vsel %vm2972, %v3379, 0.0
      %3464 = vadd.xlane.f32.xlu0 %v3463
      %v3465 = vpop.xlane.xlu0 %3464
      %v3466 = vsel %vm2974, %v3380, 0.0
      %3467 = vadd.xlane.f32.xlu0 %v3466
      %v3468 = vpop.xlane.xlu0 %3467
      %v3469 = vsel %vm2976, %v3381, 0.0
      %3470 = vadd.xlane.f32.xlu0 %v3469
      %v3471 = vpop.xlane.xlu0 %3470
      %v3472 = vsel %vm2972, %v3382, 0.0
      %3473 = vadd.xlane.f32.xlu0 %v3472
      %v3474 = vpop.xlane.xlu0 %3473
      %v3475 = vsel %vm2974, %v3383, 0.0
      %3476 = vadd.xlane.f32.xlu0 %v3475
      %v3477 = vpop.xlane.xlu0 %3476
      %v3478 = vsel %vm2976, %v3384, 0.0
      %3479 = vadd.xlane.f32.xlu0 %v3478
      %v3480 = vpop.xlane.xlu0 %3479
      %v3481 = vsel %vm2972, %v3385, 0.0
      %3482 = vadd.xlane.f32.xlu0 %v3481
      %v3483 = vpop.xlane.xlu0 %3482
      %v3484 = vsel %vm2974, %v3386, 0.0
      %3485 = vadd.xlane.f32.xlu0 %v3484
      %v3486 = vpop.xlane.xlu0 %3485
      %v3487 = vsel %vm2976, %v3387, 0.0
      %3488 = vadd.xlane.f32.xlu0 %v3487
      %v3489 = vpop.xlane.xlu0 %3488
      %v3490 = vsel %vm2972, %v3388, 0.0
      %3491 = vadd.xlane.f32.xlu0 %v3490
      %v3492 = vpop.xlane.xlu0 %3491
      %v3493 = vsel %vm2974, %v3389, 0.0
      %3494 = vadd.xlane.f32.xlu0 %v3493
      %v3495 = vpop.xlane.xlu0 %3494
      %v3496 = vsel %vm2976, %v3390, 0.0
      %3497 = vadd.xlane.f32.xlu0 %v3496
      %v3498 = vpop.xlane.xlu0 %3497
      %v3499 = vsel %vm2972, %v3391, 0.0
      %3500 = vadd.xlane.f32.xlu0 %v3499
      %v3501 = vpop.xlane.xlu0 %3500
      %v3502 = vsel %vm2974, %v3392, 0.0
      %3503 = vadd.xlane.f32.xlu0 %v3502
      %v3504 = vpop.xlane.xlu0 %3503
      %v3505 = vsel %vm2976, %v3393, 0.0
      %3506 = vadd.xlane.f32.xlu0 %v3505
      %v3507 = vpop.xlane.xlu0 %3506
      %v3508 = vsel %vm2972, %v3394, 0.0
      %3509 = vadd.xlane.f32.xlu0 %v3508
      %v3510 = vpop.xlane.xlu0 %3509
      %v3511 = vsel %vm2974, %v3395, 0.0
      %3512 = vadd.xlane.f32.xlu0 %v3511
      %v3513 = vpop.xlane.xlu0 %3512
      %v3514 = vsel %vm2976, %v3396, 0.0
      %3515 = vadd.xlane.f32.xlu0 %v3514
      %v3516 = vpop.xlane.xlu0 %3515
      %v3517 = vsel %vm2972, %v3397, 0.0
      %3518 = vadd.xlane.f32.xlu0 %v3517
      %v3519 = vpop.xlane.xlu0 %3518
      %v3520 = vsel %vm2974, %v3398, 0.0
      %3521 = vadd.xlane.f32.xlu0 %v3520
      %v3522 = vpop.xlane.xlu0 %3521
      %v3523 = vsel %vm2976, %v3399, 0.0
      %3524 = vadd.xlane.f32.xlu0 %v3523
      %v3525 = vpop.xlane.xlu0 %3524
      %v3526 = vsel %vm2972, %v3400, 0.0
      %3527 = vadd.xlane.f32.xlu0 %v3526
      %v3528 = vpop.xlane.xlu0 %3527
      %v3529 = vsel %vm2974, %v3401, 0.0
      %3530 = vadd.xlane.f32.xlu0 %v3529
      %v3531 = vpop.xlane.xlu0 %3530
      %v3532 = vsel %vm2976, %v3402, 0.0
      %3533 = vadd.xlane.f32.xlu0 %v3532
      %v3534 = vpop.xlane.xlu0 %3533
      %v3535 = vsel %vm2972, %v3403, 0.0
      %3536 = vadd.xlane.f32.xlu0 %v3535
      %v3537 = vpop.xlane.xlu0 %3536
      %v3538 = vsel %vm2974, %v3404, 0.0
      %3539 = vadd.xlane.f32.xlu0 %v3538
      %v3540 = vpop.xlane.xlu0 %3539
      %v3541 = vsel %vm2976, %v3405, 0.0
      %3542 = vadd.xlane.f32.xlu0 %v3541
      %v3543 = vpop.xlane.xlu0 %3542
      %v3544 = vsel %vm2972, %v3406, 0.0
      %3545 = vadd.xlane.f32.xlu0 %v3544
      %v3546 = vpop.xlane.xlu0 %3545
      %v3547 = vsel %vm2974, %v3407, 0.0
      %3548 = vadd.xlane.f32.xlu0 %v3547
      %v3549 = vpop.xlane.xlu0 %3548
      %v3550 = vsel %vm2976, %v3408, 0.0
      %3551 = vadd.xlane.f32.xlu0 %v3550
      %v3552 = vpop.xlane.xlu0 %3551
      %vm3601 = vcmask 1046528
      %v3602 = vrot.slane %v3411, 1
      %v3603 = vrot.slane %v3414, 1
      %v3604 = vsel %vm3601, %v3602, %v3603
      %v3605 = vrot.slane %v3417, 1
      %v3606 = vsel %vm3601, %v3603, %v3605
      %v3607 = vrot.slane %v3420, 1
      %v3608 = vrot.slane %v3423, 1
      %v3609 = vsel %vm3601, %v3607, %v3608
      %v3610 = vrot.slane %v3426, 1
      %v3611 = vsel %vm3601, %v3608, %v3610
      %v3612 = vrot.slane %v3429, 1
      %v3613 = vrot.slane %v3432, 1
      %v3614 = vsel %vm3601, %v3612, %v3613
      %v3615 = vrot.slane %v3435, 1
      %v3616 = vsel %vm3601, %v3613, %v3615
      %v3617 = vrot.slane %v3438, 1
      %v3618 = vrot.slane %v3441, 1
      %v3619 = vsel %vm3601, %v3617, %v3618
      %v3620 = vrot.slane %v3444, 1
      %v3621 = vsel %vm3601, %v3618, %v3620
      %v3622 = vrot.slane %v3447, 1
      %v3623 = vrot.slane %v3450, 1
      %v3624 = vsel %vm3601, %v3622, %v3623
      %v3625 = vrot.slane %v3453, 1
      %v3626 = vsel %vm3601, %v3623, %v3625
      %v3627 = vrot.slane %v3456, 1
      %v3628 = vrot.slane %v3459, 1
      %v3629 = vsel %vm3601, %v3627, %v3628
      %v3630 = vrot.slane %v3462, 1
      %v3631 = vsel %vm3601, %v3628, %v3630
      %v3632 = vrot.slane %v3465, 1
      %v3633 = vrot.slane %v3468, 1
      %v3634 = vsel %vm3601, %v3632, %v3633
      %v3635 = vrot.slane %v3471, 1
      %v3636 = vsel %vm3601, %v3633, %v3635
      %v3637 = vrot.slane %v3474, 1
      %v3638 = vrot.slane %v3477, 1
      %v3639 = vsel %vm3601, %v3637, %v3638
      %v3640 = vrot.slane %v3480, 1
      %v3641 = vsel %vm3601, %v3638, %v3640
      %v3642 = vrot.slane %v3483, 1
      %v3643 = vrot.slane %v3486, 1
      %v3644 = vsel %vm3601, %v3642, %v3643
      %v3645 = vrot.slane %v3489, 1
      %v3646 = vsel %vm3601, %v3643, %v3645
      %v3647 = vrot.slane %v3492, 1
      %v3648 = vrot.slane %v3495, 1
      %v3649 = vsel %vm3601, %v3647, %v3648
      %v3650 = vrot.slane %v3498, 1
      %v3651 = vsel %vm3601, %v3648, %v3650
      %v3652 = vrot.slane %v3501, 1
      %v3653 = vrot.slane %v3504, 1
      %v3654 = vsel %vm3601, %v3652, %v3653
      %v3655 = vrot.slane %v3507, 1
      %v3656 = vsel %vm3601, %v3653, %v3655
      %v3657 = vrot.slane %v3510, 1
      %v3658 = vrot.slane %v3513, 1
      %v3659 = vsel %vm3601, %v3657, %v3658
      %v3660 = vrot.slane %v3516, 1
      %v3661 = vsel %vm3601, %v3658, %v3660
      %v3662 = vrot.slane %v3519, 1
      %v3663 = vrot.slane %v3522, 1
      %v3664 = vsel %vm3601, %v3662, %v3663
      %v3665 = vrot.slane %v3525, 1
      %v3666 = vsel %vm3601, %v3663, %v3665
      %v3667 = vrot.slane %v3528, 1
      %v3668 = vrot.slane %v3531, 1
      %v3669 = vsel %vm3601, %v3667, %v3668
      %v3670 = vrot.slane %v3534, 1
      %v3671 = vsel %vm3601, %v3668, %v3670
      %v3672 = vrot.slane %v3537, 1
      %v3673 = vrot.slane %v3540, 1
      %v3674 = vsel %vm3601, %v3672, %v3673
      %v3675 = vrot.slane %v3543, 1
      %v3676 = vsel %vm3601, %v3673, %v3675
      %v3677 = vrot.slane %v3546, 1
      %v3678 = vrot.slane %v3549, 1
      %v3679 = vsel %vm3601, %v3677, %v3678
      %v3680 = vrot.slane %v3552, 1
      %v3681 = vsel %vm3601, %v3678, %v3680
      %v3714 = vadd.f32 %v3604, %v3606
      %v3715 = vrot.slane %v3714, 4
      %v3716 = vadd.f32 %v3714, %v3715
      %v3717 = vrot.slane %v3716, 2
      %v3718 = vadd.f32 %v3716, %v3717
      %v3719 = vrot.slane %v3718, 1
      %v3720 = vadd.f32 %v3718, %v3719
      %v3721 = vadd.f32 %v3609, %v3611
      %v3722 = vrot.slane %v3721, 4
      %v3723 = vadd.f32 %v3721, %v3722
      %v3724 = vrot.slane %v3723, 2
      %v3725 = vadd.f32 %v3723, %v3724
      %v3726 = vrot.slane %v3725, 1
      %v3727 = vadd.f32 %v3725, %v3726
      %v3728 = vadd.f32 %v3614, %v3616
      %v3729 = vrot.slane %v3728, 4
      %v3730 = vadd.f32 %v3728, %v3729
      %v3731 = vrot.slane %v3730, 2
      %v3732 = vadd.f32 %v3730, %v3731
      %v3733 = vrot.slane %v3732, 1
      %v3734 = vadd.f32 %v3732, %v3733
      %v3735 = vadd.f32 %v3619, %v3621
      %v3736 = vrot.slane %v3735, 4
      %v3737 = vadd.f32 %v3735, %v3736
      %v3738 = vrot.slane %v3737, 2
      %v3739 = vadd.f32 %v3737, %v3738
      %v3740 = vrot.slane %v3739, 1
      %v3741 = vadd.f32 %v3739, %v3740
      %v3742 = vadd.f32 %v3624, %v3626
      %v3743 = vrot.slane %v3742, 4
      %v3744 = vadd.f32 %v3742, %v3743
      %v3745 = vrot.slane %v3744, 2
      %v3746 = vadd.f32 %v3744, %v3745
      %v3747 = vrot.slane %v3746, 1
      %v3748 = vadd.f32 %v3746, %v3747
      %v3749 = vadd.f32 %v3629, %v3631
      %v3750 = vrot.slane %v3749, 4
      %v3751 = vadd.f32 %v3749, %v3750
      %v3752 = vrot.slane %v3751, 2
      %v3753 = vadd.f32 %v3751, %v3752
      %v3754 = vrot.slane %v3753, 1
      %v3755 = vadd.f32 %v3753, %v3754
      %v3756 = vadd.f32 %v3634, %v3636
      %v3757 = vrot.slane %v3756, 4
      %v3758 = vadd.f32 %v3756, %v3757
      %v3759 = vrot.slane %v3758, 2
      %v3760 = vadd.f32 %v3758, %v3759
      %v3761 = vrot.slane %v3760, 1
      %v3762 = vadd.f32 %v3760, %v3761
      %v3763 = vadd.f32 %v3639, %v3641
      %v3764 = vrot.slane %v3763, 4
      %v3765 = vadd.f32 %v3763, %v3764
      %v3766 = vrot.slane %v3765, 2
      %v3767 = vadd.f32 %v3765, %v3766
      %v3768 = vrot.slane %v3767, 1
      %v3769 = vadd.f32 %v3767, %v3768
      %v3770 = vadd.f32 %v3644, %v3646
      %v3771 = vrot.slane %v3770, 4
      %v3772 = vadd.f32 %v3770, %v3771
      %v3773 = vrot.slane %v3772, 2
      %v3774 = vadd.f32 %v3772, %v3773
      %v3775 = vrot.slane %v3774, 1
      %v3776 = vadd.f32 %v3774, %v3775
      %v3777 = vadd.f32 %v3649, %v3651
      %v3778 = vrot.slane %v3777, 4
      %v3779 = vadd.f32 %v3777, %v3778
      %v3780 = vrot.slane %v3779, 2
      %v3781 = vadd.f32 %v3779, %v3780
      %v3782 = vrot.slane %v3781, 1
      %v3783 = vadd.f32 %v3781, %v3782
      %v3784 = vadd.f32 %v3654, %v3656
      %v3785 = vrot.slane %v3784, 4
      %v3786 = vadd.f32 %v3784, %v3785
      %v3787 = vrot.slane %v3786, 2
      %v3788 = vadd.f32 %v3786, %v3787
      %v3789 = vrot.slane %v3788, 1
      %v3790 = vadd.f32 %v3788, %v3789
      %v3791 = vadd.f32 %v3659, %v3661
      %v3792 = vrot.slane %v3791, 4
      %v3793 = vadd.f32 %v3791, %v3792
      %v3794 = vrot.slane %v3793, 2
      %v3795 = vadd.f32 %v3793, %v3794
      %v3796 = vrot.slane %v3795, 1
      %v3797 = vadd.f32 %v3795, %v3796
      %v3798 = vadd.f32 %v3664, %v3666
      %v3799 = vrot.slane %v3798, 4
      %v3800 = vadd.f32 %v3798, %v3799
      %v3801 = vrot.slane %v3800, 2
      %v3802 = vadd.f32 %v3800, %v3801
      %v3803 = vrot.slane %v3802, 1
      %v3804 = vadd.f32 %v3802, %v3803
      %v3805 = vadd.f32 %v3669, %v3671
      %v3806 = vrot.slane %v3805, 4
      %v3807 = vadd.f32 %v3805, %v3806
      %v3808 = vrot.slane %v3807, 2
      %v3809 = vadd.f32 %v3807, %v3808
      %v3810 = vrot.slane %v3809, 1
      %v3811 = vadd.f32 %v3809, %v3810
      %v3812 = vadd.f32 %v3674, %v3676
      %v3813 = vrot.slane %v3812, 4
      %v3814 = vadd.f32 %v3812, %v3813
      %v3815 = vrot.slane %v3814, 2
      %v3816 = vadd.f32 %v3814, %v3815
      %v3817 = vrot.slane %v3816, 1
      %v3818 = vadd.f32 %v3816, %v3817
      %v3819 = vadd.f32 %v3679, %v3681
      %v3820 = vrot.slane %v3819, 4
      %v3821 = vadd.f32 %v3819, %v3820
      %v3822 = vrot.slane %v3821, 2
      %v3823 = vadd.f32 %v3821, %v3822
      %v3824 = vrot.slane %v3823, 1
      %v3825 = vadd.f32 %v3823, %v3824
      %v3826 = vadd.f32 %v3720, %v3727
      %v3827 = vadd.f32 %v3826, %v3734
      %v3828 = vadd.f32 %v3827, %v3741
      %v3829 = vadd.f32 %v3828, %v3748
      %v3830 = vadd.f32 %v3829, %v3755
      %v3831 = vadd.f32 %v3830, %v3762
      %v3832 = vadd.f32 %v3831, %v3769
      %v3833 = vadd.f32 %v3832, %v3776
      %v3834 = vadd.f32 %v3833, %v3783
      %v3835 = vadd.f32 %v3834, %v3790
      %v3836 = vadd.f32 %v3835, %v3797
      %v3837 = vadd.f32 %v3836, %v3804
      %v3838 = vadd.f32 %v3837, %v3811
      %v3839 = vadd.f32 %v3838, %v3818
      %v3840 = vadd.f32 %v3839, %v3825
      %vm3841 = vcmask 0
      %3842 = vst.msk [vmem:[%s736] sm:$0x1] %vm3841, %v3840
      %p3843 = scmp.lt.s32.totalorder %s34, 1
      %s3844 = scalar_select %p3843, %s34, 1
      %s3845 = smul.addr %s3844, 3
      %s3846 = smul.addr %s3845, 8
      %s3847 = scalar_lea.vmem %s19, %s3846
      %p3848 = scmp.lt.s32.totalorder %s34, 1
      %s3849 = scalar_select %p3848, %s34, 1
      %s3850 = smul.addr %s3849, 32
      %s3851 = smul.addr %s3850, 8
      %s3852 = scalar_lea.vmem %s20, %s3851
      %p3853 = scmp.lt.s32.totalorder %s34, 1
      %s3854 = scalar_select %p3853, %s34, 1
      %s3855 = smul.addr %s3854, 32
      %s3856 = smul.addr %s3855, 8
      %s3857 = scalar_lea.vmem %s21, %s3856
      %p3858 = scmp.lt.s32.totalorder %s34, 1
      %s3859 = scalar_select %p3858, %s34, 1
      %s3860 = scalar_lea.vmem %s22, %s3859
      // Predicated region
      $region97: #{tpu_custom_call.1} parent=95 // pred_check
        %p3861 = pneg %p461
      $region98: #{tpu_custom_call.1} parent=95 // pred_check_branch
        %3863 = sbr.rel (%p3861) target = $region100
      $region99: #{tpu_custom_call.1} parent=95 // pred_region
        _
      $region100: #{tpu_custom_call.1} parent=95 // pred_fallthru
        _
      // Predicated region
      $region101: #{tpu_custom_call.1} parent=95 // pred_check
        %p3864 = pneg %p487
      $region102: #{tpu_custom_call.1} parent=95 // pred_check_branch
        %3866 = sbr.rel (%p3864) target = $region104
      $region103: #{tpu_custom_call.1} parent=95 // pred_region
        _
      $region104: #{tpu_custom_call.1} parent=95 // pred_fallthru
        _
      // Predicated region
      $region105: #{tpu_custom_call.1} parent=95 // pred_check
        %p3867 = pneg %p513
      $region106: #{tpu_custom_call.1} parent=95 // pred_check_branch
        %3869 = sbr.rel (%p3867) target = $region108
      $region107: #{tpu_custom_call.1} parent=95 // pred_region
        _
      $region108: #{tpu_custom_call.1} parent=95 // pred_fallthru
        _
      // Predicated region
      $region109: #{tpu_custom_call.1} parent=95 // pred_check
        %p3870 = pneg %p539
      $region110: #{tpu_custom_call.1} parent=95 // pred_check_branch
        %3872 = sbr.rel (%p3870) target = $region112
      $region111: #{tpu_custom_call.1} parent=95 // pred_region
        _
      $region112: #{tpu_custom_call.1} parent=95 // pred_fallthru
        _
    $region96: #{tpu_custom_call.1} parent=5 // pred_fallthru
      _
    %p3873 = scmp.le.s32.totalorder 2, %s29
    // Predicated region
    $region113: #{tpu_custom_call.1} parent=5 // pred_check
      %p3874 = pneg %p3873
    $region114: #{tpu_custom_call.1} parent=5 // pred_check_branch
      %3876 = sbr.rel (%p3874) target = $region116
    $region115: #{tpu_custom_call.1} parent=5 // pred_region
      %s3877 = ssub.s32 %s29, 2
      // Predicated region
      $region117: #{tpu_custom_call.1} parent=115 // pred_check
        %p3878 = pneg %p467
      $region118: #{tpu_custom_call.1} parent=115 // pred_check_branch
        %3880 = sbr.rel (%p3878) target = $region120
      $region119: #{tpu_custom_call.1} parent=115 // pred_region
        %p3881 = scmp.lt.s32.totalorder %s35, 1
        %s3882 = scalar_select %p3881, %s35, 1
        %s3883 = smul.addr %s3882, 3
        %s3884 = smul.addr %s3883, 8
        %s3885 = scalar_lea.vmem %s19, %s3884
      $region120: #{tpu_custom_call.1} parent=115 // pred_fallthru
        _
      // Predicated region
      $region121: #{tpu_custom_call.1} parent=115 // pred_check
        %p3886 = pneg %p493
      $region122: #{tpu_custom_call.1} parent=115 // pred_check_branch
        %3888 = sbr.rel (%p3886) target = $region124
      $region123: #{tpu_custom_call.1} parent=115 // pred_region
        %p3889 = scmp.lt.s32.totalorder %s35, 1
        %s3890 = scalar_select %p3889, %s35, 1
        %s3891 = smul.addr %s3890, 32
        %s3892 = smul.addr %s3891, 8
        %s3893 = scalar_lea.vmem %s20, %s3892
      $region124: #{tpu_custom_call.1} parent=115 // pred_fallthru
        _
      // Predicated region
      $region125: #{tpu_custom_call.1} parent=115 // pred_check
        %p3894 = pneg %p519
      $region126: #{tpu_custom_call.1} parent=115 // pred_check_branch
        %3896 = sbr.rel (%p3894) target = $region128
      $region127: #{tpu_custom_call.1} parent=115 // pred_region
        %p3897 = scmp.lt.s32.totalorder %s35, 1
        %s3898 = scalar_select %p3897, %s35, 1
        %s3899 = smul.addr %s3898, 32
        %s3900 = smul.addr %s3899, 8
        %s3901 = scalar_lea.vmem %s21, %s3900
      $region128: #{tpu_custom_call.1} parent=115 // pred_fallthru
        _
      // Predicated region
      $region129: #{tpu_custom_call.1} parent=115 // pred_check
        %p3902 = pneg %p545
      $region130: #{tpu_custom_call.1} parent=115 // pred_check_branch
        %3904 = sbr.rel (%p3902) target = $region132
      $region131: #{tpu_custom_call.1} parent=115 // pred_region
        %p3905 = scmp.lt.s32.totalorder %s35, 1
        %s3906 = scalar_select %p3905, %s35, 1
        %s3907 = scalar_lea.vmem %s22, %s3906
      $region132: #{tpu_custom_call.1} parent=115 // pred_fallthru
        _
    $region116: #{tpu_custom_call.1} parent=5 // pred_fallthru
      _
  $region6: #{tpu_custom_call.1} parent=0 // loop_footer
    %s33 = sadd.s32 1, %s29
  $region7: #{tpu_custom_call.1} parent=0 // loop_footer_branch
    %28 = sbr.rel target = $region3
  $region8: #{tpu_custom_call.1} parent=0 // loop_exit
    _

</llo_original>
